<compile_context>
chip_gen: v6e
topology: v6e:2x2x1
jax: 0.10.0
libtpu: 0.0.40
codegen_flags: <defaults>
</compile_context>

<pallas_src>
import jax
import jax.numpy as jnp
from jax.experimental import pallas as pl
from jax.experimental.pallas import tpu as pltpu


def basic_block_kernel(xpad_ref, w1_ref, w2_ref, o_ref, mid_ref):
    # xpad_ref : (N, H+2, W+2, C)    spatially zero-padded NHWC input (whole batch)
    # w1_ref   : (9*C,   Cout)       conv1 weights, im2col row order (kh, kw, ci)
    # w2_ref   : (9*Cout, Cout)      conv2 weights, im2col row order (kh, kw, ci)
    # o_ref    : (N, H, W, Cout)
    # mid_ref  : VMEM scratch (N, H+2, W+2, Cout) -- zero-padded tanh(conv1(x))
    N, Hp, Wp, C = xpad_ref.shape
    H, W = Hp - 2, Wp - 2
    Cout = w1_ref.shape[1]

    xpad = xpad_ref[...]                                   # (N, H+2, W+2, C)

    # ---- conv1 as a single MXU matmul: im2col LHS (N*H*W, 9*C) @ (9*C, Cout) ----
    cols1 = jnp.concatenate(
        [xpad[:, kh:kh + H, kw:kw + W, :] for kh in range(3) for kw in range(3)],
        axis=-1)                                           # (N, H, W, 9*C)
    lhs1 = cols1.reshape(N * H * W, 9 * C)                 # major-dim merge only
    out1 = jax.lax.dot_general(
        lhs1, w1_ref[...],
        dimension_numbers=(((1,), (0,)), ((), ())),
        preferred_element_type=jnp.float32)                # (N*H*W, Cout)

    # ---- tanh + zero-padded intermediate for conv2's 1-pixel halo ----
    # Single grid step => this zero-init happens exactly once per call.
    mid_ref[...] = jnp.zeros(mid_ref.shape, mid_ref.dtype)
    mid_ref[:, 1:1 + H, 1:1 + W, :] = jnp.tanh(out1).reshape(N, H, W, Cout)

    # ---- conv2 as a single MXU matmul ----
    midp = mid_ref[...]                                    # (N, H+2, W+2, Cout)
    cols2 = jnp.concatenate(
        [midp[:, kh:kh + H, kw:kw + W, :] for kh in range(3) for kw in range(3)],
        axis=-1)                                           # (N, H, W, 9*Cout)
    lhs2 = cols2.reshape(N * H * W, 9 * Cout)
    out2 = jax.lax.dot_general(
        lhs2, w2_ref[...],
        dimension_numbers=(((1,), (0,)), ((), ())),
        preferred_element_type=jnp.float32)                # (N*H*W, Cout)

    # ---- residual add + tanh (identity = center of the padded input) ----
    identity = xpad[:, 1:1 + H, 1:1 + W, :]                # (N, H, W, C)
    o_ref[...] = jnp.tanh(out2.reshape(N, H, W, Cout) + identity)


def basic_block_forward(x_nchw, w1_oihw, w2_oihw):
    """x_nchw: (N, C, H, W) float32; weights in PyTorch OIHW layout."""
    N, C, H, W = x_nchw.shape
    Cout = w1_oihw.shape[0]
    assert Cout == C, "identity skip requires inplanes == planes (downsample=None)"
    # TODO(synk): downsample branch not implemented (module default is None)

    x_nhwc = jnp.transpose(x_nchw, (0, 2, 3, 1))                 # (N, H, W, C)
    xpad = jnp.pad(x_nhwc, ((0, 0), (1, 1), (1, 1), (0, 0)))     # (N, H+2, W+2, C)
    # OIHW -> (kh, kw, Cin, Cout) -> (9*Cin, Cout), row order (kh, kw, ci) to
    # match the in-kernel im2col concatenation order.
    w1_mat = jnp.transpose(w1_oihw, (2, 3, 1, 0)).reshape(9 * C, Cout)
    w2_mat = jnp.transpose(w2_oihw, (2, 3, 1, 0)).reshape(9 * Cout, Cout)

    out_nhwc = pl.pallas_call(
        basic_block_kernel,
        out_shape=jax.ShapeDtypeStruct((N, H, W, Cout), jnp.float32),
        grid_spec=pltpu.PrefetchScalarGridSpec(
            num_scalar_prefetch=0,
            grid=(1,),  # whole batch folded into one step (M = N*H*W in the matmuls)
            in_specs=[
                pl.BlockSpec((N, H + 2, W + 2, C), lambda i: (0, 0, 0, 0)),
                pl.BlockSpec((9 * C, Cout), lambda i: (0, 0)),
                pl.BlockSpec((9 * Cout, Cout), lambda i: (0, 0)),
            ],
            out_specs=pl.BlockSpec((N, H, W, Cout), lambda i: (0, 0, 0, 0)),
            scratch_shapes=[pltpu.VMEM((N, H + 2, W + 2, Cout), jnp.float32)],
        ),
        # Single step, so semantics are moot; at real ResNet sizes, tile over
        # N/H with "parallel" to use both v7x TensorCores and re-budget VMEM.
        compiler_params=pltpu.CompilerParams(
            dimension_semantics=("arbitrary",)),
    )(xpad, w1_mat, w2_mat)

    return jnp.transpose(out_nhwc, (0, 3, 1, 2))                 # back to NCHW


def basic_block_reference(x_nchw, w1_oihw, w2_oihw):
    dn = ("NCHW", "OIHW", "NCHW")
    out = jax.lax.conv_general_dilated(
        x_nchw, w1_oihw, (1, 1), ((1, 1), (1, 1)), dimension_numbers=dn)
    out = jnp.tanh(out)
    out = jax.lax.conv_general_dilated(
        out, w2_oihw, (1, 1), ((1, 1), (1, 1)), dimension_numbers=dn)
    return jnp.tanh(out + x_nchw)


if __name__ == "__main__":
    # BasicBlock(inplanes=16, planes=16, stride=1, downsample=None)
    N, C, H, W = 2, 16, 16, 16
    key = jax.random.PRNGKey(0)
    kx, k1, k2 = jax.random.split(key, 3)

    x = jax.random.normal(kx, (N, C, H, W), dtype=jnp.float32)
    # deterministic synthetic weights, PyTorch OIHW layout (out, in, 3, 3)
    w1 = 0.1 * jax.random.normal(k1, (C, C, 3, 3), dtype=jnp.float32)
    w2 = 0.1 * jax.random.normal(k2, (C, C, 3, 3), dtype=jnp.float32)

    out = basic_block_forward(x, w1, w2)
    out = jax.block_until_ready(out)

    ref = basic_block_reference(x, w1, w2)
    assert out.shape == (N, C, H, W)
    assert jnp.allclose(out, ref, atol=1e-4, rtol=1e-4), "mismatch vs XLA conv reference"

    print("KERNEL_OK")
</pallas_src>

<mosaic_0001>
module attributes {stable_mosaic.version = 11 : i64} {
  func.func @basic_block_kernel(%arg0: i32, %arg1: memref<2x18x18x16xf32, #tpu.memory_space<vmem>>, %arg2: memref<144x16xf32, #tpu.memory_space<vmem>>, %arg3: memref<144x16xf32, #tpu.memory_space<vmem>>, %arg4: memref<2x16x16x16xf32, #tpu.memory_space<vmem>>, %arg5: memref<2x18x18x16xf32, #tpu.memory_space<vmem>>) attributes {dimension_semantics = [#tpu.dimension_semantics<arbitrary>], iteration_bounds = array<i64: 1>, scalar_prefetch = 0 : i64, scratch_operands = 1 : i64, tpu.core_type = #tpu.core_type<tc>, window_params = [{pipeline_mode = #tpu.pipeline_mode<synchronous>, transform_indices = @transform_0, window_bounds = array<i64: 2, 18, 18, 16>}, {pipeline_mode = #tpu.pipeline_mode<synchronous>, transform_indices = @transform_1, window_bounds = array<i64: 144, 16>}, {pipeline_mode = #tpu.pipeline_mode<synchronous>, transform_indices = @transform_2, window_bounds = array<i64: 144, 16>}, {pipeline_mode = #tpu.pipeline_mode<synchronous>, transform_indices = @transform_3, window_bounds = array<i64: 2, 16, 16, 16>}]} {
    %c0 = arith.constant 0 : index
    %c0_0 = arith.constant 0 : index
    %c0_1 = arith.constant 0 : index
    %c0_2 = arith.constant 0 : index
    %0 = vector.load %arg1[%c0, %c0_0, %c0_1, %c0_2] : memref<2x18x18x16xf32, #tpu.memory_space<vmem>>, vector<2x18x18x16xf32>
    %1 = vector.extract_strided_slice %0 {offsets = [0, 0, 0, 0], sizes = [2, 16, 16, 16], strides = [1, 1, 1, 1]} : vector<2x18x18x16xf32> to vector<2x16x16x16xf32>
    %2 = vector.extract_strided_slice %0 {offsets = [0, 0, 1, 0], sizes = [2, 16, 16, 16], strides = [1, 1, 1, 1]} : vector<2x18x18x16xf32> to vector<2x16x16x16xf32>
    %3 = vector.extract_strided_slice %0 {offsets = [0, 0, 2, 0], sizes = [2, 16, 16, 16], strides = [1, 1, 1, 1]} : vector<2x18x18x16xf32> to vector<2x16x16x16xf32>
    %4 = vector.extract_strided_slice %0 {offsets = [0, 1, 0, 0], sizes = [2, 16, 16, 16], strides = [1, 1, 1, 1]} : vector<2x18x18x16xf32> to vector<2x16x16x16xf32>
    %5 = vector.extract_strided_slice %0 {offsets = [0, 1, 1, 0], sizes = [2, 16, 16, 16], strides = [1, 1, 1, 1]} : vector<2x18x18x16xf32> to vector<2x16x16x16xf32>
    %6 = vector.extract_strided_slice %0 {offsets = [0, 1, 2, 0], sizes = [2, 16, 16, 16], strides = [1, 1, 1, 1]} : vector<2x18x18x16xf32> to vector<2x16x16x16xf32>
    %7 = vector.extract_strided_slice %0 {offsets = [0, 2, 0, 0], sizes = [2, 16, 16, 16], strides = [1, 1, 1, 1]} : vector<2x18x18x16xf32> to vector<2x16x16x16xf32>
    %8 = vector.extract_strided_slice %0 {offsets = [0, 2, 1, 0], sizes = [2, 16, 16, 16], strides = [1, 1, 1, 1]} : vector<2x18x18x16xf32> to vector<2x16x16x16xf32>
    %9 = vector.extract_strided_slice %0 {offsets = [0, 2, 2, 0], sizes = [2, 16, 16, 16], strides = [1, 1, 1, 1]} : vector<2x18x18x16xf32> to vector<2x16x16x16xf32>
    %10 = tpu.concatenate %1, %2, %3, %4, %5, %6, %7, %8, %9 in 3 : vector<2x16x16x16xf32>, vector<2x16x16x16xf32>, vector<2x16x16x16xf32>, vector<2x16x16x16xf32>, vector<2x16x16x16xf32>, vector<2x16x16x16xf32>, vector<2x16x16x16xf32>, vector<2x16x16x16xf32>, vector<2x16x16x16xf32> -> vector<2x16x16x144xf32>
    %11 = vector.shape_cast %10 : vector<2x16x16x144xf32> to vector<512x144xf32>
    %c0_3 = arith.constant 0 : index
    %c0_4 = arith.constant 0 : index
    %12 = vector.load %arg2[%c0_3, %c0_4] : memref<144x16xf32, #tpu.memory_space<vmem>>, vector<144x16xf32>
    %cst = arith.constant dense<0.000000e+00> : vector<512x16xf32>
    %13 = tpu.matmul %11, %12, %cst {dimension_numbers = #tpu.dot_dimension_numbers<[1], [0], [0], [1], [0, 0, 1, 1], [], []>} : vector<512x144xf32>, vector<144x16xf32>, vector<512x16xf32> -> vector<512x16xf32>
    %cst_5 = arith.constant 0.000000e+00 : f32
    %14 = vector.broadcast %cst_5 : f32 to vector<2x18x18x16xf32>
    %c0_6 = arith.constant 0 : index
    %c0_7 = arith.constant 0 : index
    %c0_8 = arith.constant 0 : index
    %c0_9 = arith.constant 0 : index
    %15 = vector.load %arg5[%c0_6, %c0_7, %c0_8, %c0_9] : memref<2x18x18x16xf32, #tpu.memory_space<vmem>>, vector<2x18x18x16xf32>
    tpu.vector_store %arg5[%c0_6, %c0_7, %c0_8, %c0_9], %14 {strides = array<i32>} : memref<2x18x18x16xf32, #tpu.memory_space<vmem>>, vector<2x18x18x16xf32>,
    %16 = math.tanh %13 : vector<512x16xf32>
    %17 = vector.shape_cast %16 : vector<512x16xf32> to vector<2x16x16x16xf32>
    %c0_10 = arith.constant 0 : index
    %c1 = arith.constant 1 : index
    %c1_11 = arith.constant 1 : index
    %c0_12 = arith.constant 0 : index
    %18 = vector.load %arg5[%c0_10, %c1, %c1_11, %c0_12] : memref<2x18x18x16xf32, #tpu.memory_space<vmem>>, vector<2x16x16x16xf32>
    tpu.vector_store %arg5[%c0_10, %c1, %c1_11, %c0_12], %17 {strides = array<i32>} : memref<2x18x18x16xf32, #tpu.memory_space<vmem>>, vector<2x16x16x16xf32>,
    %c0_13 = arith.constant 0 : index
    %c0_14 = arith.constant 0 : index
    %c0_15 = arith.constant 0 : index
    %c0_16 = arith.constant 0 : index
    %19 = vector.load %arg5[%c0_13, %c0_14, %c0_15, %c0_16] : memref<2x18x18x16xf32, #tpu.memory_space<vmem>>, vector<2x18x18x16xf32>
    %20 = vector.extract_strided_slice %19 {offsets = [0, 0, 0, 0], sizes = [2, 16, 16, 16], strides = [1, 1, 1, 1]} : vector<2x18x18x16xf32> to vector<2x16x16x16xf32>
    %21 = vector.extract_strided_slice %19 {offsets = [0, 0, 1, 0], sizes = [2, 16, 16, 16], strides = [1, 1, 1, 1]} : vector<2x18x18x16xf32> to vector<2x16x16x16xf32>
    %22 = vector.extract_strided_slice %19 {offsets = [0, 0, 2, 0], sizes = [2, 16, 16, 16], strides = [1, 1, 1, 1]} : vector<2x18x18x16xf32> to vector<2x16x16x16xf32>
    %23 = vector.extract_strided_slice %19 {offsets = [0, 1, 0, 0], sizes = [2, 16, 16, 16], strides = [1, 1, 1, 1]} : vector<2x18x18x16xf32> to vector<2x16x16x16xf32>
    %24 = vector.extract_strided_slice %19 {offsets = [0, 1, 1, 0], sizes = [2, 16, 16, 16], strides = [1, 1, 1, 1]} : vector<2x18x18x16xf32> to vector<2x16x16x16xf32>
    %25 = vector.extract_strided_slice %19 {offsets = [0, 1, 2, 0], sizes = [2, 16, 16, 16], strides = [1, 1, 1, 1]} : vector<2x18x18x16xf32> to vector<2x16x16x16xf32>
    %26 = vector.extract_strided_slice %19 {offsets = [0, 2, 0, 0], sizes = [2, 16, 16, 16], strides = [1, 1, 1, 1]} : vector<2x18x18x16xf32> to vector<2x16x16x16xf32>
    %27 = vector.extract_strided_slice %19 {offsets = [0, 2, 1, 0], sizes = [2, 16, 16, 16], strides = [1, 1, 1, 1]} : vector<2x18x18x16xf32> to vector<2x16x16x16xf32>
    %28 = vector.extract_strided_slice %19 {offsets = [0, 2, 2, 0], sizes = [2, 16, 16, 16], strides = [1, 1, 1, 1]} : vector<2x18x18x16xf32> to vector<2x16x16x16xf32>
    %29 = tpu.concatenate %20, %21, %22, %23, %24, %25, %26, %27, %28 in 3 : vector<2x16x16x16xf32>, vector<2x16x16x16xf32>, vector<2x16x16x16xf32>, vector<2x16x16x16xf32>, vector<2x16x16x16xf32>, vector<2x16x16x16xf32>, vector<2x16x16x16xf32>, vector<2x16x16x16xf32>, vector<2x16x16x16xf32> -> vector<2x16x16x144xf32>
    %30 = vector.shape_cast %29 : vector<2x16x16x144xf32> to vector<512x144xf32>
    %c0_17 = arith.constant 0 : index
    %c0_18 = arith.constant 0 : index
    %31 = vector.load %arg3[%c0_17, %c0_18] : memref<144x16xf32, #tpu.memory_space<vmem>>, vector<144x16xf32>
    %cst_19 = arith.constant dense<0.000000e+00> : vector<512x16xf32>
    %32 = tpu.matmul %30, %31, %cst_19 {dimension_numbers = #tpu.dot_dimension_numbers<[1], [0], [0], [1], [0, 0, 1, 1], [], []>} : vector<512x144xf32>, vector<144x16xf32>, vector<512x16xf32> -> vector<512x16xf32>
    %33 = vector.extract_strided_slice %0 {offsets = [0, 1, 1, 0], sizes = [2, 16, 16, 16], strides = [1, 1, 1, 1]} : vector<2x18x18x16xf32> to vector<2x16x16x16xf32>
    %34 = vector.shape_cast %32 : vector<512x16xf32> to vector<2x16x16x16xf32>
    %35 = arith.addf %34, %33 : vector<2x16x16x16xf32>
    %36 = math.tanh %35 : vector<2x16x16x16xf32>
    %c0_20 = arith.constant 0 : index
    %c0_21 = arith.constant 0 : index
    %c0_22 = arith.constant 0 : index
    %c0_23 = arith.constant 0 : index
    %37 = vector.load %arg4[%c0_20, %c0_21, %c0_22, %c0_23] : memref<2x16x16x16xf32, #tpu.memory_space<vmem>>, vector<2x16x16x16xf32>
    tpu.vector_store %arg4[%c0_20, %c0_21, %c0_22, %c0_23], %36 {strides = array<i32>} : memref<2x16x16x16xf32, #tpu.memory_space<vmem>>, vector<2x16x16x16xf32>,
    return
  }
  func.func @transform_0(%arg0: i32) -> (i32, i32, i32, i32) {
    %c0_i32 = arith.constant 0 : i32
    %c0_i32_0 = arith.constant 0 : i32
    %c0_i32_1 = arith.constant 0 : i32
    %c0_i32_2 = arith.constant 0 : i32
    %c0_i32_3 = arith.constant 0 : i32
    return %c0_i32, %c0_i32_0, %c0_i32_1, %c0_i32_2 : i32, i32, i32, i32
  }
  func.func @transform_1(%arg0: i32) -> (i32, i32) {
    %c0_i32 = arith.constant 0 : i32
    %c0_i32_0 = arith.constant 0 : i32
    %c0_i32_1 = arith.constant 0 : i32
    return %c0_i32, %c0_i32_0 : i32, i32
  }
  func.func @transform_2(%arg0: i32) -> (i32, i32) {
    %c0_i32 = arith.constant 0 : i32
    %c0_i32_0 = arith.constant 0 : i32
    %c0_i32_1 = arith.constant 0 : i32
    return %c0_i32, %c0_i32_0 : i32, i32
  }
  func.func @transform_3(%arg0: i32) -> (i32, i32, i32, i32) {
    %c0_i32 = arith.constant 0 : i32
    %c0_i32_0 = arith.constant 0 : i32
    %c0_i32_1 = arith.constant 0 : i32
    %c0_i32_2 = arith.constant 0 : i32
    %c0_i32_3 = arith.constant 0 : i32
    return %c0_i32, %c0_i32_0, %c0_i32_1, %c0_i32_2 : i32, i32, i32, i32
  }
}

</mosaic_0001>

<llo_original>
// kernel: tpu_custom_call.1
$region0: #{tpu_custom_call.1}
  #allocation0 [shape = 'u32[]', space=smem, size = 0x4, offset = 0x4, fixed_abs, tag = 'smem constant byte address 0x4 - core index']
  #allocation1 [shape = 'u32[144,128]{1,0:T(1,128)}', space=vmem, size = 0x12000, scoped, tag = 'internal scratch']
  #allocation2 [shape = 'f32[2,18,18,16]{3,2,1,0:T(8,128)}', space=vmem, size = 0x6c000, scoped, tag = 'scratch operand']
  %s0 = inlined_call_operand.vmem [shape: f32[2,18,18,16], index: 0, kind: input, shape index: {}]
  %s1 = inlined_call_operand.vmem [shape: f32[144,16], index: 1, kind: input, shape index: {}]
  %s2 = inlined_call_operand.vmem [shape: f32[144,16], index: 2, kind: input, shape index: {}]
  %s3 = inlined_call_operand.hbm [shape: f32[2,16,16,16], index: 3, kind: output, shape index: {}]
  %s4 = sld [smem:[#allocation0]]
  $region22: #{tpu_custom_call.1} parent=0
    _
  %s6 = ssub.s32 1, %s4
  %s7 = scalar_select 0, %s6, %s4
  $region1: #{tpu_custom_call.1} parent=0
    #allocation3 [shape = 'u8[262144]{0}', space=vmem, size = 0x40000, scoped, tag = 'output window, operand 0, single buffered']
    #allocation4 [shape = 's32[1]{0}', space=sflag, size = 0x4, scoped, tag = 'scoped memory for tpu_custom_call.1']
    %8 = vsyncpa [#allocation4], 0
    // Predicated region
    $region2: #{tpu_custom_call.1} parent=1 // pred_check
      _
    $region3: #{tpu_custom_call.1} parent=1 // pred_check_branch
      %10 = sbr.rel (0) target = $region5
    $region4: #{tpu_custom_call.1} parent=1 // pred_region
      _
    $region5: #{tpu_custom_call.1} parent=1 // pred_fallthru
      _
    // Predicated region
    $region6: #{tpu_custom_call.1} parent=1 // pred_check
      _
    $region7: #{tpu_custom_call.1} parent=1 // pred_check_branch
      %12 = sbr.rel (0) target = $region9
    $region8: #{tpu_custom_call.1} parent=1 // pred_region
      _
    $region9: #{tpu_custom_call.1} parent=1 // pred_fallthru
      _
    // Predicated region
    $region10: #{tpu_custom_call.1} parent=1 // pred_check
      _
    $region11: #{tpu_custom_call.1} parent=1 // pred_check_branch
      %14 = sbr.rel (0) target = $region13
    $region12: #{tpu_custom_call.1} parent=1 // pred_region
      _
    $region13: #{tpu_custom_call.1} parent=1 // pred_fallthru
      _
    %v15 = vld [vmem:[%s0] sm:$0xff]
    %v16 = vld [vmem:[%s0 + $0x8] sm:$0xff]
    %v17 = vld [vmem:[%s0 + $0x10] sm:$0x3]
    %v18 = vld [vmem:[%s0 + $0x18] sm:$0xff]
    %v19 = vld [vmem:[%s0 + $0x20] sm:$0xff]
    %v20 = vld [vmem:[%s0 + $0x28] sm:$0x3]
    %v21 = vld [vmem:[%s0 + $0x30] sm:$0xff]
    %v22 = vld [vmem:[%s0 + $0x38] sm:$0xff]
    %v23 = vld [vmem:[%s0 + $0x40] sm:$0x3]
    %v24 = vld [vmem:[%s0 + $0x48] sm:$0xff]
    %v25 = vld [vmem:[%s0 + $0x50] sm:$0xff]
    %v26 = vld [vmem:[%s0 + $0x58] sm:$0x3]
    %v27 = vld [vmem:[%s0 + $0x60] sm:$0xff]
    %v28 = vld [vmem:[%s0 + $0x68] sm:$0xff]
    %v29 = vld [vmem:[%s0 + $0x70] sm:$0x3]
    %v30 = vld [vmem:[%s0 + $0x78] sm:$0xff]
    %v31 = vld [vmem:[%s0 + $0x80] sm:$0xff]
    %v32 = vld [vmem:[%s0 + $0x88] sm:$0x3]
    %v33 = vld [vmem:[%s0 + $0x90] sm:$0xff]
    %v34 = vld [vmem:[%s0 + $0x98] sm:$0xff]
    %v35 = vld [vmem:[%s0 + $0xa0] sm:$0x3]
    %v36 = vld [vmem:[%s0 + $0xa8] sm:$0xff]
    %v37 = vld [vmem:[%s0 + $0xb0] sm:$0xff]
    %v38 = vld [vmem:[%s0 + $0xb8] sm:$0x3]
    %v39 = vld [vmem:[%s0 + $0xc0] sm:$0xff]
    %v40 = vld [vmem:[%s0 + $0xc8] sm:$0xff]
    %v41 = vld [vmem:[%s0 + $0xd0] sm:$0x3]
    %v42 = vld [vmem:[%s0 + $0xd8] sm:$0xff]
    %v43 = vld [vmem:[%s0 + $0xe0] sm:$0xff]
    %v44 = vld [vmem:[%s0 + $0xe8] sm:$0x3]
    %v45 = vld [vmem:[%s0 + $0xf0] sm:$0xff]
    %v46 = vld [vmem:[%s0 + $0xf8] sm:$0xff]
    %v47 = vld [vmem:[%s0 + $0x100] sm:$0x3]
    %v48 = vld [vmem:[%s0 + $0x108] sm:$0xff]
    %v49 = vld [vmem:[%s0 + $0x110] sm:$0xff]
    %v50 = vld [vmem:[%s0 + $0x118] sm:$0x3]
    %v51 = vld [vmem:[%s0 + $0x120] sm:$0xff]
    %v52 = vld [vmem:[%s0 + $0x128] sm:$0xff]
    %v53 = vld [vmem:[%s0 + $0x130] sm:$0x3]
    %v54 = vld [vmem:[%s0 + $0x138] sm:$0xff]
    %v55 = vld [vmem:[%s0 + $0x140] sm:$0xff]
    %v56 = vld [vmem:[%s0 + $0x148] sm:$0x3]
    %v57 = vld [vmem:[%s0 + $0x150] sm:$0xff]
    %v58 = vld [vmem:[%s0 + $0x158] sm:$0xff]
    %v59 = vld [vmem:[%s0 + $0x160] sm:$0x3]
    %v60 = vld [vmem:[%s0 + $0x168] sm:$0xff]
    %v61 = vld [vmem:[%s0 + $0x170] sm:$0xff]
    %v62 = vld [vmem:[%s0 + $0x178] sm:$0x3]
    %v63 = vld [vmem:[%s0 + $0x180] sm:$0xff]
    %v64 = vld [vmem:[%s0 + $0x188] sm:$0xff]
    %v65 = vld [vmem:[%s0 + $0x190] sm:$0x3]
    %v66 = vld [vmem:[%s0 + $0x198] sm:$0xff]
    %v67 = vld [vmem:[%s0 + $0x1a0] sm:$0xff]
    %v68 = vld [vmem:[%s0 + $0x1a8] sm:$0x3]
    %v69 = vld [vmem:[%s0 + $0x1b0] sm:$0xff]
    %v70 = vld [vmem:[%s0 + $0x1b8] sm:$0xff]
    %v71 = vld [vmem:[%s0 + $0x1c0] sm:$0x3]
    %v72 = vld [vmem:[%s0 + $0x1c8] sm:$0xff]
    %v73 = vld [vmem:[%s0 + $0x1d0] sm:$0xff]
    %v74 = vld [vmem:[%s0 + $0x1d8] sm:$0x3]
    %v75 = vld [vmem:[%s0 + $0x1e0] sm:$0xff]
    %v76 = vld [vmem:[%s0 + $0x1e8] sm:$0xff]
    %v77 = vld [vmem:[%s0 + $0x1f0] sm:$0x3]
    %v78 = vld [vmem:[%s0 + $0x1f8] sm:$0xff]
    %v79 = vld [vmem:[%s0 + $0x200] sm:$0xff]
    %v80 = vld [vmem:[%s0 + $0x208] sm:$0x3]
    %v81 = vld [vmem:[%s0 + $0x210] sm:$0xff]
    %v82 = vld [vmem:[%s0 + $0x218] sm:$0xff]
    %v83 = vld [vmem:[%s0 + $0x220] sm:$0x3]
    %v84 = vld [vmem:[%s0 + $0x228] sm:$0xff]
    %v85 = vld [vmem:[%s0 + $0x230] sm:$0xff]
    %v86 = vld [vmem:[%s0 + $0x238] sm:$0x3]
    %v87 = vld [vmem:[%s0 + $0x240] sm:$0xff]
    %v88 = vld [vmem:[%s0 + $0x248] sm:$0xff]
    %v89 = vld [vmem:[%s0 + $0x250] sm:$0x3]
    %v90 = vld [vmem:[%s0 + $0x258] sm:$0xff]
    %v91 = vld [vmem:[%s0 + $0x260] sm:$0xff]
    %v92 = vld [vmem:[%s0 + $0x268] sm:$0x3]
    %v93 = vld [vmem:[%s0 + $0x270] sm:$0xff]
    %v94 = vld [vmem:[%s0 + $0x278] sm:$0xff]
    %v95 = vld [vmem:[%s0 + $0x280] sm:$0x3]
    %v96 = vld [vmem:[%s0 + $0x288] sm:$0xff]
    %v97 = vld [vmem:[%s0 + $0x290] sm:$0xff]
    %v98 = vld [vmem:[%s0 + $0x298] sm:$0x3]
    %v99 = vld [vmem:[%s0 + $0x2a0] sm:$0xff]
    %v100 = vld [vmem:[%s0 + $0x2a8] sm:$0xff]
    %v101 = vld [vmem:[%s0 + $0x2b0] sm:$0x3]
    %v102 = vld [vmem:[%s0 + $0x2b8] sm:$0xff]
    %v103 = vld [vmem:[%s0 + $0x2c0] sm:$0xff]
    %v104 = vld [vmem:[%s0 + $0x2c8] sm:$0x3]
    %v105 = vld [vmem:[%s0 + $0x2d0] sm:$0xff]
    %v106 = vld [vmem:[%s0 + $0x2d8] sm:$0xff]
    %v107 = vld [vmem:[%s0 + $0x2e0] sm:$0x3]
    %v108 = vld [vmem:[%s0 + $0x2e8] sm:$0xff]
    %v109 = vld [vmem:[%s0 + $0x2f0] sm:$0xff]
    %v110 = vld [vmem:[%s0 + $0x2f8] sm:$0x3]
    %v111 = vld [vmem:[%s0 + $0x300] sm:$0xff]
    %v112 = vld [vmem:[%s0 + $0x308] sm:$0xff]
    %v113 = vld [vmem:[%s0 + $0x310] sm:$0x3]
    %v114 = vld [vmem:[%s0 + $0x318] sm:$0xff]
    %v115 = vld [vmem:[%s0 + $0x320] sm:$0xff]
    %v116 = vld [vmem:[%s0 + $0x328] sm:$0x3]
    %v117 = vld [vmem:[%s0 + $0x330] sm:$0xff]
    %v118 = vld [vmem:[%s0 + $0x338] sm:$0xff]
    %v119 = vld [vmem:[%s0 + $0x340] sm:$0x3]
    %v120 = vld [vmem:[%s0 + $0x348] sm:$0xff]
    %v121 = vld [vmem:[%s0 + $0x350] sm:$0xff]
    %v122 = vld [vmem:[%s0 + $0x358] sm:$0x3]
    %vm219 = vcmask 1046528
    %v220 = vrot.slane %v15, 1
    %v221 = vrot.slane %v16, 1
    %v222 = vsel %vm219, %v220, %v221
    %v223 = vrot.slane %v17, 1
    %v224 = vsel %vm219, %v221, %v223
    %v225 = vrot.slane %v18, 1
    %v226 = vrot.slane %v19, 1
    %v227 = vsel %vm219, %v225, %v226
    %v228 = vrot.slane %v20, 1
    %v229 = vsel %vm219, %v226, %v228
    %v230 = vrot.slane %v21, 1
    %v231 = vrot.slane %v22, 1
    %v232 = vsel %vm219, %v230, %v231
    %v233 = vrot.slane %v23, 1
    %v234 = vsel %vm219, %v231, %v233
    %v235 = vrot.slane %v24, 1
    %v236 = vrot.slane %v25, 1
    %v237 = vsel %vm219, %v235, %v236
    %v238 = vrot.slane %v26, 1
    %v239 = vsel %vm219, %v236, %v238
    %v240 = vrot.slane %v27, 1
    %v241 = vrot.slane %v28, 1
    %v242 = vsel %vm219, %v240, %v241
    %v243 = vrot.slane %v29, 1
    %v244 = vsel %vm219, %v241, %v243
    %v245 = vrot.slane %v30, 1
    %v246 = vrot.slane %v31, 1
    %v247 = vsel %vm219, %v245, %v246
    %v248 = vrot.slane %v32, 1
    %v249 = vsel %vm219, %v246, %v248
    %v250 = vrot.slane %v33, 1
    %v251 = vrot.slane %v34, 1
    %v252 = vsel %vm219, %v250, %v251
    %v253 = vrot.slane %v35, 1
    %v254 = vsel %vm219, %v251, %v253
    %v255 = vrot.slane %v36, 1
    %v256 = vrot.slane %v37, 1
    %v257 = vsel %vm219, %v255, %v256
    %v258 = vrot.slane %v38, 1
    %v259 = vsel %vm219, %v256, %v258
    %v260 = vrot.slane %v39, 1
    %v261 = vrot.slane %v40, 1
    %v262 = vsel %vm219, %v260, %v261
    %v263 = vrot.slane %v41, 1
    %v264 = vsel %vm219, %v261, %v263
    %v265 = vrot.slane %v42, 1
    %v266 = vrot.slane %v43, 1
    %v267 = vsel %vm219, %v265, %v266
    %v268 = vrot.slane %v44, 1
    %v269 = vsel %vm219, %v266, %v268
    %v270 = vrot.slane %v45, 1
    %v271 = vrot.slane %v46, 1
    %v272 = vsel %vm219, %v270, %v271
    %v273 = vrot.slane %v47, 1
    %v274 = vsel %vm219, %v271, %v273
    %v275 = vrot.slane %v48, 1
    %v276 = vrot.slane %v49, 1
    %v277 = vsel %vm219, %v275, %v276
    %v278 = vrot.slane %v50, 1
    %v279 = vsel %vm219, %v276, %v278
    %v280 = vrot.slane %v51, 1
    %v281 = vrot.slane %v52, 1
    %v282 = vsel %vm219, %v280, %v281
    %v283 = vrot.slane %v53, 1
    %v284 = vsel %vm219, %v281, %v283
    %v285 = vrot.slane %v54, 1
    %v286 = vrot.slane %v55, 1
    %v287 = vsel %vm219, %v285, %v286
    %v288 = vrot.slane %v56, 1
    %v289 = vsel %vm219, %v286, %v288
    %v290 = vrot.slane %v57, 1
    %v291 = vrot.slane %v58, 1
    %v292 = vsel %vm219, %v290, %v291
    %v293 = vrot.slane %v59, 1
    %v294 = vsel %vm219, %v291, %v293
    %v295 = vrot.slane %v60, 1
    %v296 = vrot.slane %v61, 1
    %v297 = vsel %vm219, %v295, %v296
    %v298 = vrot.slane %v62, 1
    %v299 = vsel %vm219, %v296, %v298
    %v300 = vrot.slane %v69, 1
    %v301 = vrot.slane %v70, 1
    %v302 = vsel %vm219, %v300, %v301
    %v303 = vrot.slane %v71, 1
    %v304 = vsel %vm219, %v301, %v303
    %v305 = vrot.slane %v72, 1
    %v306 = vrot.slane %v73, 1
    %v307 = vsel %vm219, %v305, %v306
    %v308 = vrot.slane %v74, 1
    %v309 = vsel %vm219, %v306, %v308
    %v310 = vrot.slane %v75, 1
    %v311 = vrot.slane %v76, 1
    %v312 = vsel %vm219, %v310, %v311
    %v313 = vrot.slane %v77, 1
    %v314 = vsel %vm219, %v311, %v313
    %v315 = vrot.slane %v78, 1
    %v316 = vrot.slane %v79, 1
    %v317 = vsel %vm219, %v315, %v316
    %v318 = vrot.slane %v80, 1
    %v319 = vsel %vm219, %v316, %v318
    %v320 = vrot.slane %v81, 1
    %v321 = vrot.slane %v82, 1
    %v322 = vsel %vm219, %v320, %v321
    %v323 = vrot.slane %v83, 1
    %v324 = vsel %vm219, %v321, %v323
    %v325 = vrot.slane %v84, 1
    %v326 = vrot.slane %v85, 1
    %v327 = vsel %vm219, %v325, %v326
    %v328 = vrot.slane %v86, 1
    %v329 = vsel %vm219, %v326, %v328
    %v330 = vrot.slane %v87, 1
    %v331 = vrot.slane %v88, 1
    %v332 = vsel %vm219, %v330, %v331
    %v333 = vrot.slane %v89, 1
    %v334 = vsel %vm219, %v331, %v333
    %v335 = vrot.slane %v90, 1
    %v336 = vrot.slane %v91, 1
    %v337 = vsel %vm219, %v335, %v336
    %v338 = vrot.slane %v92, 1
    %v339 = vsel %vm219, %v336, %v338
    %v340 = vrot.slane %v93, 1
    %v341 = vrot.slane %v94, 1
    %v342 = vsel %vm219, %v340, %v341
    %v343 = vrot.slane %v95, 1
    %v344 = vsel %vm219, %v341, %v343
    %v345 = vrot.slane %v96, 1
    %v346 = vrot.slane %v97, 1
    %v347 = vsel %vm219, %v345, %v346
    %v348 = vrot.slane %v98, 1
    %v349 = vsel %vm219, %v346, %v348
    %v350 = vrot.slane %v99, 1
    %v351 = vrot.slane %v100, 1
    %v352 = vsel %vm219, %v350, %v351
    %v353 = vrot.slane %v101, 1
    %v354 = vsel %vm219, %v351, %v353
    %v355 = vrot.slane %v102, 1
    %v356 = vrot.slane %v103, 1
    %v357 = vsel %vm219, %v355, %v356
    %v358 = vrot.slane %v104, 1
    %v359 = vsel %vm219, %v356, %v358
    %v360 = vrot.slane %v105, 1
    %v361 = vrot.slane %v106, 1
    %v362 = vsel %vm219, %v360, %v361
    %v363 = vrot.slane %v107, 1
    %v364 = vsel %vm219, %v361, %v363
    %v365 = vrot.slane %v108, 1
    %v366 = vrot.slane %v109, 1
    %v367 = vsel %vm219, %v365, %v366
    %v368 = vrot.slane %v110, 1
    %v369 = vsel %vm219, %v366, %v368
    %v370 = vrot.slane %v111, 1
    %v371 = vrot.slane %v112, 1
    %v372 = vsel %vm219, %v370, %v371
    %v373 = vrot.slane %v113, 1
    %v374 = vsel %vm219, %v371, %v373
    %v375 = vrot.slane %v114, 1
    %v376 = vrot.slane %v115, 1
    %v377 = vsel %vm219, %v375, %v376
    %v378 = vrot.slane %v116, 1
    %v379 = vsel %vm219, %v376, %v378
    %380 = vrot.lane.b32.xlu0 %v222, 16
    %v381 = vpop.permute.xlu0 %380
    %382 = vrot.lane.b32.xlu0 %v224, 16
    %v383 = vpop.permute.xlu0 %382
    %384 = vrot.lane.b32.xlu0 %v227, 16
    %v385 = vpop.permute.xlu0 %384
    %386 = vrot.lane.b32.xlu0 %v229, 16
    %v387 = vpop.permute.xlu0 %386
    %388 = vrot.lane.b32.xlu0 %v232, 16
    %v389 = vpop.permute.xlu0 %388
    %390 = vrot.lane.b32.xlu0 %v234, 16
    %v391 = vpop.permute.xlu0 %390
    %392 = vrot.lane.b32.xlu0 %v237, 16
    %v393 = vpop.permute.xlu0 %392
    %394 = vrot.lane.b32.xlu0 %v239, 16
    %v395 = vpop.permute.xlu0 %394
    %396 = vrot.lane.b32.xlu0 %v242, 16
    %v397 = vpop.permute.xlu0 %396
    %398 = vrot.lane.b32.xlu0 %v244, 16
    %v399 = vpop.permute.xlu0 %398
    %400 = vrot.lane.b32.xlu0 %v247, 16
    %v401 = vpop.permute.xlu0 %400
    %402 = vrot.lane.b32.xlu0 %v249, 16
    %v403 = vpop.permute.xlu0 %402
    %404 = vrot.lane.b32.xlu0 %v252, 16
    %v405 = vpop.permute.xlu0 %404
    %406 = vrot.lane.b32.xlu0 %v254, 16
    %v407 = vpop.permute.xlu0 %406
    %408 = vrot.lane.b32.xlu0 %v257, 16
    %v409 = vpop.permute.xlu0 %408
    %410 = vrot.lane.b32.xlu0 %v259, 16
    %v411 = vpop.permute.xlu0 %410
    %412 = vrot.lane.b32.xlu0 %v262, 16
    %v413 = vpop.permute.xlu0 %412
    %414 = vrot.lane.b32.xlu0 %v264, 16
    %v415 = vpop.permute.xlu0 %414
    %416 = vrot.lane.b32.xlu0 %v267, 16
    %v417 = vpop.permute.xlu0 %416
    %418 = vrot.lane.b32.xlu0 %v269, 16
    %v419 = vpop.permute.xlu0 %418
    %420 = vrot.lane.b32.xlu0 %v272, 16
    %v421 = vpop.permute.xlu0 %420
    %422 = vrot.lane.b32.xlu0 %v274, 16
    %v423 = vpop.permute.xlu0 %422
    %424 = vrot.lane.b32.xlu0 %v277, 16
    %v425 = vpop.permute.xlu0 %424
    %426 = vrot.lane.b32.xlu0 %v279, 16
    %v427 = vpop.permute.xlu0 %426
    %428 = vrot.lane.b32.xlu0 %v282, 16
    %v429 = vpop.permute.xlu0 %428
    %430 = vrot.lane.b32.xlu0 %v284, 16
    %v431 = vpop.permute.xlu0 %430
    %432 = vrot.lane.b32.xlu0 %v287, 16
    %v433 = vpop.permute.xlu0 %432
    %434 = vrot.lane.b32.xlu0 %v289, 16
    %v435 = vpop.permute.xlu0 %434
    %436 = vrot.lane.b32.xlu0 %v292, 16
    %v437 = vpop.permute.xlu0 %436
    %438 = vrot.lane.b32.xlu0 %v294, 16
    %v439 = vpop.permute.xlu0 %438
    %440 = vrot.lane.b32.xlu0 %v297, 16
    %v441 = vpop.permute.xlu0 %440
    %442 = vrot.lane.b32.xlu0 %v299, 16
    %v443 = vpop.permute.xlu0 %442
    %444 = vrot.lane.b32.xlu0 %v302, 16
    %v445 = vpop.permute.xlu0 %444
    %446 = vrot.lane.b32.xlu0 %v304, 16
    %v447 = vpop.permute.xlu0 %446
    %448 = vrot.lane.b32.xlu0 %v307, 16
    %v449 = vpop.permute.xlu0 %448
    %450 = vrot.lane.b32.xlu0 %v309, 16
    %v451 = vpop.permute.xlu0 %450
    %452 = vrot.lane.b32.xlu0 %v312, 16
    %v453 = vpop.permute.xlu0 %452
    %454 = vrot.lane.b32.xlu0 %v314, 16
    %v455 = vpop.permute.xlu0 %454
    %456 = vrot.lane.b32.xlu0 %v317, 16
    %v457 = vpop.permute.xlu0 %456
    %458 = vrot.lane.b32.xlu0 %v319, 16
    %v459 = vpop.permute.xlu0 %458
    %460 = vrot.lane.b32.xlu0 %v322, 16
    %v461 = vpop.permute.xlu0 %460
    %462 = vrot.lane.b32.xlu0 %v324, 16
    %v463 = vpop.permute.xlu0 %462
    %464 = vrot.lane.b32.xlu0 %v327, 16
    %v465 = vpop.permute.xlu0 %464
    %466 = vrot.lane.b32.xlu0 %v329, 16
    %v467 = vpop.permute.xlu0 %466
    %468 = vrot.lane.b32.xlu0 %v332, 16
    %v469 = vpop.permute.xlu0 %468
    %470 = vrot.lane.b32.xlu0 %v334, 16
    %v471 = vpop.permute.xlu0 %470
    %472 = vrot.lane.b32.xlu0 %v337, 16
    %v473 = vpop.permute.xlu0 %472
    %474 = vrot.lane.b32.xlu0 %v339, 16
    %v475 = vpop.permute.xlu0 %474
    %476 = vrot.lane.b32.xlu0 %v342, 16
    %v477 = vpop.permute.xlu0 %476
    %478 = vrot.lane.b32.xlu0 %v344, 16
    %v479 = vpop.permute.xlu0 %478
    %480 = vrot.lane.b32.xlu0 %v347, 16
    %v481 = vpop.permute.xlu0 %480
    %482 = vrot.lane.b32.xlu0 %v349, 16
    %v483 = vpop.permute.xlu0 %482
    %484 = vrot.lane.b32.xlu0 %v352, 16
    %v485 = vpop.permute.xlu0 %484
    %486 = vrot.lane.b32.xlu0 %v354, 16
    %v487 = vpop.permute.xlu0 %486
    %488 = vrot.lane.b32.xlu0 %v357, 16
    %v489 = vpop.permute.xlu0 %488
    %490 = vrot.lane.b32.xlu0 %v359, 16
    %v491 = vpop.permute.xlu0 %490
    %492 = vrot.lane.b32.xlu0 %v362, 16
    %v493 = vpop.permute.xlu0 %492
    %494 = vrot.lane.b32.xlu0 %v364, 16
    %v495 = vpop.permute.xlu0 %494
    %496 = vrot.lane.b32.xlu0 %v367, 16
    %v497 = vpop.permute.xlu0 %496
    %498 = vrot.lane.b32.xlu0 %v369, 16
    %v499 = vpop.permute.xlu0 %498
    %500 = vrot.lane.b32.xlu0 %v372, 16
    %v501 = vpop.permute.xlu0 %500
    %502 = vrot.lane.b32.xlu0 %v374, 16
    %v503 = vpop.permute.xlu0 %502
    %504 = vrot.lane.b32.xlu0 %v377, 16
    %v505 = vpop.permute.xlu0 %504
    %506 = vrot.lane.b32.xlu0 %v379, 16
    %v507 = vpop.permute.xlu0 %506
    %vm572 = vcmask 1045504
    %v573 = vrot.slane %v15, 2
    %v574 = vrot.slane %v16, 2
    %v575 = vsel %vm572, %v573, %v574
    %v576 = vrot.slane %v17, 2
    %v577 = vsel %vm572, %v574, %v576
    %v578 = vrot.slane %v18, 2
    %v579 = vrot.slane %v19, 2
    %v580 = vsel %vm572, %v578, %v579
    %v581 = vrot.slane %v20, 2
    %v582 = vsel %vm572, %v579, %v581
    %v583 = vrot.slane %v21, 2
    %v584 = vrot.slane %v22, 2
    %v585 = vsel %vm572, %v583, %v584
    %v586 = vrot.slane %v23, 2
    %v587 = vsel %vm572, %v584, %v586
    %v588 = vrot.slane %v24, 2
    %v589 = vrot.slane %v25, 2
    %v590 = vsel %vm572, %v588, %v589
    %v591 = vrot.slane %v26, 2
    %v592 = vsel %vm572, %v589, %v591
    %v593 = vrot.slane %v27, 2
    %v594 = vrot.slane %v28, 2
    %v595 = vsel %vm572, %v593, %v594
    %v596 = vrot.slane %v29, 2
    %v597 = vsel %vm572, %v594, %v596
    %v598 = vrot.slane %v30, 2
    %v599 = vrot.slane %v31, 2
    %v600 = vsel %vm572, %v598, %v599
    %v601 = vrot.slane %v32, 2
    %v602 = vsel %vm572, %v599, %v601
    %v603 = vrot.slane %v33, 2
    %v604 = vrot.slane %v34, 2
    %v605 = vsel %vm572, %v603, %v604
    %v606 = vrot.slane %v35, 2
    %v607 = vsel %vm572, %v604, %v606
    %v608 = vrot.slane %v36, 2
    %v609 = vrot.slane %v37, 2
    %v610 = vsel %vm572, %v608, %v609
    %v611 = vrot.slane %v38, 2
    %v612 = vsel %vm572, %v609, %v611
    %v613 = vrot.slane %v39, 2
    %v614 = vrot.slane %v40, 2
    %v615 = vsel %vm572, %v613, %v614
    %v616 = vrot.slane %v41, 2
    %v617 = vsel %vm572, %v614, %v616
    %v618 = vrot.slane %v42, 2
    %v619 = vrot.slane %v43, 2
    %v620 = vsel %vm572, %v618, %v619
    %v621 = vrot.slane %v44, 2
    %v622 = vsel %vm572, %v619, %v621
    %v623 = vrot.slane %v45, 2
    %v624 = vrot.slane %v46, 2
    %v625 = vsel %vm572, %v623, %v624
    %v626 = vrot.slane %v47, 2
    %v627 = vsel %vm572, %v624, %v626
    %v628 = vrot.slane %v48, 2
    %v629 = vrot.slane %v49, 2
    %v630 = vsel %vm572, %v628, %v629
    %v631 = vrot.slane %v50, 2
    %v632 = vsel %vm572, %v629, %v631
    %v633 = vrot.slane %v51, 2
    %v634 = vrot.slane %v52, 2
    %v635 = vsel %vm572, %v633, %v634
    %v636 = vrot.slane %v53, 2
    %v637 = vsel %vm572, %v634, %v636
    %v638 = vrot.slane %v54, 2
    %v639 = vrot.slane %v55, 2
    %v640 = vsel %vm572, %v638, %v639
    %v641 = vrot.slane %v56, 2
    %v642 = vsel %vm572, %v639, %v641
    %v643 = vrot.slane %v57, 2
    %v644 = vrot.slane %v58, 2
    %v645 = vsel %vm572, %v643, %v644
    %v646 = vrot.slane %v59, 2
    %v647 = vsel %vm572, %v644, %v646
    %v648 = vrot.slane %v60, 2
    %v649 = vrot.slane %v61, 2
    %v650 = vsel %vm572, %v648, %v649
    %v651 = vrot.slane %v62, 2
    %v652 = vsel %vm572, %v649, %v651
    %v653 = vrot.slane %v69, 2
    %v654 = vrot.slane %v70, 2
    %v655 = vsel %vm572, %v653, %v654
    %v656 = vrot.slane %v71, 2
    %v657 = vsel %vm572, %v654, %v656
    %v658 = vrot.slane %v72, 2
    %v659 = vrot.slane %v73, 2
    %v660 = vsel %vm572, %v658, %v659
    %v661 = vrot.slane %v74, 2
    %v662 = vsel %vm572, %v659, %v661
    %v663 = vrot.slane %v75, 2
    %v664 = vrot.slane %v76, 2
    %v665 = vsel %vm572, %v663, %v664
    %v666 = vrot.slane %v77, 2
    %v667 = vsel %vm572, %v664, %v666
    %v668 = vrot.slane %v78, 2
    %v669 = vrot.slane %v79, 2
    %v670 = vsel %vm572, %v668, %v669
    %v671 = vrot.slane %v80, 2
    %v672 = vsel %vm572, %v669, %v671
    %v673 = vrot.slane %v81, 2
    %v674 = vrot.slane %v82, 2
    %v675 = vsel %vm572, %v673, %v674
    %v676 = vrot.slane %v83, 2
    %v677 = vsel %vm572, %v674, %v676
    %v678 = vrot.slane %v84, 2
    %v679 = vrot.slane %v85, 2
    %v680 = vsel %vm572, %v678, %v679
    %v681 = vrot.slane %v86, 2
    %v682 = vsel %vm572, %v679, %v681
    %v683 = vrot.slane %v87, 2
    %v684 = vrot.slane %v88, 2
    %v685 = vsel %vm572, %v683, %v684
    %v686 = vrot.slane %v89, 2
    %v687 = vsel %vm572, %v684, %v686
    %v688 = vrot.slane %v90, 2
    %v689 = vrot.slane %v91, 2
    %v690 = vsel %vm572, %v688, %v689
    %v691 = vrot.slane %v92, 2
    %v692 = vsel %vm572, %v689, %v691
    %v693 = vrot.slane %v93, 2
    %v694 = vrot.slane %v94, 2
    %v695 = vsel %vm572, %v693, %v694
    %v696 = vrot.slane %v95, 2
    %v697 = vsel %vm572, %v694, %v696
    %v698 = vrot.slane %v96, 2
    %v699 = vrot.slane %v97, 2
    %v700 = vsel %vm572, %v698, %v699
    %v701 = vrot.slane %v98, 2
    %v702 = vsel %vm572, %v699, %v701
    %v703 = vrot.slane %v99, 2
    %v704 = vrot.slane %v100, 2
    %v705 = vsel %vm572, %v703, %v704
    %v706 = vrot.slane %v101, 2
    %v707 = vsel %vm572, %v704, %v706
    %v708 = vrot.slane %v102, 2
    %v709 = vrot.slane %v103, 2
    %v710 = vsel %vm572, %v708, %v709
    %v711 = vrot.slane %v104, 2
    %v712 = vsel %vm572, %v709, %v711
    %v713 = vrot.slane %v105, 2
    %v714 = vrot.slane %v106, 2
    %v715 = vsel %vm572, %v713, %v714
    %v716 = vrot.slane %v107, 2
    %v717 = vsel %vm572, %v714, %v716
    %v718 = vrot.slane %v108, 2
    %v719 = vrot.slane %v109, 2
    %v720 = vsel %vm572, %v718, %v719
    %v721 = vrot.slane %v110, 2
    %v722 = vsel %vm572, %v719, %v721
    %v723 = vrot.slane %v111, 2
    %v724 = vrot.slane %v112, 2
    %v725 = vsel %vm572, %v723, %v724
    %v726 = vrot.slane %v113, 2
    %v727 = vsel %vm572, %v724, %v726
    %v728 = vrot.slane %v114, 2
    %v729 = vrot.slane %v115, 2
    %v730 = vsel %vm572, %v728, %v729
    %v731 = vrot.slane %v116, 2
    %v732 = vsel %vm572, %v729, %v731
    %733 = vrot.lane.b32.xlu0 %v575, 32
    %v734 = vpop.permute.xlu0 %733
    %735 = vrot.lane.b32.xlu0 %v577, 32
    %v736 = vpop.permute.xlu0 %735
    %737 = vrot.lane.b32.xlu0 %v580, 32
    %v738 = vpop.permute.xlu0 %737
    %739 = vrot.lane.b32.xlu0 %v582, 32
    %v740 = vpop.permute.xlu0 %739
    %741 = vrot.lane.b32.xlu0 %v585, 32
    %v742 = vpop.permute.xlu0 %741
    %743 = vrot.lane.b32.xlu0 %v587, 32
    %v744 = vpop.permute.xlu0 %743
    %745 = vrot.lane.b32.xlu0 %v590, 32
    %v746 = vpop.permute.xlu0 %745
    %747 = vrot.lane.b32.xlu0 %v592, 32
    %v748 = vpop.permute.xlu0 %747
    %749 = vrot.lane.b32.xlu0 %v595, 32
    %v750 = vpop.permute.xlu0 %749
    %751 = vrot.lane.b32.xlu0 %v597, 32
    %v752 = vpop.permute.xlu0 %751
    %753 = vrot.lane.b32.xlu0 %v600, 32
    %v754 = vpop.permute.xlu0 %753
    %755 = vrot.lane.b32.xlu0 %v602, 32
    %v756 = vpop.permute.xlu0 %755
    %757 = vrot.lane.b32.xlu0 %v605, 32
    %v758 = vpop.permute.xlu0 %757
    %759 = vrot.lane.b32.xlu0 %v607, 32
    %v760 = vpop.permute.xlu0 %759
    %761 = vrot.lane.b32.xlu0 %v610, 32
    %v762 = vpop.permute.xlu0 %761
    %763 = vrot.lane.b32.xlu0 %v612, 32
    %v764 = vpop.permute.xlu0 %763
    %765 = vrot.lane.b32.xlu0 %v615, 32
    %v766 = vpop.permute.xlu0 %765
    %767 = vrot.lane.b32.xlu0 %v617, 32
    %v768 = vpop.permute.xlu0 %767
    %769 = vrot.lane.b32.xlu0 %v620, 32
    %v770 = vpop.permute.xlu0 %769
    %771 = vrot.lane.b32.xlu0 %v622, 32
    %v772 = vpop.permute.xlu0 %771
    %773 = vrot.lane.b32.xlu0 %v625, 32
    %v774 = vpop.permute.xlu0 %773
    %775 = vrot.lane.b32.xlu0 %v627, 32
    %v776 = vpop.permute.xlu0 %775
    %777 = vrot.lane.b32.xlu0 %v630, 32
    %v778 = vpop.permute.xlu0 %777
    %779 = vrot.lane.b32.xlu0 %v632, 32
    %v780 = vpop.permute.xlu0 %779
    %781 = vrot.lane.b32.xlu0 %v635, 32
    %v782 = vpop.permute.xlu0 %781
    %783 = vrot.lane.b32.xlu0 %v637, 32
    %v784 = vpop.permute.xlu0 %783
    %785 = vrot.lane.b32.xlu0 %v640, 32
    %v786 = vpop.permute.xlu0 %785
    %787 = vrot.lane.b32.xlu0 %v642, 32
    %v788 = vpop.permute.xlu0 %787
    %789 = vrot.lane.b32.xlu0 %v645, 32
    %v790 = vpop.permute.xlu0 %789
    %791 = vrot.lane.b32.xlu0 %v647, 32
    %v792 = vpop.permute.xlu0 %791
    %793 = vrot.lane.b32.xlu0 %v650, 32
    %v794 = vpop.permute.xlu0 %793
    %795 = vrot.lane.b32.xlu0 %v652, 32
    %v796 = vpop.permute.xlu0 %795
    %797 = vrot.lane.b32.xlu0 %v655, 32
    %v798 = vpop.permute.xlu0 %797
    %799 = vrot.lane.b32.xlu0 %v657, 32
    %v800 = vpop.permute.xlu0 %799
    %801 = vrot.lane.b32.xlu0 %v660, 32
    %v802 = vpop.permute.xlu0 %801
    %803 = vrot.lane.b32.xlu0 %v662, 32
    %v804 = vpop.permute.xlu0 %803
    %805 = vrot.lane.b32.xlu0 %v665, 32
    %v806 = vpop.permute.xlu0 %805
    %807 = vrot.lane.b32.xlu0 %v667, 32
    %v808 = vpop.permute.xlu0 %807
    %809 = vrot.lane.b32.xlu0 %v670, 32
    %v810 = vpop.permute.xlu0 %809
    %811 = vrot.lane.b32.xlu0 %v672, 32
    %v812 = vpop.permute.xlu0 %811
    %813 = vrot.lane.b32.xlu0 %v675, 32
    %v814 = vpop.permute.xlu0 %813
    %815 = vrot.lane.b32.xlu0 %v677, 32
    %v816 = vpop.permute.xlu0 %815
    %817 = vrot.lane.b32.xlu0 %v680, 32
    %v818 = vpop.permute.xlu0 %817
    %819 = vrot.lane.b32.xlu0 %v682, 32
    %v820 = vpop.permute.xlu0 %819
    %821 = vrot.lane.b32.xlu0 %v685, 32
    %v822 = vpop.permute.xlu0 %821
    %823 = vrot.lane.b32.xlu0 %v687, 32
    %v824 = vpop.permute.xlu0 %823
    %825 = vrot.lane.b32.xlu0 %v690, 32
    %v826 = vpop.permute.xlu0 %825
    %827 = vrot.lane.b32.xlu0 %v692, 32
    %v828 = vpop.permute.xlu0 %827
    %829 = vrot.lane.b32.xlu0 %v695, 32
    %v830 = vpop.permute.xlu0 %829
    %831 = vrot.lane.b32.xlu0 %v697, 32
    %v832 = vpop.permute.xlu0 %831
    %833 = vrot.lane.b32.xlu0 %v700, 32
    %v834 = vpop.permute.xlu0 %833
    %835 = vrot.lane.b32.xlu0 %v702, 32
    %v836 = vpop.permute.xlu0 %835
    %837 = vrot.lane.b32.xlu0 %v705, 32
    %v838 = vpop.permute.xlu0 %837
    %839 = vrot.lane.b32.xlu0 %v707, 32
    %v840 = vpop.permute.xlu0 %839
    %841 = vrot.lane.b32.xlu0 %v710, 32
    %v842 = vpop.permute.xlu0 %841
    %843 = vrot.lane.b32.xlu0 %v712, 32
    %v844 = vpop.permute.xlu0 %843
    %845 = vrot.lane.b32.xlu0 %v715, 32
    %v846 = vpop.permute.xlu0 %845
    %847 = vrot.lane.b32.xlu0 %v717, 32
    %v848 = vpop.permute.xlu0 %847
    %849 = vrot.lane.b32.xlu0 %v720, 32
    %v850 = vpop.permute.xlu0 %849
    %851 = vrot.lane.b32.xlu0 %v722, 32
    %v852 = vpop.permute.xlu0 %851
    %853 = vrot.lane.b32.xlu0 %v725, 32
    %v854 = vpop.permute.xlu0 %853
    %855 = vrot.lane.b32.xlu0 %v727, 32
    %v856 = vpop.permute.xlu0 %855
    %857 = vrot.lane.b32.xlu0 %v730, 32
    %v858 = vpop.permute.xlu0 %857
    %859 = vrot.lane.b32.xlu0 %v732, 32
    %v860 = vpop.permute.xlu0 %859
    %929 = vrot.lane.b32.xlu0 %v18, 48
    %v930 = vpop.permute.xlu0 %929
    %931 = vrot.lane.b32.xlu0 %v19, 48
    %v932 = vpop.permute.xlu0 %931
    %933 = vrot.lane.b32.xlu0 %v21, 48
    %v934 = vpop.permute.xlu0 %933
    %935 = vrot.lane.b32.xlu0 %v22, 48
    %v936 = vpop.permute.xlu0 %935
    %937 = vrot.lane.b32.xlu0 %v24, 48
    %v938 = vpop.permute.xlu0 %937
    %939 = vrot.lane.b32.xlu0 %v25, 48
    %v940 = vpop.permute.xlu0 %939
    %941 = vrot.lane.b32.xlu0 %v27, 48
    %v942 = vpop.permute.xlu0 %941
    %943 = vrot.lane.b32.xlu0 %v28, 48
    %v944 = vpop.permute.xlu0 %943
    %945 = vrot.lane.b32.xlu0 %v30, 48
    %v946 = vpop.permute.xlu0 %945
    %947 = vrot.lane.b32.xlu0 %v31, 48
    %v948 = vpop.permute.xlu0 %947
    %949 = vrot.lane.b32.xlu0 %v33, 48
    %v950 = vpop.permute.xlu0 %949
    %951 = vrot.lane.b32.xlu0 %v34, 48
    %v952 = vpop.permute.xlu0 %951
    %953 = vrot.lane.b32.xlu0 %v36, 48
    %v954 = vpop.permute.xlu0 %953
    %955 = vrot.lane.b32.xlu0 %v37, 48
    %v956 = vpop.permute.xlu0 %955
    %957 = vrot.lane.b32.xlu0 %v39, 48
    %v958 = vpop.permute.xlu0 %957
    %959 = vrot.lane.b32.xlu0 %v40, 48
    %v960 = vpop.permute.xlu0 %959
    %961 = vrot.lane.b32.xlu0 %v42, 48
    %v962 = vpop.permute.xlu0 %961
    %963 = vrot.lane.b32.xlu0 %v43, 48
    %v964 = vpop.permute.xlu0 %963
    %965 = vrot.lane.b32.xlu0 %v45, 48
    %v966 = vpop.permute.xlu0 %965
    %967 = vrot.lane.b32.xlu0 %v46, 48
    %v968 = vpop.permute.xlu0 %967
    %969 = vrot.lane.b32.xlu0 %v48, 48
    %v970 = vpop.permute.xlu0 %969
    %971 = vrot.lane.b32.xlu0 %v49, 48
    %v972 = vpop.permute.xlu0 %971
    %973 = vrot.lane.b32.xlu0 %v51, 48
    %v974 = vpop.permute.xlu0 %973
    %975 = vrot.lane.b32.xlu0 %v52, 48
    %v976 = vpop.permute.xlu0 %975
    %977 = vrot.lane.b32.xlu0 %v54, 48
    %v978 = vpop.permute.xlu0 %977
    %979 = vrot.lane.b32.xlu0 %v55, 48
    %v980 = vpop.permute.xlu0 %979
    %981 = vrot.lane.b32.xlu0 %v57, 48
    %v982 = vpop.permute.xlu0 %981
    %983 = vrot.lane.b32.xlu0 %v58, 48
    %v984 = vpop.permute.xlu0 %983
    %985 = vrot.lane.b32.xlu0 %v60, 48
    %v986 = vpop.permute.xlu0 %985
    %987 = vrot.lane.b32.xlu0 %v61, 48
    %v988 = vpop.permute.xlu0 %987
    %989 = vrot.lane.b32.xlu0 %v63, 48
    %v990 = vpop.permute.xlu0 %989
    %991 = vrot.lane.b32.xlu0 %v64, 48
    %v992 = vpop.permute.xlu0 %991
    %993 = vrot.lane.b32.xlu0 %v72, 48
    %v994 = vpop.permute.xlu0 %993
    %995 = vrot.lane.b32.xlu0 %v73, 48
    %v996 = vpop.permute.xlu0 %995
    %997 = vrot.lane.b32.xlu0 %v75, 48
    %v998 = vpop.permute.xlu0 %997
    %999 = vrot.lane.b32.xlu0 %v76, 48
    %v1000 = vpop.permute.xlu0 %999
    %1001 = vrot.lane.b32.xlu0 %v78, 48
    %v1002 = vpop.permute.xlu0 %1001
    %1003 = vrot.lane.b32.xlu0 %v79, 48
    %v1004 = vpop.permute.xlu0 %1003
    %1005 = vrot.lane.b32.xlu0 %v81, 48
    %v1006 = vpop.permute.xlu0 %1005
    %1007 = vrot.lane.b32.xlu0 %v82, 48
    %v1008 = vpop.permute.xlu0 %1007
    %1009 = vrot.lane.b32.xlu0 %v84, 48
    %v1010 = vpop.permute.xlu0 %1009
    %1011 = vrot.lane.b32.xlu0 %v85, 48
    %v1012 = vpop.permute.xlu0 %1011
    %1013 = vrot.lane.b32.xlu0 %v87, 48
    %v1014 = vpop.permute.xlu0 %1013
    %1015 = vrot.lane.b32.xlu0 %v88, 48
    %v1016 = vpop.permute.xlu0 %1015
    %1017 = vrot.lane.b32.xlu0 %v90, 48
    %v1018 = vpop.permute.xlu0 %1017
    %1019 = vrot.lane.b32.xlu0 %v91, 48
    %v1020 = vpop.permute.xlu0 %1019
    %1021 = vrot.lane.b32.xlu0 %v93, 48
    %v1022 = vpop.permute.xlu0 %1021
    %1023 = vrot.lane.b32.xlu0 %v94, 48
    %v1024 = vpop.permute.xlu0 %1023
    %1025 = vrot.lane.b32.xlu0 %v96, 48
    %v1026 = vpop.permute.xlu0 %1025
    %1027 = vrot.lane.b32.xlu0 %v97, 48
    %v1028 = vpop.permute.xlu0 %1027
    %1029 = vrot.lane.b32.xlu0 %v99, 48
    %v1030 = vpop.permute.xlu0 %1029
    %1031 = vrot.lane.b32.xlu0 %v100, 48
    %v1032 = vpop.permute.xlu0 %1031
    %1033 = vrot.lane.b32.xlu0 %v102, 48
    %v1034 = vpop.permute.xlu0 %1033
    %1035 = vrot.lane.b32.xlu0 %v103, 48
    %v1036 = vpop.permute.xlu0 %1035
    %1037 = vrot.lane.b32.xlu0 %v105, 48
    %v1038 = vpop.permute.xlu0 %1037
    %1039 = vrot.lane.b32.xlu0 %v106, 48
    %v1040 = vpop.permute.xlu0 %1039
    %1041 = vrot.lane.b32.xlu0 %v108, 48
    %v1042 = vpop.permute.xlu0 %1041
    %1043 = vrot.lane.b32.xlu0 %v109, 48
    %v1044 = vpop.permute.xlu0 %1043
    %1045 = vrot.lane.b32.xlu0 %v111, 48
    %v1046 = vpop.permute.xlu0 %1045
    %1047 = vrot.lane.b32.xlu0 %v112, 48
    %v1048 = vpop.permute.xlu0 %1047
    %1049 = vrot.lane.b32.xlu0 %v114, 48
    %v1050 = vpop.permute.xlu0 %1049
    %1051 = vrot.lane.b32.xlu0 %v115, 48
    %v1052 = vpop.permute.xlu0 %1051
    %1053 = vrot.lane.b32.xlu0 %v117, 48
    %v1054 = vpop.permute.xlu0 %1053
    %1055 = vrot.lane.b32.xlu0 %v118, 48
    %v1056 = vpop.permute.xlu0 %1055
    %v1123 = vrot.slane %v63, 1
    %v1124 = vrot.slane %v64, 1
    %v1125 = vsel %vm219, %v1123, %v1124
    %v1126 = vrot.slane %v65, 1
    %v1127 = vsel %vm219, %v1124, %v1126
    %v1128 = vrot.slane %v117, 1
    %v1129 = vrot.slane %v118, 1
    %v1130 = vsel %vm219, %v1128, %v1129
    %v1131 = vrot.slane %v119, 1
    %v1132 = vsel %vm219, %v1129, %v1131
    %1133 = vrot.lane.b32.xlu0 %v227, 64
    %v1134 = vpop.permute.xlu0 %1133
    %1135 = vrot.lane.b32.xlu0 %v229, 64
    %v1136 = vpop.permute.xlu0 %1135
    %1137 = vrot.lane.b32.xlu0 %v232, 64
    %v1138 = vpop.permute.xlu0 %1137
    %1139 = vrot.lane.b32.xlu0 %v234, 64
    %v1140 = vpop.permute.xlu0 %1139
    %1141 = vrot.lane.b32.xlu0 %v237, 64
    %v1142 = vpop.permute.xlu0 %1141
    %1143 = vrot.lane.b32.xlu0 %v239, 64
    %v1144 = vpop.permute.xlu0 %1143
    %1145 = vrot.lane.b32.xlu0 %v242, 64
    %v1146 = vpop.permute.xlu0 %1145
    %1147 = vrot.lane.b32.xlu0 %v244, 64
    %v1148 = vpop.permute.xlu0 %1147
    %1149 = vrot.lane.b32.xlu0 %v247, 64
    %v1150 = vpop.permute.xlu0 %1149
    %1151 = vrot.lane.b32.xlu0 %v249, 64
    %v1152 = vpop.permute.xlu0 %1151
    %1153 = vrot.lane.b32.xlu0 %v252, 64
    %v1154 = vpop.permute.xlu0 %1153
    %1155 = vrot.lane.b32.xlu0 %v254, 64
    %v1156 = vpop.permute.xlu0 %1155
    %1157 = vrot.lane.b32.xlu0 %v257, 64
    %v1158 = vpop.permute.xlu0 %1157
    %1159 = vrot.lane.b32.xlu0 %v259, 64
    %v1160 = vpop.permute.xlu0 %1159
    %1161 = vrot.lane.b32.xlu0 %v262, 64
    %v1162 = vpop.permute.xlu0 %1161
    %1163 = vrot.lane.b32.xlu0 %v264, 64
    %v1164 = vpop.permute.xlu0 %1163
    %1165 = vrot.lane.b32.xlu0 %v267, 64
    %v1166 = vpop.permute.xlu0 %1165
    %1167 = vrot.lane.b32.xlu0 %v269, 64
    %v1168 = vpop.permute.xlu0 %1167
    %1169 = vrot.lane.b32.xlu0 %v272, 64
    %v1170 = vpop.permute.xlu0 %1169
    %1171 = vrot.lane.b32.xlu0 %v274, 64
    %v1172 = vpop.permute.xlu0 %1171
    %1173 = vrot.lane.b32.xlu0 %v277, 64
    %v1174 = vpop.permute.xlu0 %1173
    %1175 = vrot.lane.b32.xlu0 %v279, 64
    %v1176 = vpop.permute.xlu0 %1175
    %1177 = vrot.lane.b32.xlu0 %v282, 64
    %v1178 = vpop.permute.xlu0 %1177
    %1179 = vrot.lane.b32.xlu0 %v284, 64
    %v1180 = vpop.permute.xlu0 %1179
    %1181 = vrot.lane.b32.xlu0 %v287, 64
    %v1182 = vpop.permute.xlu0 %1181
    %1183 = vrot.lane.b32.xlu0 %v289, 64
    %v1184 = vpop.permute.xlu0 %1183
    %1185 = vrot.lane.b32.xlu0 %v292, 64
    %v1186 = vpop.permute.xlu0 %1185
    %1187 = vrot.lane.b32.xlu0 %v294, 64
    %v1188 = vpop.permute.xlu0 %1187
    %1189 = vrot.lane.b32.xlu0 %v297, 64
    %v1190 = vpop.permute.xlu0 %1189
    %1191 = vrot.lane.b32.xlu0 %v299, 64
    %v1192 = vpop.permute.xlu0 %1191
    %1193 = vrot.lane.b32.xlu0 %v1125, 64
    %v1194 = vpop.permute.xlu0 %1193
    %1195 = vrot.lane.b32.xlu0 %v1127, 64
    %v1196 = vpop.permute.xlu0 %1195
    %1197 = vrot.lane.b32.xlu0 %v307, 64
    %v1198 = vpop.permute.xlu0 %1197
    %1199 = vrot.lane.b32.xlu0 %v309, 64
    %v1200 = vpop.permute.xlu0 %1199
    %1201 = vrot.lane.b32.xlu0 %v312, 64
    %v1202 = vpop.permute.xlu0 %1201
    %1203 = vrot.lane.b32.xlu0 %v314, 64
    %v1204 = vpop.permute.xlu0 %1203
    %1205 = vrot.lane.b32.xlu0 %v317, 64
    %v1206 = vpop.permute.xlu0 %1205
    %1207 = vrot.lane.b32.xlu0 %v319, 64
    %v1208 = vpop.permute.xlu0 %1207
    %1209 = vrot.lane.b32.xlu0 %v322, 64
    %v1210 = vpop.permute.xlu0 %1209
    %1211 = vrot.lane.b32.xlu0 %v324, 64
    %v1212 = vpop.permute.xlu0 %1211
    %1213 = vrot.lane.b32.xlu0 %v327, 64
    %v1214 = vpop.permute.xlu0 %1213
    %1215 = vrot.lane.b32.xlu0 %v329, 64
    %v1216 = vpop.permute.xlu0 %1215
    %1217 = vrot.lane.b32.xlu0 %v332, 64
    %v1218 = vpop.permute.xlu0 %1217
    %1219 = vrot.lane.b32.xlu0 %v334, 64
    %v1220 = vpop.permute.xlu0 %1219
    %1221 = vrot.lane.b32.xlu0 %v337, 64
    %v1222 = vpop.permute.xlu0 %1221
    %1223 = vrot.lane.b32.xlu0 %v339, 64
    %v1224 = vpop.permute.xlu0 %1223
    %1225 = vrot.lane.b32.xlu0 %v342, 64
    %v1226 = vpop.permute.xlu0 %1225
    %1227 = vrot.lane.b32.xlu0 %v344, 64
    %v1228 = vpop.permute.xlu0 %1227
    %1229 = vrot.lane.b32.xlu0 %v347, 64
    %v1230 = vpop.permute.xlu0 %1229
    %1231 = vrot.lane.b32.xlu0 %v349, 64
    %v1232 = vpop.permute.xlu0 %1231
    %1233 = vrot.lane.b32.xlu0 %v352, 64
    %v1234 = vpop.permute.xlu0 %1233
    %1235 = vrot.lane.b32.xlu0 %v354, 64
    %v1236 = vpop.permute.xlu0 %1235
    %1237 = vrot.lane.b32.xlu0 %v357, 64
    %v1238 = vpop.permute.xlu0 %1237
    %1239 = vrot.lane.b32.xlu0 %v359, 64
    %v1240 = vpop.permute.xlu0 %1239
    %1241 = vrot.lane.b32.xlu0 %v362, 64
    %v1242 = vpop.permute.xlu0 %1241
    %1243 = vrot.lane.b32.xlu0 %v364, 64
    %v1244 = vpop.permute.xlu0 %1243
    %1245 = vrot.lane.b32.xlu0 %v367, 64
    %v1246 = vpop.permute.xlu0 %1245
    %1247 = vrot.lane.b32.xlu0 %v369, 64
    %v1248 = vpop.permute.xlu0 %1247
    %1249 = vrot.lane.b32.xlu0 %v372, 64
    %v1250 = vpop.permute.xlu0 %1249
    %1251 = vrot.lane.b32.xlu0 %v374, 64
    %v1252 = vpop.permute.xlu0 %1251
    %1253 = vrot.lane.b32.xlu0 %v377, 64
    %v1254 = vpop.permute.xlu0 %1253
    %1255 = vrot.lane.b32.xlu0 %v379, 64
    %v1256 = vpop.permute.xlu0 %1255
    %1257 = vrot.lane.b32.xlu0 %v1130, 64
    %v1258 = vpop.permute.xlu0 %1257
    %1259 = vrot.lane.b32.xlu0 %v1132, 64
    %v1260 = vpop.permute.xlu0 %1259
    %v1325 = vrot.slane %v63, 2
    %v1326 = vrot.slane %v64, 2
    %v1327 = vsel %vm572, %v1325, %v1326
    %v1328 = vrot.slane %v65, 2
    %v1329 = vsel %vm572, %v1326, %v1328
    %v1330 = vrot.slane %v117, 2
    %v1331 = vrot.slane %v118, 2
    %v1332 = vsel %vm572, %v1330, %v1331
    %v1333 = vrot.slane %v119, 2
    %v1334 = vsel %vm572, %v1331, %v1333
    %1335 = vrot.lane.b32.xlu0 %v580, 80
    %v1336 = vpop.permute.xlu0 %1335
    %1337 = vrot.lane.b32.xlu0 %v582, 80
    %v1338 = vpop.permute.xlu0 %1337
    %1339 = vrot.lane.b32.xlu0 %v585, 80
    %v1340 = vpop.permute.xlu0 %1339
    %1341 = vrot.lane.b32.xlu0 %v587, 80
    %v1342 = vpop.permute.xlu0 %1341
    %1343 = vrot.lane.b32.xlu0 %v590, 80
    %v1344 = vpop.permute.xlu0 %1343
    %1345 = vrot.lane.b32.xlu0 %v592, 80
    %v1346 = vpop.permute.xlu0 %1345
    %1347 = vrot.lane.b32.xlu0 %v595, 80
    %v1348 = vpop.permute.xlu0 %1347
    %1349 = vrot.lane.b32.xlu0 %v597, 80
    %v1350 = vpop.permute.xlu0 %1349
    %1351 = vrot.lane.b32.xlu0 %v600, 80
    %v1352 = vpop.permute.xlu0 %1351
    %1353 = vrot.lane.b32.xlu0 %v602, 80
    %v1354 = vpop.permute.xlu0 %1353
    %1355 = vrot.lane.b32.xlu0 %v605, 80
    %v1356 = vpop.permute.xlu0 %1355
    %1357 = vrot.lane.b32.xlu0 %v607, 80
    %v1358 = vpop.permute.xlu0 %1357
    %1359 = vrot.lane.b32.xlu0 %v610, 80
    %v1360 = vpop.permute.xlu0 %1359
    %1361 = vrot.lane.b32.xlu0 %v612, 80
    %v1362 = vpop.permute.xlu0 %1361
    %1363 = vrot.lane.b32.xlu0 %v615, 80
    %v1364 = vpop.permute.xlu0 %1363
    %1365 = vrot.lane.b32.xlu0 %v617, 80
    %v1366 = vpop.permute.xlu0 %1365
    %1367 = vrot.lane.b32.xlu0 %v620, 80
    %v1368 = vpop.permute.xlu0 %1367
    %1369 = vrot.lane.b32.xlu0 %v622, 80
    %v1370 = vpop.permute.xlu0 %1369
    %1371 = vrot.lane.b32.xlu0 %v625, 80
    %v1372 = vpop.permute.xlu0 %1371
    %1373 = vrot.lane.b32.xlu0 %v627, 80
    %v1374 = vpop.permute.xlu0 %1373
    %1375 = vrot.lane.b32.xlu0 %v630, 80
    %v1376 = vpop.permute.xlu0 %1375
    %1377 = vrot.lane.b32.xlu0 %v632, 80
    %v1378 = vpop.permute.xlu0 %1377
    %1379 = vrot.lane.b32.xlu0 %v635, 80
    %v1380 = vpop.permute.xlu0 %1379
    %1381 = vrot.lane.b32.xlu0 %v637, 80
    %v1382 = vpop.permute.xlu0 %1381
    %1383 = vrot.lane.b32.xlu0 %v640, 80
    %v1384 = vpop.permute.xlu0 %1383
    %1385 = vrot.lane.b32.xlu0 %v642, 80
    %v1386 = vpop.permute.xlu0 %1385
    %1387 = vrot.lane.b32.xlu0 %v645, 80
    %v1388 = vpop.permute.xlu0 %1387
    %1389 = vrot.lane.b32.xlu0 %v647, 80
    %v1390 = vpop.permute.xlu0 %1389
    %1391 = vrot.lane.b32.xlu0 %v650, 80
    %v1392 = vpop.permute.xlu0 %1391
    %1393 = vrot.lane.b32.xlu0 %v652, 80
    %v1394 = vpop.permute.xlu0 %1393
    %1395 = vrot.lane.b32.xlu0 %v1327, 80
    %v1396 = vpop.permute.xlu0 %1395
    %1397 = vrot.lane.b32.xlu0 %v1329, 80
    %v1398 = vpop.permute.xlu0 %1397
    %1399 = vrot.lane.b32.xlu0 %v660, 80
    %v1400 = vpop.permute.xlu0 %1399
    %1401 = vrot.lane.b32.xlu0 %v662, 80
    %v1402 = vpop.permute.xlu0 %1401
    %1403 = vrot.lane.b32.xlu0 %v665, 80
    %v1404 = vpop.permute.xlu0 %1403
    %1405 = vrot.lane.b32.xlu0 %v667, 80
    %v1406 = vpop.permute.xlu0 %1405
    %1407 = vrot.lane.b32.xlu0 %v670, 80
    %v1408 = vpop.permute.xlu0 %1407
    %1409 = vrot.lane.b32.xlu0 %v672, 80
    %v1410 = vpop.permute.xlu0 %1409
    %1411 = vrot.lane.b32.xlu0 %v675, 80
    %v1412 = vpop.permute.xlu0 %1411
    %1413 = vrot.lane.b32.xlu0 %v677, 80
    %v1414 = vpop.permute.xlu0 %1413
    %1415 = vrot.lane.b32.xlu0 %v680, 80
    %v1416 = vpop.permute.xlu0 %1415
    %1417 = vrot.lane.b32.xlu0 %v682, 80
    %v1418 = vpop.permute.xlu0 %1417
    %1419 = vrot.lane.b32.xlu0 %v685, 80
    %v1420 = vpop.permute.xlu0 %1419
    %1421 = vrot.lane.b32.xlu0 %v687, 80
    %v1422 = vpop.permute.xlu0 %1421
    %1423 = vrot.lane.b32.xlu0 %v690, 80
    %v1424 = vpop.permute.xlu0 %1423
    %1425 = vrot.lane.b32.xlu0 %v692, 80
    %v1426 = vpop.permute.xlu0 %1425
    %1427 = vrot.lane.b32.xlu0 %v695, 80
    %v1428 = vpop.permute.xlu0 %1427
    %1429 = vrot.lane.b32.xlu0 %v697, 80
    %v1430 = vpop.permute.xlu0 %1429
    %1431 = vrot.lane.b32.xlu0 %v700, 80
    %v1432 = vpop.permute.xlu0 %1431
    %1433 = vrot.lane.b32.xlu0 %v702, 80
    %v1434 = vpop.permute.xlu0 %1433
    %1435 = vrot.lane.b32.xlu0 %v705, 80
    %v1436 = vpop.permute.xlu0 %1435
    %1437 = vrot.lane.b32.xlu0 %v707, 80
    %v1438 = vpop.permute.xlu0 %1437
    %1439 = vrot.lane.b32.xlu0 %v710, 80
    %v1440 = vpop.permute.xlu0 %1439
    %1441 = vrot.lane.b32.xlu0 %v712, 80
    %v1442 = vpop.permute.xlu0 %1441
    %1443 = vrot.lane.b32.xlu0 %v715, 80
    %v1444 = vpop.permute.xlu0 %1443
    %1445 = vrot.lane.b32.xlu0 %v717, 80
    %v1446 = vpop.permute.xlu0 %1445
    %1447 = vrot.lane.b32.xlu0 %v720, 80
    %v1448 = vpop.permute.xlu0 %1447
    %1449 = vrot.lane.b32.xlu0 %v722, 80
    %v1450 = vpop.permute.xlu0 %1449
    %1451 = vrot.lane.b32.xlu0 %v725, 80
    %v1452 = vpop.permute.xlu0 %1451
    %1453 = vrot.lane.b32.xlu0 %v727, 80
    %v1454 = vpop.permute.xlu0 %1453
    %1455 = vrot.lane.b32.xlu0 %v730, 80
    %v1456 = vpop.permute.xlu0 %1455
    %1457 = vrot.lane.b32.xlu0 %v732, 80
    %v1458 = vpop.permute.xlu0 %1457
    %1459 = vrot.lane.b32.xlu0 %v1332, 80
    %v1460 = vpop.permute.xlu0 %1459
    %1461 = vrot.lane.b32.xlu0 %v1334, 80
    %v1462 = vpop.permute.xlu0 %1461
    %1531 = vrot.lane.b32.xlu0 %v21, 96
    %v1532 = vpop.permute.xlu0 %1531
    %1533 = vrot.lane.b32.xlu0 %v22, 96
    %v1534 = vpop.permute.xlu0 %1533
    %1535 = vrot.lane.b32.xlu0 %v24, 96
    %v1536 = vpop.permute.xlu0 %1535
    %1537 = vrot.lane.b32.xlu0 %v25, 96
    %v1538 = vpop.permute.xlu0 %1537
    %1539 = vrot.lane.b32.xlu0 %v27, 96
    %v1540 = vpop.permute.xlu0 %1539
    %1541 = vrot.lane.b32.xlu0 %v28, 96
    %v1542 = vpop.permute.xlu0 %1541
    %1543 = vrot.lane.b32.xlu0 %v30, 96
    %v1544 = vpop.permute.xlu0 %1543
    %1545 = vrot.lane.b32.xlu0 %v31, 96
    %v1546 = vpop.permute.xlu0 %1545
    %1547 = vrot.lane.b32.xlu0 %v33, 96
    %v1548 = vpop.permute.xlu0 %1547
    %1549 = vrot.lane.b32.xlu0 %v34, 96
    %v1550 = vpop.permute.xlu0 %1549
    %1551 = vrot.lane.b32.xlu0 %v36, 96
    %v1552 = vpop.permute.xlu0 %1551
    %1553 = vrot.lane.b32.xlu0 %v37, 96
    %v1554 = vpop.permute.xlu0 %1553
    %1555 = vrot.lane.b32.xlu0 %v39, 96
    %v1556 = vpop.permute.xlu0 %1555
    %1557 = vrot.lane.b32.xlu0 %v40, 96
    %v1558 = vpop.permute.xlu0 %1557
    %1559 = vrot.lane.b32.xlu0 %v42, 96
    %v1560 = vpop.permute.xlu0 %1559
    %1561 = vrot.lane.b32.xlu0 %v43, 96
    %v1562 = vpop.permute.xlu0 %1561
    %1563 = vrot.lane.b32.xlu0 %v45, 96
    %v1564 = vpop.permute.xlu0 %1563
    %1565 = vrot.lane.b32.xlu0 %v46, 96
    %v1566 = vpop.permute.xlu0 %1565
    %1567 = vrot.lane.b32.xlu0 %v48, 96
    %v1568 = vpop.permute.xlu0 %1567
    %1569 = vrot.lane.b32.xlu0 %v49, 96
    %v1570 = vpop.permute.xlu0 %1569
    %1571 = vrot.lane.b32.xlu0 %v51, 96
    %v1572 = vpop.permute.xlu0 %1571
    %1573 = vrot.lane.b32.xlu0 %v52, 96
    %v1574 = vpop.permute.xlu0 %1573
    %1575 = vrot.lane.b32.xlu0 %v54, 96
    %v1576 = vpop.permute.xlu0 %1575
    %1577 = vrot.lane.b32.xlu0 %v55, 96
    %v1578 = vpop.permute.xlu0 %1577
    %1579 = vrot.lane.b32.xlu0 %v57, 96
    %v1580 = vpop.permute.xlu0 %1579
    %1581 = vrot.lane.b32.xlu0 %v58, 96
    %v1582 = vpop.permute.xlu0 %1581
    %1583 = vrot.lane.b32.xlu0 %v60, 96
    %v1584 = vpop.permute.xlu0 %1583
    %1585 = vrot.lane.b32.xlu0 %v61, 96
    %v1586 = vpop.permute.xlu0 %1585
    %1587 = vrot.lane.b32.xlu0 %v63, 96
    %v1588 = vpop.permute.xlu0 %1587
    %1589 = vrot.lane.b32.xlu0 %v64, 96
    %v1590 = vpop.permute.xlu0 %1589
    %1591 = vrot.lane.b32.xlu0 %v66, 96
    %v1592 = vpop.permute.xlu0 %1591
    %1593 = vrot.lane.b32.xlu0 %v67, 96
    %v1594 = vpop.permute.xlu0 %1593
    %1595 = vrot.lane.b32.xlu0 %v75, 96
    %v1596 = vpop.permute.xlu0 %1595
    %1597 = vrot.lane.b32.xlu0 %v76, 96
    %v1598 = vpop.permute.xlu0 %1597
    %1599 = vrot.lane.b32.xlu0 %v78, 96
    %v1600 = vpop.permute.xlu0 %1599
    %1601 = vrot.lane.b32.xlu0 %v79, 96
    %v1602 = vpop.permute.xlu0 %1601
    %1603 = vrot.lane.b32.xlu0 %v81, 96
    %v1604 = vpop.permute.xlu0 %1603
    %1605 = vrot.lane.b32.xlu0 %v82, 96
    %v1606 = vpop.permute.xlu0 %1605
    %1607 = vrot.lane.b32.xlu0 %v84, 96
    %v1608 = vpop.permute.xlu0 %1607
    %1609 = vrot.lane.b32.xlu0 %v85, 96
    %v1610 = vpop.permute.xlu0 %1609
    %1611 = vrot.lane.b32.xlu0 %v87, 96
    %v1612 = vpop.permute.xlu0 %1611
    %1613 = vrot.lane.b32.xlu0 %v88, 96
    %v1614 = vpop.permute.xlu0 %1613
    %1615 = vrot.lane.b32.xlu0 %v90, 96
    %v1616 = vpop.permute.xlu0 %1615
    %1617 = vrot.lane.b32.xlu0 %v91, 96
    %v1618 = vpop.permute.xlu0 %1617
    %1619 = vrot.lane.b32.xlu0 %v93, 96
    %v1620 = vpop.permute.xlu0 %1619
    %1621 = vrot.lane.b32.xlu0 %v94, 96
    %v1622 = vpop.permute.xlu0 %1621
    %1623 = vrot.lane.b32.xlu0 %v96, 96
    %v1624 = vpop.permute.xlu0 %1623
    %1625 = vrot.lane.b32.xlu0 %v97, 96
    %v1626 = vpop.permute.xlu0 %1625
    %1627 = vrot.lane.b32.xlu0 %v99, 96
    %v1628 = vpop.permute.xlu0 %1627
    %1629 = vrot.lane.b32.xlu0 %v100, 96
    %v1630 = vpop.permute.xlu0 %1629
    %1631 = vrot.lane.b32.xlu0 %v102, 96
    %v1632 = vpop.permute.xlu0 %1631
    %1633 = vrot.lane.b32.xlu0 %v103, 96
    %v1634 = vpop.permute.xlu0 %1633
    %1635 = vrot.lane.b32.xlu0 %v105, 96
    %v1636 = vpop.permute.xlu0 %1635
    %1637 = vrot.lane.b32.xlu0 %v106, 96
    %v1638 = vpop.permute.xlu0 %1637
    %1639 = vrot.lane.b32.xlu0 %v108, 96
    %v1640 = vpop.permute.xlu0 %1639
    %1641 = vrot.lane.b32.xlu0 %v109, 96
    %v1642 = vpop.permute.xlu0 %1641
    %1643 = vrot.lane.b32.xlu0 %v111, 96
    %v1644 = vpop.permute.xlu0 %1643
    %1645 = vrot.lane.b32.xlu0 %v112, 96
    %v1646 = vpop.permute.xlu0 %1645
    %1647 = vrot.lane.b32.xlu0 %v114, 96
    %v1648 = vpop.permute.xlu0 %1647
    %1649 = vrot.lane.b32.xlu0 %v115, 96
    %v1650 = vpop.permute.xlu0 %1649
    %1651 = vrot.lane.b32.xlu0 %v117, 96
    %v1652 = vpop.permute.xlu0 %1651
    %1653 = vrot.lane.b32.xlu0 %v118, 96
    %v1654 = vpop.permute.xlu0 %1653
    %1655 = vrot.lane.b32.xlu0 %v120, 96
    %v1656 = vpop.permute.xlu0 %1655
    %1657 = vrot.lane.b32.xlu0 %v121, 96
    %v1658 = vpop.permute.xlu0 %1657
    %v1725 = vrot.slane %v66, 1
    %v1726 = vrot.slane %v67, 1
    %v1727 = vsel %vm219, %v1725, %v1726
    %v1728 = vrot.slane %v68, 1
    %v1729 = vsel %vm219, %v1726, %v1728
    %v1730 = vrot.slane %v120, 1
    %v1731 = vrot.slane %v121, 1
    %v1732 = vsel %vm219, %v1730, %v1731
    %v1733 = vrot.slane %v122, 1
    %v1734 = vsel %vm219, %v1731, %v1733
    %1735 = vrot.lane.b32.xlu0 %v232, 112
    %v1736 = vpop.permute.xlu0 %1735
    %1737 = vrot.lane.b32.xlu0 %v234, 112
    %v1738 = vpop.permute.xlu0 %1737
    %1739 = vrot.lane.b32.xlu0 %v237, 112
    %v1740 = vpop.permute.xlu0 %1739
    %1741 = vrot.lane.b32.xlu0 %v239, 112
    %v1742 = vpop.permute.xlu0 %1741
    %1743 = vrot.lane.b32.xlu0 %v242, 112
    %v1744 = vpop.permute.xlu0 %1743
    %1745 = vrot.lane.b32.xlu0 %v244, 112
    %v1746 = vpop.permute.xlu0 %1745
    %1747 = vrot.lane.b32.xlu0 %v247, 112
    %v1748 = vpop.permute.xlu0 %1747
    %1749 = vrot.lane.b32.xlu0 %v249, 112
    %v1750 = vpop.permute.xlu0 %1749
    %1751 = vrot.lane.b32.xlu0 %v252, 112
    %v1752 = vpop.permute.xlu0 %1751
    %1753 = vrot.lane.b32.xlu0 %v254, 112
    %v1754 = vpop.permute.xlu0 %1753
    %1755 = vrot.lane.b32.xlu0 %v257, 112
    %v1756 = vpop.permute.xlu0 %1755
    %1757 = vrot.lane.b32.xlu0 %v259, 112
    %v1758 = vpop.permute.xlu0 %1757
    %1759 = vrot.lane.b32.xlu0 %v262, 112
    %v1760 = vpop.permute.xlu0 %1759
    %1761 = vrot.lane.b32.xlu0 %v264, 112
    %v1762 = vpop.permute.xlu0 %1761
    %1763 = vrot.lane.b32.xlu0 %v267, 112
    %v1764 = vpop.permute.xlu0 %1763
    %1765 = vrot.lane.b32.xlu0 %v269, 112
    %v1766 = vpop.permute.xlu0 %1765
    %1767 = vrot.lane.b32.xlu0 %v272, 112
    %v1768 = vpop.permute.xlu0 %1767
    %1769 = vrot.lane.b32.xlu0 %v274, 112
    %v1770 = vpop.permute.xlu0 %1769
    %1771 = vrot.lane.b32.xlu0 %v277, 112
    %v1772 = vpop.permute.xlu0 %1771
    %1773 = vrot.lane.b32.xlu0 %v279, 112
    %v1774 = vpop.permute.xlu0 %1773
    %1775 = vrot.lane.b32.xlu0 %v282, 112
    %v1776 = vpop.permute.xlu0 %1775
    %1777 = vrot.lane.b32.xlu0 %v284, 112
    %v1778 = vpop.permute.xlu0 %1777
    %1779 = vrot.lane.b32.xlu0 %v287, 112
    %v1780 = vpop.permute.xlu0 %1779
    %1781 = vrot.lane.b32.xlu0 %v289, 112
    %v1782 = vpop.permute.xlu0 %1781
    %1783 = vrot.lane.b32.xlu0 %v292, 112
    %v1784 = vpop.permute.xlu0 %1783
    %1785 = vrot.lane.b32.xlu0 %v294, 112
    %v1786 = vpop.permute.xlu0 %1785
    %1787 = vrot.lane.b32.xlu0 %v297, 112
    %v1788 = vpop.permute.xlu0 %1787
    %1789 = vrot.lane.b32.xlu0 %v299, 112
    %v1790 = vpop.permute.xlu0 %1789
    %1791 = vrot.lane.b32.xlu0 %v1125, 112
    %v1792 = vpop.permute.xlu0 %1791
    %1793 = vrot.lane.b32.xlu0 %v1127, 112
    %v1794 = vpop.permute.xlu0 %1793
    %1795 = vrot.lane.b32.xlu0 %v1727, 112
    %v1796 = vpop.permute.xlu0 %1795
    %1797 = vrot.lane.b32.xlu0 %v1729, 112
    %v1798 = vpop.permute.xlu0 %1797
    %1799 = vrot.lane.b32.xlu0 %v312, 112
    %v1800 = vpop.permute.xlu0 %1799
    %1801 = vrot.lane.b32.xlu0 %v314, 112
    %v1802 = vpop.permute.xlu0 %1801
    %1803 = vrot.lane.b32.xlu0 %v317, 112
    %v1804 = vpop.permute.xlu0 %1803
    %1805 = vrot.lane.b32.xlu0 %v319, 112
    %v1806 = vpop.permute.xlu0 %1805
    %1807 = vrot.lane.b32.xlu0 %v322, 112
    %v1808 = vpop.permute.xlu0 %1807
    %1809 = vrot.lane.b32.xlu0 %v324, 112
    %v1810 = vpop.permute.xlu0 %1809
    %1811 = vrot.lane.b32.xlu0 %v327, 112
    %v1812 = vpop.permute.xlu0 %1811
    %1813 = vrot.lane.b32.xlu0 %v329, 112
    %v1814 = vpop.permute.xlu0 %1813
    %1815 = vrot.lane.b32.xlu0 %v332, 112
    %v1816 = vpop.permute.xlu0 %1815
    %1817 = vrot.lane.b32.xlu0 %v334, 112
    %v1818 = vpop.permute.xlu0 %1817
    %1819 = vrot.lane.b32.xlu0 %v337, 112
    %v1820 = vpop.permute.xlu0 %1819
    %1821 = vrot.lane.b32.xlu0 %v339, 112
    %v1822 = vpop.permute.xlu0 %1821
    %1823 = vrot.lane.b32.xlu0 %v342, 112
    %v1824 = vpop.permute.xlu0 %1823
    %1825 = vrot.lane.b32.xlu0 %v344, 112
    %v1826 = vpop.permute.xlu0 %1825
    %1827 = vrot.lane.b32.xlu0 %v347, 112
    %v1828 = vpop.permute.xlu0 %1827
    %1829 = vrot.lane.b32.xlu0 %v349, 112
    %v1830 = vpop.permute.xlu0 %1829
    %1831 = vrot.lane.b32.xlu0 %v352, 112
    %v1832 = vpop.permute.xlu0 %1831
    %1833 = vrot.lane.b32.xlu0 %v354, 112
    %v1834 = vpop.permute.xlu0 %1833
    %1835 = vrot.lane.b32.xlu0 %v357, 112
    %v1836 = vpop.permute.xlu0 %1835
    %1837 = vrot.lane.b32.xlu0 %v359, 112
    %v1838 = vpop.permute.xlu0 %1837
    %1839 = vrot.lane.b32.xlu0 %v362, 112
    %v1840 = vpop.permute.xlu0 %1839
    %1841 = vrot.lane.b32.xlu0 %v364, 112
    %v1842 = vpop.permute.xlu0 %1841
    %1843 = vrot.lane.b32.xlu0 %v367, 112
    %v1844 = vpop.permute.xlu0 %1843
    %1845 = vrot.lane.b32.xlu0 %v369, 112
    %v1846 = vpop.permute.xlu0 %1845
    %1847 = vrot.lane.b32.xlu0 %v372, 112
    %v1848 = vpop.permute.xlu0 %1847
    %1849 = vrot.lane.b32.xlu0 %v374, 112
    %v1850 = vpop.permute.xlu0 %1849
    %1851 = vrot.lane.b32.xlu0 %v377, 112
    %v1852 = vpop.permute.xlu0 %1851
    %1853 = vrot.lane.b32.xlu0 %v379, 112
    %v1854 = vpop.permute.xlu0 %1853
    %1855 = vrot.lane.b32.xlu0 %v1130, 112
    %v1856 = vpop.permute.xlu0 %1855
    %1857 = vrot.lane.b32.xlu0 %v1132, 112
    %v1858 = vpop.permute.xlu0 %1857
    %1859 = vrot.lane.b32.xlu0 %v1732, 112
    %v1860 = vpop.permute.xlu0 %1859
    %1861 = vrot.lane.b32.xlu0 %v1734, 112
    %v1862 = vpop.permute.xlu0 %1861
    %v1927 = vrot.slane %v66, 2
    %v1928 = vrot.slane %v67, 2
    %v1929 = vsel %vm572, %v1927, %v1928
    %v1930 = vrot.slane %v68, 2
    %v1931 = vsel %vm572, %v1928, %v1930
    %v1932 = vrot.slane %v120, 2
    %v1933 = vrot.slane %v121, 2
    %v1934 = vsel %vm572, %v1932, %v1933
    %v1935 = vrot.slane %v122, 2
    %v1936 = vsel %vm572, %v1933, %v1935
    %vm1937 = vcmask 130048
    %v1938 = vsel %vm1937, %v15, %v381
    %v1939 = vsel %vm1937, %v16, %v383
    %v1940 = vsel %vm1937, %v18, %v385
    %v1941 = vsel %vm1937, %v19, %v387
    %v1942 = vsel %vm1937, %v21, %v389
    %v1943 = vsel %vm1937, %v22, %v391
    %v1944 = vsel %vm1937, %v24, %v393
    %v1945 = vsel %vm1937, %v25, %v395
    %v1946 = vsel %vm1937, %v27, %v397
    %v1947 = vsel %vm1937, %v28, %v399
    %v1948 = vsel %vm1937, %v30, %v401
    %v1949 = vsel %vm1937, %v31, %v403
    %v1950 = vsel %vm1937, %v33, %v405
    %v1951 = vsel %vm1937, %v34, %v407
    %v1952 = vsel %vm1937, %v36, %v409
    %v1953 = vsel %vm1937, %v37, %v411
    %v1954 = vsel %vm1937, %v39, %v413
    %v1955 = vsel %vm1937, %v40, %v415
    %v1956 = vsel %vm1937, %v42, %v417
    %v1957 = vsel %vm1937, %v43, %v419
    %v1958 = vsel %vm1937, %v45, %v421
    %v1959 = vsel %vm1937, %v46, %v423
    %v1960 = vsel %vm1937, %v48, %v425
    %v1961 = vsel %vm1937, %v49, %v427
    %v1962 = vsel %vm1937, %v51, %v429
    %v1963 = vsel %vm1937, %v52, %v431
    %v1964 = vsel %vm1937, %v54, %v433
    %v1965 = vsel %vm1937, %v55, %v435
    %v1966 = vsel %vm1937, %v57, %v437
    %v1967 = vsel %vm1937, %v58, %v439
    %v1968 = vsel %vm1937, %v60, %v441
    %v1969 = vsel %vm1937, %v61, %v443
    %v1970 = vsel %vm1937, %v69, %v445
    %v1971 = vsel %vm1937, %v70, %v447
    %v1972 = vsel %vm1937, %v72, %v449
    %v1973 = vsel %vm1937, %v73, %v451
    %v1974 = vsel %vm1937, %v75, %v453
    %v1975 = vsel %vm1937, %v76, %v455
    %v1976 = vsel %vm1937, %v78, %v457
    %v1977 = vsel %vm1937, %v79, %v459
    %v1978 = vsel %vm1937, %v81, %v461
    %v1979 = vsel %vm1937, %v82, %v463
    %v1980 = vsel %vm1937, %v84, %v465
    %v1981 = vsel %vm1937, %v85, %v467
    %v1982 = vsel %vm1937, %v87, %v469
    %v1983 = vsel %vm1937, %v88, %v471
    %v1984 = vsel %vm1937, %v90, %v473
    %v1985 = vsel %vm1937, %v91, %v475
    %v1986 = vsel %vm1937, %v93, %v477
    %v1987 = vsel %vm1937, %v94, %v479
    %v1988 = vsel %vm1937, %v96, %v481
    %v1989 = vsel %vm1937, %v97, %v483
    %v1990 = vsel %vm1937, %v99, %v485
    %v1991 = vsel %vm1937, %v100, %v487
    %v1992 = vsel %vm1937, %v102, %v489
    %v1993 = vsel %vm1937, %v103, %v491
    %v1994 = vsel %vm1937, %v105, %v493
    %v1995 = vsel %vm1937, %v106, %v495
    %v1996 = vsel %vm1937, %v108, %v497
    %v1997 = vsel %vm1937, %v109, %v499
    %v1998 = vsel %vm1937, %v111, %v501
    %v1999 = vsel %vm1937, %v112, %v503
    %v2000 = vsel %vm1937, %v114, %v505
    %v2001 = vsel %vm1937, %v115, %v507
    %vm2002 = vcmask 261120
    %v2003 = vsel %vm2002, %v1938, %v734
    %v2004 = vsel %vm2002, %v1939, %v736
    %v2005 = vsel %vm2002, %v1940, %v738
    %v2006 = vsel %vm2002, %v1941, %v740
    %v2007 = vsel %vm2002, %v1942, %v742
    %v2008 = vsel %vm2002, %v1943, %v744
    %v2009 = vsel %vm2002, %v1944, %v746
    %v2010 = vsel %vm2002, %v1945, %v748
    %v2011 = vsel %vm2002, %v1946, %v750
    %v2012 = vsel %vm2002, %v1947, %v752
    %v2013 = vsel %vm2002, %v1948, %v754
    %v2014 = vsel %vm2002, %v1949, %v756
    %v2015 = vsel %vm2002, %v1950, %v758
    %v2016 = vsel %vm2002, %v1951, %v760
    %v2017 = vsel %vm2002, %v1952, %v762
    %v2018 = vsel %vm2002, %v1953, %v764
    %v2019 = vsel %vm2002, %v1954, %v766
    %v2020 = vsel %vm2002, %v1955, %v768
    %v2021 = vsel %vm2002, %v1956, %v770
    %v2022 = vsel %vm2002, %v1957, %v772
    %v2023 = vsel %vm2002, %v1958, %v774
    %v2024 = vsel %vm2002, %v1959, %v776
    %v2025 = vsel %vm2002, %v1960, %v778
    %v2026 = vsel %vm2002, %v1961, %v780
    %v2027 = vsel %vm2002, %v1962, %v782
    %v2028 = vsel %vm2002, %v1963, %v784
    %v2029 = vsel %vm2002, %v1964, %v786
    %v2030 = vsel %vm2002, %v1965, %v788
    %v2031 = vsel %vm2002, %v1966, %v790
    %v2032 = vsel %vm2002, %v1967, %v792
    %v2033 = vsel %vm2002, %v1968, %v794
    %v2034 = vsel %vm2002, %v1969, %v796
    %v2035 = vsel %vm2002, %v1970, %v798
    %v2036 = vsel %vm2002, %v1971, %v800
    %v2037 = vsel %vm2002, %v1972, %v802
    %v2038 = vsel %vm2002, %v1973, %v804
    %v2039 = vsel %vm2002, %v1974, %v806
    %v2040 = vsel %vm2002, %v1975, %v808
    %v2041 = vsel %vm2002, %v1976, %v810
    %v2042 = vsel %vm2002, %v1977, %v812
    %v2043 = vsel %vm2002, %v1978, %v814
    %v2044 = vsel %vm2002, %v1979, %v816
    %v2045 = vsel %vm2002, %v1980, %v818
    %v2046 = vsel %vm2002, %v1981, %v820
    %v2047 = vsel %vm2002, %v1982, %v822
    %v2048 = vsel %vm2002, %v1983, %v824
    %v2049 = vsel %vm2002, %v1984, %v826
    %v2050 = vsel %vm2002, %v1985, %v828
    %v2051 = vsel %vm2002, %v1986, %v830
    %v2052 = vsel %vm2002, %v1987, %v832
    %v2053 = vsel %vm2002, %v1988, %v834
    %v2054 = vsel %vm2002, %v1989, %v836
    %v2055 = vsel %vm2002, %v1990, %v838
    %v2056 = vsel %vm2002, %v1991, %v840
    %v2057 = vsel %vm2002, %v1992, %v842
    %v2058 = vsel %vm2002, %v1993, %v844
    %v2059 = vsel %vm2002, %v1994, %v846
    %v2060 = vsel %vm2002, %v1995, %v848
    %v2061 = vsel %vm2002, %v1996, %v850
    %v2062 = vsel %vm2002, %v1997, %v852
    %v2063 = vsel %vm2002, %v1998, %v854
    %v2064 = vsel %vm2002, %v1999, %v856
    %v2065 = vsel %vm2002, %v2000, %v858
    %v2066 = vsel %vm2002, %v2001, %v860
    %vm2067 = vcmask 392192
    %v2068 = vsel %vm2067, %v2003, %v930
    %v2069 = vsel %vm2067, %v2004, %v932
    %v2070 = vsel %vm2067, %v2005, %v934
    %v2071 = vsel %vm2067, %v2006, %v936
    %v2072 = vsel %vm2067, %v2007, %v938
    %v2073 = vsel %vm2067, %v2008, %v940
    %v2074 = vsel %vm2067, %v2009, %v942
    %v2075 = vsel %vm2067, %v2010, %v944
    %v2076 = vsel %vm2067, %v2011, %v946
    %v2077 = vsel %vm2067, %v2012, %v948
    %v2078 = vsel %vm2067, %v2013, %v950
    %v2079 = vsel %vm2067, %v2014, %v952
    %v2080 = vsel %vm2067, %v2015, %v954
    %v2081 = vsel %vm2067, %v2016, %v956
    %v2082 = vsel %vm2067, %v2017, %v958
    %v2083 = vsel %vm2067, %v2018, %v960
    %v2084 = vsel %vm2067, %v2019, %v962
    %v2085 = vsel %vm2067, %v2020, %v964
    %v2086 = vsel %vm2067, %v2021, %v966
    %v2087 = vsel %vm2067, %v2022, %v968
    %v2088 = vsel %vm2067, %v2023, %v970
    %v2089 = vsel %vm2067, %v2024, %v972
    %v2090 = vsel %vm2067, %v2025, %v974
    %v2091 = vsel %vm2067, %v2026, %v976
    %v2092 = vsel %vm2067, %v2027, %v978
    %v2093 = vsel %vm2067, %v2028, %v980
    %v2094 = vsel %vm2067, %v2029, %v982
    %v2095 = vsel %vm2067, %v2030, %v984
    %v2096 = vsel %vm2067, %v2031, %v986
    %v2097 = vsel %vm2067, %v2032, %v988
    %v2098 = vsel %vm2067, %v2033, %v990
    %v2099 = vsel %vm2067, %v2034, %v992
    %v2100 = vsel %vm2067, %v2035, %v994
    %v2101 = vsel %vm2067, %v2036, %v996
    %v2102 = vsel %vm2067, %v2037, %v998
    %v2103 = vsel %vm2067, %v2038, %v1000
    %v2104 = vsel %vm2067, %v2039, %v1002
    %v2105 = vsel %vm2067, %v2040, %v1004
    %v2106 = vsel %vm2067, %v2041, %v1006
    %v2107 = vsel %vm2067, %v2042, %v1008
    %v2108 = vsel %vm2067, %v2043, %v1010
    %v2109 = vsel %vm2067, %v2044, %v1012
    %v2110 = vsel %vm2067, %v2045, %v1014
    %v2111 = vsel %vm2067, %v2046, %v1016
    %v2112 = vsel %vm2067, %v2047, %v1018
    %v2113 = vsel %vm2067, %v2048, %v1020
    %v2114 = vsel %vm2067, %v2049, %v1022
    %v2115 = vsel %vm2067, %v2050, %v1024
    %v2116 = vsel %vm2067, %v2051, %v1026
    %v2117 = vsel %vm2067, %v2052, %v1028
    %v2118 = vsel %vm2067, %v2053, %v1030
    %v2119 = vsel %vm2067, %v2054, %v1032
    %v2120 = vsel %vm2067, %v2055, %v1034
    %v2121 = vsel %vm2067, %v2056, %v1036
    %v2122 = vsel %vm2067, %v2057, %v1038
    %v2123 = vsel %vm2067, %v2058, %v1040
    %v2124 = vsel %vm2067, %v2059, %v1042
    %v2125 = vsel %vm2067, %v2060, %v1044
    %v2126 = vsel %vm2067, %v2061, %v1046
    %v2127 = vsel %vm2067, %v2062, %v1048
    %v2128 = vsel %vm2067, %v2063, %v1050
    %v2129 = vsel %vm2067, %v2064, %v1052
    %v2130 = vsel %vm2067, %v2065, %v1054
    %v2131 = vsel %vm2067, %v2066, %v1056
    %vm2132 = vcmask 523264
    %v2133 = vsel %vm2132, %v2068, %v1134
    %v2134 = vsel %vm2132, %v2069, %v1136
    %v2135 = vsel %vm2132, %v2070, %v1138
    %v2136 = vsel %vm2132, %v2071, %v1140
    %v2137 = vsel %vm2132, %v2072, %v1142
    %v2138 = vsel %vm2132, %v2073, %v1144
    %v2139 = vsel %vm2132, %v2074, %v1146
    %v2140 = vsel %vm2132, %v2075, %v1148
    %v2141 = vsel %vm2132, %v2076, %v1150
    %v2142 = vsel %vm2132, %v2077, %v1152
    %v2143 = vsel %vm2132, %v2078, %v1154
    %v2144 = vsel %vm2132, %v2079, %v1156
    %v2145 = vsel %vm2132, %v2080, %v1158
    %v2146 = vsel %vm2132, %v2081, %v1160
    %v2147 = vsel %vm2132, %v2082, %v1162
    %v2148 = vsel %vm2132, %v2083, %v1164
    %v2149 = vsel %vm2132, %v2084, %v1166
    %v2150 = vsel %vm2132, %v2085, %v1168
    %v2151 = vsel %vm2132, %v2086, %v1170
    %v2152 = vsel %vm2132, %v2087, %v1172
    %v2153 = vsel %vm2132, %v2088, %v1174
    %v2154 = vsel %vm2132, %v2089, %v1176
    %v2155 = vsel %vm2132, %v2090, %v1178
    %v2156 = vsel %vm2132, %v2091, %v1180
    %v2157 = vsel %vm2132, %v2092, %v1182
    %v2158 = vsel %vm2132, %v2093, %v1184
    %v2159 = vsel %vm2132, %v2094, %v1186
    %v2160 = vsel %vm2132, %v2095, %v1188
    %v2161 = vsel %vm2132, %v2096, %v1190
    %v2162 = vsel %vm2132, %v2097, %v1192
    %v2163 = vsel %vm2132, %v2098, %v1194
    %v2164 = vsel %vm2132, %v2099, %v1196
    %v2165 = vsel %vm2132, %v2100, %v1198
    %v2166 = vsel %vm2132, %v2101, %v1200
    %v2167 = vsel %vm2132, %v2102, %v1202
    %v2168 = vsel %vm2132, %v2103, %v1204
    %v2169 = vsel %vm2132, %v2104, %v1206
    %v2170 = vsel %vm2132, %v2105, %v1208
    %v2171 = vsel %vm2132, %v2106, %v1210
    %v2172 = vsel %vm2132, %v2107, %v1212
    %v2173 = vsel %vm2132, %v2108, %v1214
    %v2174 = vsel %vm2132, %v2109, %v1216
    %v2175 = vsel %vm2132, %v2110, %v1218
    %v2176 = vsel %vm2132, %v2111, %v1220
    %v2177 = vsel %vm2132, %v2112, %v1222
    %v2178 = vsel %vm2132, %v2113, %v1224
    %v2179 = vsel %vm2132, %v2114, %v1226
    %v2180 = vsel %vm2132, %v2115, %v1228
    %v2181 = vsel %vm2132, %v2116, %v1230
    %v2182 = vsel %vm2132, %v2117, %v1232
    %v2183 = vsel %vm2132, %v2118, %v1234
    %v2184 = vsel %vm2132, %v2119, %v1236
    %v2185 = vsel %vm2132, %v2120, %v1238
    %v2186 = vsel %vm2132, %v2121, %v1240
    %v2187 = vsel %vm2132, %v2122, %v1242
    %v2188 = vsel %vm2132, %v2123, %v1244
    %v2189 = vsel %vm2132, %v2124, %v1246
    %v2190 = vsel %vm2132, %v2125, %v1248
    %v2191 = vsel %vm2132, %v2126, %v1250
    %v2192 = vsel %vm2132, %v2127, %v1252
    %v2193 = vsel %vm2132, %v2128, %v1254
    %v2194 = vsel %vm2132, %v2129, %v1256
    %v2195 = vsel %vm2132, %v2130, %v1258
    %v2196 = vsel %vm2132, %v2131, %v1260
    %vm2197 = vcmask 654336
    %v2198 = vsel %vm2197, %v2133, %v1336
    %v2199 = vsel %vm2197, %v2134, %v1338
    %v2200 = vsel %vm2197, %v2135, %v1340
    %v2201 = vsel %vm2197, %v2136, %v1342
    %v2202 = vsel %vm2197, %v2137, %v1344
    %v2203 = vsel %vm2197, %v2138, %v1346
    %v2204 = vsel %vm2197, %v2139, %v1348
    %v2205 = vsel %vm2197, %v2140, %v1350
    %v2206 = vsel %vm2197, %v2141, %v1352
    %v2207 = vsel %vm2197, %v2142, %v1354
    %v2208 = vsel %vm2197, %v2143, %v1356
    %v2209 = vsel %vm2197, %v2144, %v1358
    %v2210 = vsel %vm2197, %v2145, %v1360
    %v2211 = vsel %vm2197, %v2146, %v1362
    %v2212 = vsel %vm2197, %v2147, %v1364
    %v2213 = vsel %vm2197, %v2148, %v1366
    %v2214 = vsel %vm2197, %v2149, %v1368
    %v2215 = vsel %vm2197, %v2150, %v1370
    %v2216 = vsel %vm2197, %v2151, %v1372
    %v2217 = vsel %vm2197, %v2152, %v1374
    %v2218 = vsel %vm2197, %v2153, %v1376
    %v2219 = vsel %vm2197, %v2154, %v1378
    %v2220 = vsel %vm2197, %v2155, %v1380
    %v2221 = vsel %vm2197, %v2156, %v1382
    %v2222 = vsel %vm2197, %v2157, %v1384
    %v2223 = vsel %vm2197, %v2158, %v1386
    %v2224 = vsel %vm2197, %v2159, %v1388
    %v2225 = vsel %vm2197, %v2160, %v1390
    %v2226 = vsel %vm2197, %v2161, %v1392
    %v2227 = vsel %vm2197, %v2162, %v1394
    %v2228 = vsel %vm2197, %v2163, %v1396
    %v2229 = vsel %vm2197, %v2164, %v1398
    %v2230 = vsel %vm2197, %v2165, %v1400
    %v2231 = vsel %vm2197, %v2166, %v1402
    %v2232 = vsel %vm2197, %v2167, %v1404
    %v2233 = vsel %vm2197, %v2168, %v1406
    %v2234 = vsel %vm2197, %v2169, %v1408
    %v2235 = vsel %vm2197, %v2170, %v1410
    %v2236 = vsel %vm2197, %v2171, %v1412
    %v2237 = vsel %vm2197, %v2172, %v1414
    %v2238 = vsel %vm2197, %v2173, %v1416
    %v2239 = vsel %vm2197, %v2174, %v1418
    %v2240 = vsel %vm2197, %v2175, %v1420
    %v2241 = vsel %vm2197, %v2176, %v1422
    %v2242 = vsel %vm2197, %v2177, %v1424
    %v2243 = vsel %vm2197, %v2178, %v1426
    %v2244 = vsel %vm2197, %v2179, %v1428
    %v2245 = vsel %vm2197, %v2180, %v1430
    %v2246 = vsel %vm2197, %v2181, %v1432
    %v2247 = vsel %vm2197, %v2182, %v1434
    %v2248 = vsel %vm2197, %v2183, %v1436
    %v2249 = vsel %vm2197, %v2184, %v1438
    %v2250 = vsel %vm2197, %v2185, %v1440
    %v2251 = vsel %vm2197, %v2186, %v1442
    %v2252 = vsel %vm2197, %v2187, %v1444
    %v2253 = vsel %vm2197, %v2188, %v1446
    %v2254 = vsel %vm2197, %v2189, %v1448
    %v2255 = vsel %vm2197, %v2190, %v1450
    %v2256 = vsel %vm2197, %v2191, %v1452
    %v2257 = vsel %vm2197, %v2192, %v1454
    %v2258 = vsel %vm2197, %v2193, %v1456
    %v2259 = vsel %vm2197, %v2194, %v1458
    %v2260 = vsel %vm2197, %v2195, %v1460
    %v2261 = vsel %vm2197, %v2196, %v1462
    %vm2262 = vcmask 785408
    %v2263 = vsel %vm2262, %v2198, %v1532
    %v2264 = vsel %vm2262, %v2199, %v1534
    %v2265 = vsel %vm2262, %v2200, %v1536
    %v2266 = vsel %vm2262, %v2201, %v1538
    %v2267 = vsel %vm2262, %v2202, %v1540
    %v2268 = vsel %vm2262, %v2203, %v1542
    %v2269 = vsel %vm2262, %v2204, %v1544
    %v2270 = vsel %vm2262, %v2205, %v1546
    %v2271 = vsel %vm2262, %v2206, %v1548
    %v2272 = vsel %vm2262, %v2207, %v1550
    %v2273 = vsel %vm2262, %v2208, %v1552
    %v2274 = vsel %vm2262, %v2209, %v1554
    %v2275 = vsel %vm2262, %v2210, %v1556
    %v2276 = vsel %vm2262, %v2211, %v1558
    %v2277 = vsel %vm2262, %v2212, %v1560
    %v2278 = vsel %vm2262, %v2213, %v1562
    %v2279 = vsel %vm2262, %v2214, %v1564
    %v2280 = vsel %vm2262, %v2215, %v1566
    %v2281 = vsel %vm2262, %v2216, %v1568
    %v2282 = vsel %vm2262, %v2217, %v1570
    %v2283 = vsel %vm2262, %v2218, %v1572
    %v2284 = vsel %vm2262, %v2219, %v1574
    %v2285 = vsel %vm2262, %v2220, %v1576
    %v2286 = vsel %vm2262, %v2221, %v1578
    %v2287 = vsel %vm2262, %v2222, %v1580
    %v2288 = vsel %vm2262, %v2223, %v1582
    %v2289 = vsel %vm2262, %v2224, %v1584
    %v2290 = vsel %vm2262, %v2225, %v1586
    %v2291 = vsel %vm2262, %v2226, %v1588
    %v2292 = vsel %vm2262, %v2227, %v1590
    %v2293 = vsel %vm2262, %v2228, %v1592
    %v2294 = vsel %vm2262, %v2229, %v1594
    %v2295 = vsel %vm2262, %v2230, %v1596
    %v2296 = vsel %vm2262, %v2231, %v1598
    %v2297 = vsel %vm2262, %v2232, %v1600
    %v2298 = vsel %vm2262, %v2233, %v1602
    %v2299 = vsel %vm2262, %v2234, %v1604
    %v2300 = vsel %vm2262, %v2235, %v1606
    %v2301 = vsel %vm2262, %v2236, %v1608
    %v2302 = vsel %vm2262, %v2237, %v1610
    %v2303 = vsel %vm2262, %v2238, %v1612
    %v2304 = vsel %vm2262, %v2239, %v1614
    %v2305 = vsel %vm2262, %v2240, %v1616
    %v2306 = vsel %vm2262, %v2241, %v1618
    %v2307 = vsel %vm2262, %v2242, %v1620
    %v2308 = vsel %vm2262, %v2243, %v1622
    %v2309 = vsel %vm2262, %v2244, %v1624
    %v2310 = vsel %vm2262, %v2245, %v1626
    %v2311 = vsel %vm2262, %v2246, %v1628
    %v2312 = vsel %vm2262, %v2247, %v1630
    %v2313 = vsel %vm2262, %v2248, %v1632
    %v2314 = vsel %vm2262, %v2249, %v1634
    %v2315 = vsel %vm2262, %v2250, %v1636
    %v2316 = vsel %vm2262, %v2251, %v1638
    %v2317 = vsel %vm2262, %v2252, %v1640
    %v2318 = vsel %vm2262, %v2253, %v1642
    %v2319 = vsel %vm2262, %v2254, %v1644
    %v2320 = vsel %vm2262, %v2255, %v1646
    %v2321 = vsel %vm2262, %v2256, %v1648
    %v2322 = vsel %vm2262, %v2257, %v1650
    %v2323 = vsel %vm2262, %v2258, %v1652
    %v2324 = vsel %vm2262, %v2259, %v1654
    %v2325 = vsel %vm2262, %v2260, %v1656
    %v2326 = vsel %vm2262, %v2261, %v1658
    %vm2327 = vcmask 916480
    %v2328 = vsel %vm2327, %v2263, %v1736
    %v2329 = vsel %vm2327, %v2264, %v1738
    %v2330 = vsel %vm2327, %v2265, %v1740
    %v2331 = vsel %vm2327, %v2266, %v1742
    %v2332 = vsel %vm2327, %v2267, %v1744
    %v2333 = vsel %vm2327, %v2268, %v1746
    %v2334 = vsel %vm2327, %v2269, %v1748
    %v2335 = vsel %vm2327, %v2270, %v1750
    %v2336 = vsel %vm2327, %v2271, %v1752
    %v2337 = vsel %vm2327, %v2272, %v1754
    %v2338 = vsel %vm2327, %v2273, %v1756
    %v2339 = vsel %vm2327, %v2274, %v1758
    %v2340 = vsel %vm2327, %v2275, %v1760
    %v2341 = vsel %vm2327, %v2276, %v1762
    %v2342 = vsel %vm2327, %v2277, %v1764
    %v2343 = vsel %vm2327, %v2278, %v1766
    %v2344 = vsel %vm2327, %v2279, %v1768
    %v2345 = vsel %vm2327, %v2280, %v1770
    %v2346 = vsel %vm2327, %v2281, %v1772
    %v2347 = vsel %vm2327, %v2282, %v1774
    %v2348 = vsel %vm2327, %v2283, %v1776
    %v2349 = vsel %vm2327, %v2284, %v1778
    %v2350 = vsel %vm2327, %v2285, %v1780
    %v2351 = vsel %vm2327, %v2286, %v1782
    %v2352 = vsel %vm2327, %v2287, %v1784
    %v2353 = vsel %vm2327, %v2288, %v1786
    %v2354 = vsel %vm2327, %v2289, %v1788
    %v2355 = vsel %vm2327, %v2290, %v1790
    %v2356 = vsel %vm2327, %v2291, %v1792
    %v2357 = vsel %vm2327, %v2292, %v1794
    %v2358 = vsel %vm2327, %v2293, %v1796
    %v2359 = vsel %vm2327, %v2294, %v1798
    %v2360 = vsel %vm2327, %v2295, %v1800
    %v2361 = vsel %vm2327, %v2296, %v1802
    %v2362 = vsel %vm2327, %v2297, %v1804
    %v2363 = vsel %vm2327, %v2298, %v1806
    %v2364 = vsel %vm2327, %v2299, %v1808
    %v2365 = vsel %vm2327, %v2300, %v1810
    %v2366 = vsel %vm2327, %v2301, %v1812
    %v2367 = vsel %vm2327, %v2302, %v1814
    %v2368 = vsel %vm2327, %v2303, %v1816
    %v2369 = vsel %vm2327, %v2304, %v1818
    %v2370 = vsel %vm2327, %v2305, %v1820
    %v2371 = vsel %vm2327, %v2306, %v1822
    %v2372 = vsel %vm2327, %v2307, %v1824
    %v2373 = vsel %vm2327, %v2308, %v1826
    %v2374 = vsel %vm2327, %v2309, %v1828
    %v2375 = vsel %vm2327, %v2310, %v1830
    %v2376 = vsel %vm2327, %v2311, %v1832
    %v2377 = vsel %vm2327, %v2312, %v1834
    %v2378 = vsel %vm2327, %v2313, %v1836
    %v2379 = vsel %vm2327, %v2314, %v1838
    %v2380 = vsel %vm2327, %v2315, %v1840
    %v2381 = vsel %vm2327, %v2316, %v1842
    %v2382 = vsel %vm2327, %v2317, %v1844
    %v2383 = vsel %vm2327, %v2318, %v1846
    %v2384 = vsel %vm2327, %v2319, %v1848
    %v2385 = vsel %vm2327, %v2320, %v1850
    %v2386 = vsel %vm2327, %v2321, %v1852
    %v2387 = vsel %vm2327, %v2322, %v1854
    %v2388 = vsel %vm2327, %v2323, %v1856
    %v2389 = vsel %vm2327, %v2324, %v1858
    %v2390 = vsel %vm2327, %v2325, %v1860
    %v2391 = vsel %vm2327, %v2326, %v1862
    %v2392 = vld [vmem:[%s1] sm:$0xff]
    %v2393 = vld [vmem:[%s1 + $0x8] sm:$0xff]
    %v2394 = vld [vmem:[%s1 + $0x10] sm:$0xff]
    %v2395 = vld [vmem:[%s1 + $0x18] sm:$0xff]
    %v2396 = vld [vmem:[%s1 + $0x20] sm:$0xff]
    %v2397 = vld [vmem:[%s1 + $0x28] sm:$0xff]
    %v2398 = vld [vmem:[%s1 + $0x30] sm:$0xff]
    %v2399 = vld [vmem:[%s1 + $0x38] sm:$0xff]
    %v2400 = vld [vmem:[%s1 + $0x40] sm:$0xff]
    %v2401 = vld [vmem:[%s1 + $0x48] sm:$0xff]
    %v2402 = vld [vmem:[%s1 + $0x50] sm:$0xff]
    %v2403 = vld [vmem:[%s1 + $0x58] sm:$0xff]
    %v2404 = vld [vmem:[%s1 + $0x60] sm:$0xff]
    %v2405 = vld [vmem:[%s1 + $0x68] sm:$0xff]
    %v2406 = vld [vmem:[%s1 + $0x70] sm:$0xff]
    %v2407 = vld [vmem:[%s1 + $0x78] sm:$0xff]
    %v2408 = vld [vmem:[%s1 + $0x80] sm:$0xff]
    %v2409 = vld [vmem:[%s1 + $0x88] sm:$0xff]
    %v2410 = vsel %vm1937, %v585, 0
    %v2412 = vsel %vm1937, %v587, 0
    %v2414 = vsel %vm1937, %v590, 0
    %v2416 = vsel %vm1937, %v592, 0
    %v2418 = vsel %vm1937, %v595, 0
    %v2420 = vsel %vm1937, %v597, 0
    %v2422 = vsel %vm1937, %v600, 0
    %v2424 = vsel %vm1937, %v602, 0
    %v2426 = vsel %vm1937, %v605, 0
    %v2428 = vsel %vm1937, %v607, 0
    %v2430 = vsel %vm1937, %v610, 0
    %v2432 = vsel %vm1937, %v612, 0
    %v2434 = vsel %vm1937, %v615, 0
    %v2436 = vsel %vm1937, %v617, 0
    %v2438 = vsel %vm1937, %v620, 0
    %v2440 = vsel %vm1937, %v622, 0
    %v2442 = vsel %vm1937, %v625, 0
    %v2444 = vsel %vm1937, %v627, 0
    %v2446 = vsel %vm1937, %v630, 0
    %v2448 = vsel %vm1937, %v632, 0
    %v2450 = vsel %vm1937, %v635, 0
    %v2452 = vsel %vm1937, %v637, 0
    %v2454 = vsel %vm1937, %v640, 0
    %v2456 = vsel %vm1937, %v642, 0
    %v2458 = vsel %vm1937, %v645, 0
    %v2460 = vsel %vm1937, %v647, 0
    %v2462 = vsel %vm1937, %v650, 0
    %v2464 = vsel %vm1937, %v652, 0
    %v2466 = vsel %vm1937, %v1327, 0
    %v2468 = vsel %vm1937, %v1329, 0
    %v2470 = vsel %vm1937, %v1929, 0
    %v2472 = vsel %vm1937, %v1931, 0
    %v2474 = vsel %vm1937, %v665, 0
    %v2476 = vsel %vm1937, %v667, 0
    %v2478 = vsel %vm1937, %v670, 0
    %v2480 = vsel %vm1937, %v672, 0
    %v2482 = vsel %vm1937, %v675, 0
    %v2484 = vsel %vm1937, %v677, 0
    %v2486 = vsel %vm1937, %v680, 0
    %v2488 = vsel %vm1937, %v682, 0
    %v2490 = vsel %vm1937, %v685, 0
    %v2492 = vsel %vm1937, %v687, 0
    %v2494 = vsel %vm1937, %v690, 0
    %v2496 = vsel %vm1937, %v692, 0
    %v2498 = vsel %vm1937, %v695, 0
    %v2500 = vsel %vm1937, %v697, 0
    %v2502 = vsel %vm1937, %v700, 0
    %v2504 = vsel %vm1937, %v702, 0
    %v2506 = vsel %vm1937, %v705, 0
    %v2508 = vsel %vm1937, %v707, 0
    %v2510 = vsel %vm1937, %v710, 0
    %v2512 = vsel %vm1937, %v712, 0
    %v2514 = vsel %vm1937, %v715, 0
    %v2516 = vsel %vm1937, %v717, 0
    %v2518 = vsel %vm1937, %v720, 0
    %v2520 = vsel %vm1937, %v722, 0
    %v2522 = vsel %vm1937, %v725, 0
    %v2524 = vsel %vm1937, %v727, 0
    %v2526 = vsel %vm1937, %v730, 0
    %v2528 = vsel %vm1937, %v732, 0
    %v2530 = vsel %vm1937, %v1332, 0
    %v2532 = vsel %vm1937, %v1334, 0
    %v2534 = vsel %vm1937, %v1934, 0
    %v2536 = vsel %vm1937, %v1936, 0
    %2538 = vmatprep.subr.mxu0 0.0
    %2539 = vmatpush1.msra.mxu0 %v2407
    %2540 = vmatprep.subr.mxu0 0.0
    %2541 = vmatpush1.msra.mxu0 %v2406
    %2542 = vmatprep.subr.mxu0 0.0
    %2543 = vmatpush1.msra.mxu0 %v2405
    %2544 = vmatprep.subr.mxu0 0.0
    %2545 = vmatpush1.msra.mxu0 %v2404
    %2546 = vmatprep.subr.mxu0 0.0
    %2547 = vmatpush1.msra.mxu0 %v2403
    %2548 = vmatprep.subr.mxu0 0.0
    %2549 = vmatpush1.msra.mxu0 %v2402
    %2550 = vmatprep.subr.mxu0 0.0
    %2551 = vmatpush1.msra.mxu0 %v2401
    %2552 = vmatprep.subr.mxu0 0.0
    %2553 = vmatpush1.msra.mxu0 %v2400
    %2554 = vmatprep.subr.mxu0 0.0
    %2555 = vmatpush1.msra.mxu0 %v2399
    %2556 = vmatprep.subr.mxu0 0.0
    %2557 = vmatpush1.msra.mxu0 %v2398
    %2558 = vmatprep.subr.mxu0 0.0
    %2559 = vmatpush1.msra.mxu0 %v2397
    %2560 = vmatprep.subr.mxu0 0.0
    %2561 = vmatpush1.msra.mxu0 %v2396
    %2562 = vmatprep.subr.mxu0 0.0
    %2563 = vmatpush1.msra.mxu0 %v2395
    %2564 = vmatprep.subr.mxu0 0.0
    %2565 = vmatpush1.msra.mxu0 %v2394
    %2566 = vmatprep.subr.mxu0 0.0
    %2567 = vmatpush1.msra.mxu0 %v2393
    %2568 = vmatprep.subr.mxu0 0.0
    %2569 = vmatpush1.msra.mxu0 %v2392
    %2570 = vmatprep.subr.mxu0 0.0
    %2571 = vmatpush2.msra.mxu0 0.0
    %2572 = vmatprep.subr.mxu0 0.0
    %2573 = vmatpush2.msra.mxu0 0.0
    %2574 = vmatprep.subr.mxu0 0.0
    %2575 = vmatpush2.msra.mxu0 0.0
    %2576 = vmatprep.subr.mxu0 0.0
    %2577 = vmatpush2.msra.mxu0 0.0
    %2578 = vmatprep.subr.mxu0 0.0
    %2579 = vmatpush2.msra.mxu0 0.0
    %2580 = vmatprep.subr.mxu0 0.0
    %2581 = vmatpush2.msra.mxu0 0.0
    %2582 = vmatprep.subr.mxu0 0.0
    %2583 = vmatpush2.msra.mxu0 0.0
    %2584 = vmatprep.subr.mxu0 0.0
    %2585 = vmatpush2.msra.mxu0 0.0
    %2586 = vmatprep.subr.mxu0 0.0
    %2587 = vmatpush2.msra.mxu0 0.0
    %2588 = vmatprep.subr.mxu0 0.0
    %2589 = vmatpush2.msra.mxu0 0.0
    %2590 = vmatprep.subr.mxu0 0.0
    %2591 = vmatpush2.msra.mxu0 0.0
    %2592 = vmatprep.subr.mxu0 0.0
    %2593 = vmatpush2.msra.mxu0 0.0
    %2594 = vmatprep.subr.mxu0 0.0
    %2595 = vmatpush2.msra.mxu0 0.0
    %2596 = vmatprep.subr.mxu0 0.0
    %2597 = vmatpush2.msra.mxu0 0.0
    %2598 = vmatprep.subr.mxu0 0.0
    %2599 = vmatpush2.msra.mxu0 %v2409
    %2600 = vmatprep.subr.mxu0 0.0
    %2601 = vmatpush2.msra.mxu0 %v2408
    %2602 = vmatprep.mubr.f32.mxu0 %v2410
    %2603 = vmatmul.mubr.f32.gmra.mxu0 %v2328
    %v2604 = vpop.f32.mrf.mxu0
    %v2605 = vadd.f32 0.0, %v2604
    %v2606 = vpop.f32.mrf.mxu0
    %2607 = vmatprep.mubr.f32.mxu0 %v2412
    %2608 = vmatmul.mubr.f32.gmra.mxu0 %v2329
    %v2609 = vpop.f32.mrf.mxu0
    %v2610 = vadd.f32 0.0, %v2609
    %v2611 = vpop.f32.mrf.mxu0
    %2612 = vmatprep.mubr.f32.mxu0 %v2414
    %2613 = vmatmul.mubr.f32.gmra.mxu0 %v2330
    %v2614 = vpop.f32.mrf.mxu0
    %v2615 = vadd.f32 0.0, %v2614
    %v2616 = vpop.f32.mrf.mxu0
    %2617 = vmatprep.mubr.f32.mxu0 %v2416
    %2618 = vmatmul.mubr.f32.gmra.mxu0 %v2331
    %v2619 = vpop.f32.mrf.mxu0
    %v2620 = vadd.f32 0.0, %v2619
    %v2621 = vpop.f32.mrf.mxu0
    %2622 = vmatprep.mubr.f32.mxu0 %v2418
    %2623 = vmatmul.mubr.f32.gmra.mxu0 %v2332
    %v2624 = vpop.f32.mrf.mxu0
    %v2625 = vadd.f32 0.0, %v2624
    %v2626 = vpop.f32.mrf.mxu0
    %2627 = vmatprep.mubr.f32.mxu0 %v2420
    %2628 = vmatmul.mubr.f32.gmra.mxu0 %v2333
    %v2629 = vpop.f32.mrf.mxu0
    %v2630 = vadd.f32 0.0, %v2629
    %v2631 = vpop.f32.mrf.mxu0
    %2632 = vmatprep.mubr.f32.mxu0 %v2422
    %2633 = vmatmul.mubr.f32.gmra.mxu0 %v2334
    %v2634 = vpop.f32.mrf.mxu0
    %v2635 = vadd.f32 0.0, %v2634
    %v2636 = vpop.f32.mrf.mxu0
    %2637 = vmatprep.mubr.f32.mxu0 %v2424
    %2638 = vmatmul.mubr.f32.gmra.mxu0 %v2335
    %v2639 = vpop.f32.mrf.mxu0
    %v2640 = vadd.f32 0.0, %v2639
    %v2641 = vpop.f32.mrf.mxu0
    %2642 = vmatprep.mubr.f32.mxu0 %v2426
    %2643 = vmatmul.mubr.f32.gmra.mxu0 %v2336
    %v2644 = vpop.f32.mrf.mxu0
    %v2645 = vadd.f32 0.0, %v2644
    %v2646 = vpop.f32.mrf.mxu0
    %2647 = vmatprep.mubr.f32.mxu0 %v2428
    %2648 = vmatmul.mubr.f32.gmra.mxu0 %v2337
    %v2649 = vpop.f32.mrf.mxu0
    %v2650 = vadd.f32 0.0, %v2649
    %v2651 = vpop.f32.mrf.mxu0
    %2652 = vmatprep.mubr.f32.mxu0 %v2430
    %2653 = vmatmul.mubr.f32.gmra.mxu0 %v2338
    %v2654 = vpop.f32.mrf.mxu0
    %v2655 = vadd.f32 0.0, %v2654
    %v2656 = vpop.f32.mrf.mxu0
    %2657 = vmatprep.mubr.f32.mxu0 %v2432
    %2658 = vmatmul.mubr.f32.gmra.mxu0 %v2339
    %v2659 = vpop.f32.mrf.mxu0
    %v2660 = vadd.f32 0.0, %v2659
    %v2661 = vpop.f32.mrf.mxu0
    %2662 = vmatprep.mubr.f32.mxu0 %v2434
    %2663 = vmatmul.mubr.f32.gmra.mxu0 %v2340
    %v2664 = vpop.f32.mrf.mxu0
    %v2665 = vadd.f32 0.0, %v2664
    %v2666 = vpop.f32.mrf.mxu0
    %2667 = vmatprep.mubr.f32.mxu0 %v2436
    %2668 = vmatmul.mubr.f32.gmra.mxu0 %v2341
    %v2669 = vpop.f32.mrf.mxu0
    %v2670 = vadd.f32 0.0, %v2669
    %v2671 = vpop.f32.mrf.mxu0
    %2672 = vmatprep.mubr.f32.mxu0 %v2438
    %2673 = vmatmul.mubr.f32.gmra.mxu0 %v2342
    %v2674 = vpop.f32.mrf.mxu0
    %v2675 = vadd.f32 0.0, %v2674
    %v2676 = vpop.f32.mrf.mxu0
    %2677 = vmatprep.mubr.f32.mxu0 %v2440
    %2678 = vmatmul.mubr.f32.gmra.mxu0 %v2343
    %v2679 = vpop.f32.mrf.mxu0
    %v2680 = vadd.f32 0.0, %v2679
    %v2681 = vpop.f32.mrf.mxu0
    %2682 = vmatprep.mubr.f32.mxu0 %v2442
    %2683 = vmatmul.mubr.f32.gmra.mxu0 %v2344
    %v2684 = vpop.f32.mrf.mxu0
    %v2685 = vadd.f32 0.0, %v2684
    %v2686 = vpop.f32.mrf.mxu0
    %2687 = vmatprep.mubr.f32.mxu0 %v2444
    %2688 = vmatmul.mubr.f32.gmra.mxu0 %v2345
    %v2689 = vpop.f32.mrf.mxu0
    %v2690 = vadd.f32 0.0, %v2689
    %v2691 = vpop.f32.mrf.mxu0
    %2692 = vmatprep.mubr.f32.mxu0 %v2446
    %2693 = vmatmul.mubr.f32.gmra.mxu0 %v2346
    %v2694 = vpop.f32.mrf.mxu0
    %v2695 = vadd.f32 0.0, %v2694
    %v2696 = vpop.f32.mrf.mxu0
    %2697 = vmatprep.mubr.f32.mxu0 %v2448
    %2698 = vmatmul.mubr.f32.gmra.mxu0 %v2347
    %v2699 = vpop.f32.mrf.mxu0
    %v2700 = vadd.f32 0.0, %v2699
    %v2701 = vpop.f32.mrf.mxu0
    %2702 = vmatprep.mubr.f32.mxu0 %v2450
    %2703 = vmatmul.mubr.f32.gmra.mxu0 %v2348
    %v2704 = vpop.f32.mrf.mxu0
    %v2705 = vadd.f32 0.0, %v2704
    %v2706 = vpop.f32.mrf.mxu0
    %2707 = vmatprep.mubr.f32.mxu0 %v2452
    %2708 = vmatmul.mubr.f32.gmra.mxu0 %v2349
    %v2709 = vpop.f32.mrf.mxu0
    %v2710 = vadd.f32 0.0, %v2709
    %v2711 = vpop.f32.mrf.mxu0
    %2712 = vmatprep.mubr.f32.mxu0 %v2454
    %2713 = vmatmul.mubr.f32.gmra.mxu0 %v2350
    %v2714 = vpop.f32.mrf.mxu0
    %v2715 = vadd.f32 0.0, %v2714
    %v2716 = vpop.f32.mrf.mxu0
    %2717 = vmatprep.mubr.f32.mxu0 %v2456
    %2718 = vmatmul.mubr.f32.gmra.mxu0 %v2351
    %v2719 = vpop.f32.mrf.mxu0
    %v2720 = vadd.f32 0.0, %v2719
    %v2721 = vpop.f32.mrf.mxu0
    %2722 = vmatprep.mubr.f32.mxu0 %v2458
    %2723 = vmatmul.mubr.f32.gmra.mxu0 %v2352
    %v2724 = vpop.f32.mrf.mxu0
    %v2725 = vadd.f32 0.0, %v2724
    %v2726 = vpop.f32.mrf.mxu0
    %2727 = vmatprep.mubr.f32.mxu0 %v2460
    %2728 = vmatmul.mubr.f32.gmra.mxu0 %v2353
    %v2729 = vpop.f32.mrf.mxu0
    %v2730 = vadd.f32 0.0, %v2729
    %v2731 = vpop.f32.mrf.mxu0
    %2732 = vmatprep.mubr.f32.mxu0 %v2462
    %2733 = vmatmul.mubr.f32.gmra.mxu0 %v2354
    %v2734 = vpop.f32.mrf.mxu0
    %v2735 = vadd.f32 0.0, %v2734
    %v2736 = vpop.f32.mrf.mxu0
    %2737 = vmatprep.mubr.f32.mxu0 %v2464
    %2738 = vmatmul.mubr.f32.gmra.mxu0 %v2355
    %v2739 = vpop.f32.mrf.mxu0
    %v2740 = vadd.f32 0.0, %v2739
    %v2741 = vpop.f32.mrf.mxu0
    %2742 = vmatprep.mubr.f32.mxu0 %v2466
    %2743 = vmatmul.mubr.f32.gmra.mxu0 %v2356
    %v2744 = vpop.f32.mrf.mxu0
    %v2745 = vadd.f32 0.0, %v2744
    %v2746 = vpop.f32.mrf.mxu0
    %2747 = vmatprep.mubr.f32.mxu0 %v2468
    %2748 = vmatmul.mubr.f32.gmra.mxu0 %v2357
    %v2749 = vpop.f32.mrf.mxu0
    %v2750 = vadd.f32 0.0, %v2749
    %v2751 = vpop.f32.mrf.mxu0
    %2752 = vmatprep.mubr.f32.mxu0 %v2470
    %2753 = vmatmul.mubr.f32.gmra.mxu0 %v2358
    %v2754 = vpop.f32.mrf.mxu0
    %v2755 = vadd.f32 0.0, %v2754
    %v2756 = vpop.f32.mrf.mxu0
    %2757 = vmatprep.mubr.f32.mxu0 %v2472
    %2758 = vmatmul.mubr.f32.gmra.mxu0 %v2359
    %v2759 = vpop.f32.mrf.mxu0
    %v2760 = vadd.f32 0.0, %v2759
    %v2761 = vpop.f32.mrf.mxu0
    %2762 = vmatprep.mubr.f32.mxu0 %v2474
    %2763 = vmatmul.mubr.f32.gmra.mxu0 %v2360
    %v2764 = vpop.f32.mrf.mxu0
    %v2765 = vadd.f32 0.0, %v2764
    %v2766 = vpop.f32.mrf.mxu0
    %2767 = vmatprep.mubr.f32.mxu0 %v2476
    %2768 = vmatmul.mubr.f32.gmra.mxu0 %v2361
    %v2769 = vpop.f32.mrf.mxu0
    %v2770 = vadd.f32 0.0, %v2769
    %v2771 = vpop.f32.mrf.mxu0
    %2772 = vmatprep.mubr.f32.mxu0 %v2478
    %2773 = vmatmul.mubr.f32.gmra.mxu0 %v2362
    %v2774 = vpop.f32.mrf.mxu0
    %v2775 = vadd.f32 0.0, %v2774
    %v2776 = vpop.f32.mrf.mxu0
    %2777 = vmatprep.mubr.f32.mxu0 %v2480
    %2778 = vmatmul.mubr.f32.gmra.mxu0 %v2363
    %v2779 = vpop.f32.mrf.mxu0
    %v2780 = vadd.f32 0.0, %v2779
    %v2781 = vpop.f32.mrf.mxu0
    %2782 = vmatprep.mubr.f32.mxu0 %v2482
    %2783 = vmatmul.mubr.f32.gmra.mxu0 %v2364
    %v2784 = vpop.f32.mrf.mxu0
    %v2785 = vadd.f32 0.0, %v2784
    %v2786 = vpop.f32.mrf.mxu0
    %2787 = vmatprep.mubr.f32.mxu0 %v2484
    %2788 = vmatmul.mubr.f32.gmra.mxu0 %v2365
    %v2789 = vpop.f32.mrf.mxu0
    %v2790 = vadd.f32 0.0, %v2789
    %v2791 = vpop.f32.mrf.mxu0
    %2792 = vmatprep.mubr.f32.mxu0 %v2486
    %2793 = vmatmul.mubr.f32.gmra.mxu0 %v2366
    %v2794 = vpop.f32.mrf.mxu0
    %v2795 = vadd.f32 0.0, %v2794
    %v2796 = vpop.f32.mrf.mxu0
    %2797 = vmatprep.mubr.f32.mxu0 %v2488
    %2798 = vmatmul.mubr.f32.gmra.mxu0 %v2367
    %v2799 = vpop.f32.mrf.mxu0
    %v2800 = vadd.f32 0.0, %v2799
    %v2801 = vpop.f32.mrf.mxu0
    %2802 = vmatprep.mubr.f32.mxu0 %v2490
    %2803 = vmatmul.mubr.f32.gmra.mxu0 %v2368
    %v2804 = vpop.f32.mrf.mxu0
    %v2805 = vadd.f32 0.0, %v2804
    %v2806 = vpop.f32.mrf.mxu0
    %2807 = vmatprep.mubr.f32.mxu0 %v2492
    %2808 = vmatmul.mubr.f32.gmra.mxu0 %v2369
    %v2809 = vpop.f32.mrf.mxu0
    %v2810 = vadd.f32 0.0, %v2809
    %v2811 = vpop.f32.mrf.mxu0
    %2812 = vmatprep.mubr.f32.mxu0 %v2494
    %2813 = vmatmul.mubr.f32.gmra.mxu0 %v2370
    %v2814 = vpop.f32.mrf.mxu0
    %v2815 = vadd.f32 0.0, %v2814
    %v2816 = vpop.f32.mrf.mxu0
    %2817 = vmatprep.mubr.f32.mxu0 %v2496
    %2818 = vmatmul.mubr.f32.gmra.mxu0 %v2371
    %v2819 = vpop.f32.mrf.mxu0
    %v2820 = vadd.f32 0.0, %v2819
    %v2821 = vpop.f32.mrf.mxu0
    %2822 = vmatprep.mubr.f32.mxu0 %v2498
    %2823 = vmatmul.mubr.f32.gmra.mxu0 %v2372
    %v2824 = vpop.f32.mrf.mxu0
    %v2825 = vadd.f32 0.0, %v2824
    %v2826 = vpop.f32.mrf.mxu0
    %2827 = vmatprep.mubr.f32.mxu0 %v2500
    %2828 = vmatmul.mubr.f32.gmra.mxu0 %v2373
    %v2829 = vpop.f32.mrf.mxu0
    %v2830 = vadd.f32 0.0, %v2829
    %v2831 = vpop.f32.mrf.mxu0
    %2832 = vmatprep.mubr.f32.mxu0 %v2502
    %2833 = vmatmul.mubr.f32.gmra.mxu0 %v2374
    %v2834 = vpop.f32.mrf.mxu0
    %v2835 = vadd.f32 0.0, %v2834
    %v2836 = vpop.f32.mrf.mxu0
    %2837 = vmatprep.mubr.f32.mxu0 %v2504
    %2838 = vmatmul.mubr.f32.gmra.mxu0 %v2375
    %v2839 = vpop.f32.mrf.mxu0
    %v2840 = vadd.f32 0.0, %v2839
    %v2841 = vpop.f32.mrf.mxu0
    %2842 = vmatprep.mubr.f32.mxu0 %v2506
    %2843 = vmatmul.mubr.f32.gmra.mxu0 %v2376
    %v2844 = vpop.f32.mrf.mxu0
    %v2845 = vadd.f32 0.0, %v2844
    %v2846 = vpop.f32.mrf.mxu0
    %2847 = vmatprep.mubr.f32.mxu0 %v2508
    %2848 = vmatmul.mubr.f32.gmra.mxu0 %v2377
    %v2849 = vpop.f32.mrf.mxu0
    %v2850 = vadd.f32 0.0, %v2849
    %v2851 = vpop.f32.mrf.mxu0
    %2852 = vmatprep.mubr.f32.mxu0 %v2510
    %2853 = vmatmul.mubr.f32.gmra.mxu0 %v2378
    %v2854 = vpop.f32.mrf.mxu0
    %v2855 = vadd.f32 0.0, %v2854
    %v2856 = vpop.f32.mrf.mxu0
    %2857 = vmatprep.mubr.f32.mxu0 %v2512
    %2858 = vmatmul.mubr.f32.gmra.mxu0 %v2379
    %v2859 = vpop.f32.mrf.mxu0
    %v2860 = vadd.f32 0.0, %v2859
    %v2861 = vpop.f32.mrf.mxu0
    %2862 = vmatprep.mubr.f32.mxu0 %v2514
    %2863 = vmatmul.mubr.f32.gmra.mxu0 %v2380
    %v2864 = vpop.f32.mrf.mxu0
    %v2865 = vadd.f32 0.0, %v2864
    %v2866 = vpop.f32.mrf.mxu0
    %2867 = vmatprep.mubr.f32.mxu0 %v2516
    %2868 = vmatmul.mubr.f32.gmra.mxu0 %v2381
    %v2869 = vpop.f32.mrf.mxu0
    %v2870 = vadd.f32 0.0, %v2869
    %v2871 = vpop.f32.mrf.mxu0
    %2872 = vmatprep.mubr.f32.mxu0 %v2518
    %2873 = vmatmul.mubr.f32.gmra.mxu0 %v2382
    %v2874 = vpop.f32.mrf.mxu0
    %v2875 = vadd.f32 0.0, %v2874
    %v2876 = vpop.f32.mrf.mxu0
    %2877 = vmatprep.mubr.f32.mxu0 %v2520
    %2878 = vmatmul.mubr.f32.gmra.mxu0 %v2383
    %v2879 = vpop.f32.mrf.mxu0
    %v2880 = vadd.f32 0.0, %v2879
    %v2881 = vpop.f32.mrf.mxu0
    %2882 = vmatprep.mubr.f32.mxu0 %v2522
    %2883 = vmatmul.mubr.f32.gmra.mxu0 %v2384
    %v2884 = vpop.f32.mrf.mxu0
    %v2885 = vadd.f32 0.0, %v2884
    %v2886 = vpop.f32.mrf.mxu0
    %2887 = vmatprep.mubr.f32.mxu0 %v2524
    %2888 = vmatmul.mubr.f32.gmra.mxu0 %v2385
    %v2889 = vpop.f32.mrf.mxu0
    %v2890 = vadd.f32 0.0, %v2889
    %v2891 = vpop.f32.mrf.mxu0
    %2892 = vmatprep.mubr.f32.mxu0 %v2526
    %2893 = vmatmul.mubr.f32.gmra.mxu0 %v2386
    %v2894 = vpop.f32.mrf.mxu0
    %v2895 = vadd.f32 0.0, %v2894
    %v2896 = vpop.f32.mrf.mxu0
    %2897 = vmatprep.mubr.f32.mxu0 %v2528
    %2898 = vmatmul.mubr.f32.gmra.mxu0 %v2387
    %v2899 = vpop.f32.mrf.mxu0
    %v2900 = vadd.f32 0.0, %v2899
    %v2901 = vpop.f32.mrf.mxu0
    %2902 = vmatprep.mubr.f32.mxu0 %v2530
    %2903 = vmatmul.mubr.f32.gmra.mxu0 %v2388
    %v2904 = vpop.f32.mrf.mxu0
    %v2905 = vadd.f32 0.0, %v2904
    %v2906 = vpop.f32.mrf.mxu0
    %2907 = vmatprep.mubr.f32.mxu0 %v2532
    %2908 = vmatmul.mubr.f32.gmra.mxu0 %v2389
    %v2909 = vpop.f32.mrf.mxu0
    %v2910 = vadd.f32 0.0, %v2909
    %v2911 = vpop.f32.mrf.mxu0
    %2912 = vmatprep.mubr.f32.mxu0 %v2534
    %2913 = vmatmul.mubr.f32.gmra.mxu0 %v2390
    %v2914 = vpop.f32.mrf.mxu0
    %v2915 = vadd.f32 0.0, %v2914
    %v2916 = vpop.f32.mrf.mxu0
    %2917 = vmatprep.mubr.f32.mxu0 %v2536
    %2918 = vmatmul.mubr.f32.gmra.mxu0 %v2391
    %v2919 = vpop.f32.mrf.mxu0
    %v2920 = vadd.f32 0.0, %v2919
    %v2921 = vpop.f32.mrf.mxu0
    %2922 = vdwg.mxu0
    %2923 = vst.msk [vmem:[#allocation2] sm:$0xff] %vm1937, 0.0
    %2924 = vst.msk [vmem:[#allocation2 + $0x8] sm:$0xff] %vm1937, 0.0
    %vm2925 = vcmask 123904
    %2926 = vst.msk [vmem:[#allocation2 + $0x10] sm:$0x3] %vm2925, 0.0
    %2927 = vst.msk [vmem:[#allocation2 + $0x18] sm:$0xff] %vm1937, 0.0
    %2928 = vst.msk [vmem:[#allocation2 + $0x20] sm:$0xff] %vm1937, 0.0
    %2929 = vst.msk [vmem:[#allocation2 + $0x28] sm:$0x3] %vm2925, 0.0
    %2930 = vst.msk [vmem:[#allocation2 + $0x30] sm:$0xff] %vm1937, 0.0
    %2931 = vst.msk [vmem:[#allocation2 + $0x38] sm:$0xff] %vm1937, 0.0
    %2932 = vst.msk [vmem:[#allocation2 + $0x40] sm:$0x3] %vm2925, 0.0
    %2933 = vst.msk [vmem:[#allocation2 + $0x48] sm:$0xff] %vm1937, 0.0
    %2934 = vst.msk [vmem:[#allocation2 + $0x50] sm:$0xff] %vm1937, 0.0
    %2935 = vst.msk [vmem:[#allocation2 + $0x58] sm:$0x3] %vm2925, 0.0
    %2936 = vst.msk [vmem:[#allocation2 + $0x60] sm:$0xff] %vm1937, 0.0
    %2937 = vst.msk [vmem:[#allocation2 + $0x68] sm:$0xff] %vm1937, 0.0
    %2938 = vst.msk [vmem:[#allocation2 + $0x70] sm:$0x3] %vm2925, 0.0
    %2939 = vst.msk [vmem:[#allocation2 + $0x78] sm:$0xff] %vm1937, 0.0
    %2940 = vst.msk [vmem:[#allocation2 + $0x80] sm:$0xff] %vm1937, 0.0
    %2941 = vst.msk [vmem:[#allocation2 + $0x88] sm:$0x3] %vm2925, 0.0
    %2942 = vst.msk [vmem:[#allocation2 + $0x90] sm:$0xff] %vm1937, 0.0
    %2943 = vst.msk [vmem:[#allocation2 + $0x98] sm:$0xff] %vm1937, 0.0
    %2944 = vst.msk [vmem:[#allocation2 + $0xa0] sm:$0x3] %vm2925, 0.0
    %2945 = vst.msk [vmem:[#allocation2 + $0xa8] sm:$0xff] %vm1937, 0.0
    %2946 = vst.msk [vmem:[#allocation2 + $0xb0] sm:$0xff] %vm1937, 0.0
    %2947 = vst.msk [vmem:[#allocation2 + $0xb8] sm:$0x3] %vm2925, 0.0
    %2948 = vst.msk [vmem:[#allocation2 + $0xc0] sm:$0xff] %vm1937, 0.0
    %2949 = vst.msk [vmem:[#allocation2 + $0xc8] sm:$0xff] %vm1937, 0.0
    %2950 = vst.msk [vmem:[#allocation2 + $0xd0] sm:$0x3] %vm2925, 0.0
    %2951 = vst.msk [vmem:[#allocation2 + $0xd8] sm:$0xff] %vm1937, 0.0
    %2952 = vst.msk [vmem:[#allocation2 + $0xe0] sm:$0xff] %vm1937, 0.0
    %2953 = vst.msk [vmem:[#allocation2 + $0xe8] sm:$0x3] %vm2925, 0.0
    %2954 = vst.msk [vmem:[#allocation2 + $0xf0] sm:$0xff] %vm1937, 0.0
    %2955 = vst.msk [vmem:[#allocation2 + $0xf8] sm:$0xff] %vm1937, 0.0
    %2956 = vst.msk [vmem:[#allocation2 + $0x100] sm:$0x3] %vm2925, 0.0
    %2957 = vst.msk [vmem:[#allocation2 + $0x108] sm:$0xff] %vm1937, 0.0
    %2958 = vst.msk [vmem:[#allocation2 + $0x110] sm:$0xff] %vm1937, 0.0
    %2959 = vst.msk [vmem:[#allocation2 + $0x118] sm:$0x3] %vm2925, 0.0
    %2960 = vst.msk [vmem:[#allocation2 + $0x120] sm:$0xff] %vm1937, 0.0
    %2961 = vst.msk [vmem:[#allocation2 + $0x128] sm:$0xff] %vm1937, 0.0
    %2962 = vst.msk [vmem:[#allocation2 + $0x130] sm:$0x3] %vm2925, 0.0
    %2963 = vst.msk [vmem:[#allocation2 + $0x138] sm:$0xff] %vm1937, 0.0
    %2964 = vst.msk [vmem:[#allocation2 + $0x140] sm:$0xff] %vm1937, 0.0
    %2965 = vst.msk [vmem:[#allocation2 + $0x148] sm:$0x3] %vm2925, 0.0
    %2966 = vst.msk [vmem:[#allocation2 + $0x150] sm:$0xff] %vm1937, 0.0
    %2967 = vst.msk [vmem:[#allocation2 + $0x158] sm:$0xff] %vm1937, 0.0
    %2968 = vst.msk [vmem:[#allocation2 + $0x160] sm:$0x3] %vm2925, 0.0
    %2969 = vst.msk [vmem:[#allocation2 + $0x168] sm:$0xff] %vm1937, 0.0
    %2970 = vst.msk [vmem:[#allocation2 + $0x170] sm:$0xff] %vm1937, 0.0
    %2971 = vst.msk [vmem:[#allocation2 + $0x178] sm:$0x3] %vm2925, 0.0
    %2972 = vst.msk [vmem:[#allocation2 + $0x180] sm:$0xff] %vm1937, 0.0
    %2973 = vst.msk [vmem:[#allocation2 + $0x188] sm:$0xff] %vm1937, 0.0
    %2974 = vst.msk [vmem:[#allocation2 + $0x190] sm:$0x3] %vm2925, 0.0
    %2975 = vst.msk [vmem:[#allocation2 + $0x198] sm:$0xff] %vm1937, 0.0
    %2976 = vst.msk [vmem:[#allocation2 + $0x1a0] sm:$0xff] %vm1937, 0.0
    %2977 = vst.msk [vmem:[#allocation2 + $0x1a8] sm:$0x3] %vm2925, 0.0
    %2978 = vst.msk [vmem:[#allocation2 + $0x1b0] sm:$0xff] %vm1937, 0.0
    %2979 = vst.msk [vmem:[#allocation2 + $0x1b8] sm:$0xff] %vm1937, 0.0
    %2980 = vst.msk [vmem:[#allocation2 + $0x1c0] sm:$0x3] %vm2925, 0.0
    %2981 = vst.msk [vmem:[#allocation2 + $0x1c8] sm:$0xff] %vm1937, 0.0
    %2982 = vst.msk [vmem:[#allocation2 + $0x1d0] sm:$0xff] %vm1937, 0.0
    %2983 = vst.msk [vmem:[#allocation2 + $0x1d8] sm:$0x3] %vm2925, 0.0
    %2984 = vst.msk [vmem:[#allocation2 + $0x1e0] sm:$0xff] %vm1937, 0.0
    %2985 = vst.msk [vmem:[#allocation2 + $0x1e8] sm:$0xff] %vm1937, 0.0
    %2986 = vst.msk [vmem:[#allocation2 + $0x1f0] sm:$0x3] %vm2925, 0.0
    %2987 = vst.msk [vmem:[#allocation2 + $0x1f8] sm:$0xff] %vm1937, 0.0
    %2988 = vst.msk [vmem:[#allocation2 + $0x200] sm:$0xff] %vm1937, 0.0
    %2989 = vst.msk [vmem:[#allocation2 + $0x208] sm:$0x3] %vm2925, 0.0
    %2990 = vst.msk [vmem:[#allocation2 + $0x210] sm:$0xff] %vm1937, 0.0
    %2991 = vst.msk [vmem:[#allocation2 + $0x218] sm:$0xff] %vm1937, 0.0
    %2992 = vst.msk [vmem:[#allocation2 + $0x220] sm:$0x3] %vm2925, 0.0
    %2993 = vst.msk [vmem:[#allocation2 + $0x228] sm:$0xff] %vm1937, 0.0
    %2994 = vst.msk [vmem:[#allocation2 + $0x230] sm:$0xff] %vm1937, 0.0
    %2995 = vst.msk [vmem:[#allocation2 + $0x238] sm:$0x3] %vm2925, 0.0
    %2996 = vst.msk [vmem:[#allocation2 + $0x240] sm:$0xff] %vm1937, 0.0
    %2997 = vst.msk [vmem:[#allocation2 + $0x248] sm:$0xff] %vm1937, 0.0
    %2998 = vst.msk [vmem:[#allocation2 + $0x250] sm:$0x3] %vm2925, 0.0
    %2999 = vst.msk [vmem:[#allocation2 + $0x258] sm:$0xff] %vm1937, 0.0
    %3000 = vst.msk [vmem:[#allocation2 + $0x260] sm:$0xff] %vm1937, 0.0
    %3001 = vst.msk [vmem:[#allocation2 + $0x268] sm:$0x3] %vm2925, 0.0
    %3002 = vst.msk [vmem:[#allocation2 + $0x270] sm:$0xff] %vm1937, 0.0
    %3003 = vst.msk [vmem:[#allocation2 + $0x278] sm:$0xff] %vm1937, 0.0
    %3004 = vst.msk [vmem:[#allocation2 + $0x280] sm:$0x3] %vm2925, 0.0
    %3005 = vst.msk [vmem:[#allocation2 + $0x288] sm:$0xff] %vm1937, 0.0
    %3006 = vst.msk [vmem:[#allocation2 + $0x290] sm:$0xff] %vm1937, 0.0
    %3007 = vst.msk [vmem:[#allocation2 + $0x298] sm:$0x3] %vm2925, 0.0
    %3008 = vst.msk [vmem:[#allocation2 + $0x2a0] sm:$0xff] %vm1937, 0.0
    %3009 = vst.msk [vmem:[#allocation2 + $0x2a8] sm:$0xff] %vm1937, 0.0
    %3010 = vst.msk [vmem:[#allocation2 + $0x2b0] sm:$0x3] %vm2925, 0.0
    %3011 = vst.msk [vmem:[#allocation2 + $0x2b8] sm:$0xff] %vm1937, 0.0
    %3012 = vst.msk [vmem:[#allocation2 + $0x2c0] sm:$0xff] %vm1937, 0.0
    %3013 = vst.msk [vmem:[#allocation2 + $0x2c8] sm:$0x3] %vm2925, 0.0
    %3014 = vst.msk [vmem:[#allocation2 + $0x2d0] sm:$0xff] %vm1937, 0.0
    %3015 = vst.msk [vmem:[#allocation2 + $0x2d8] sm:$0xff] %vm1937, 0.0
    %3016 = vst.msk [vmem:[#allocation2 + $0x2e0] sm:$0x3] %vm2925, 0.0
    %3017 = vst.msk [vmem:[#allocation2 + $0x2e8] sm:$0xff] %vm1937, 0.0
    %3018 = vst.msk [vmem:[#allocation2 + $0x2f0] sm:$0xff] %vm1937, 0.0
    %3019 = vst.msk [vmem:[#allocation2 + $0x2f8] sm:$0x3] %vm2925, 0.0
    %3020 = vst.msk [vmem:[#allocation2 + $0x300] sm:$0xff] %vm1937, 0.0
    %3021 = vst.msk [vmem:[#allocation2 + $0x308] sm:$0xff] %vm1937, 0.0
    %3022 = vst.msk [vmem:[#allocation2 + $0x310] sm:$0x3] %vm2925, 0.0
    %3023 = vst.msk [vmem:[#allocation2 + $0x318] sm:$0xff] %vm1937, 0.0
    %3024 = vst.msk [vmem:[#allocation2 + $0x320] sm:$0xff] %vm1937, 0.0
    %3025 = vst.msk [vmem:[#allocation2 + $0x328] sm:$0x3] %vm2925, 0.0
    %3026 = vst.msk [vmem:[#allocation2 + $0x330] sm:$0xff] %vm1937, 0.0
    %3027 = vst.msk [vmem:[#allocation2 + $0x338] sm:$0xff] %vm1937, 0.0
    %3028 = vst.msk [vmem:[#allocation2 + $0x340] sm:$0x3] %vm2925, 0.0
    %3029 = vst.msk [vmem:[#allocation2 + $0x348] sm:$0xff] %vm1937, 0.0
    %3030 = vst.msk [vmem:[#allocation2 + $0x350] sm:$0xff] %vm1937, 0.0
    %3031 = vst.msk [vmem:[#allocation2 + $0x358] sm:$0x3] %vm2925, 0.0
    %v3032 = vtanh.pop %v2605
    %v3033 = vtanh.pop %v2610
    %v3034 = vtanh.pop %v2615
    %v3035 = vtanh.pop %v2620
    %v3036 = vtanh.pop %v2625
    %v3037 = vtanh.pop %v2630
    %v3038 = vtanh.pop %v2635
    %v3039 = vtanh.pop %v2640
    %v3040 = vtanh.pop %v2645
    %v3041 = vtanh.pop %v2650
    %v3042 = vtanh.pop %v2655
    %v3043 = vtanh.pop %v2660
    %v3044 = vtanh.pop %v2665
    %v3045 = vtanh.pop %v2670
    %v3046 = vtanh.pop %v2675
    %v3047 = vtanh.pop %v2680
    %v3048 = vtanh.pop %v2685
    %v3049 = vtanh.pop %v2690
    %v3050 = vtanh.pop %v2695
    %v3051 = vtanh.pop %v2700
    %v3052 = vtanh.pop %v2705
    %v3053 = vtanh.pop %v2710
    %v3054 = vtanh.pop %v2715
    %v3055 = vtanh.pop %v2720
    %v3056 = vtanh.pop %v2725
    %v3057 = vtanh.pop %v2730
    %v3058 = vtanh.pop %v2735
    %v3059 = vtanh.pop %v2740
    %v3060 = vtanh.pop %v2745
    %v3061 = vtanh.pop %v2750
    %v3062 = vtanh.pop %v2755
    %v3063 = vtanh.pop %v2760
    %v3064 = vtanh.pop %v2765
    %v3065 = vtanh.pop %v2770
    %v3066 = vtanh.pop %v2775
    %v3067 = vtanh.pop %v2780
    %v3068 = vtanh.pop %v2785
    %v3069 = vtanh.pop %v2790
    %v3070 = vtanh.pop %v2795
    %v3071 = vtanh.pop %v2800
    %v3072 = vtanh.pop %v2805
    %v3073 = vtanh.pop %v2810
    %v3074 = vtanh.pop %v2815
    %v3075 = vtanh.pop %v2820
    %v3076 = vtanh.pop %v2825
    %v3077 = vtanh.pop %v2830
    %v3078 = vtanh.pop %v2835
    %v3079 = vtanh.pop %v2840
    %v3080 = vtanh.pop %v2845
    %v3081 = vtanh.pop %v2850
    %v3082 = vtanh.pop %v2855
    %v3083 = vtanh.pop %v2860
    %v3084 = vtanh.pop %v2865
    %v3085 = vtanh.pop %v2870
    %v3086 = vtanh.pop %v2875
    %v3087 = vtanh.pop %v2880
    %v3088 = vtanh.pop %v2885
    %v3089 = vtanh.pop %v2890
    %v3090 = vtanh.pop %v2895
    %v3091 = vtanh.pop %v2900
    %v3092 = vtanh.pop %v2905
    %v3093 = vtanh.pop %v2910
    %v3094 = vtanh.pop %v2915
    %v3095 = vtanh.pop %v2920
    %s3096 = scalar_lea.vmem [#allocation2], 24
    %3097 = vst.msk [vmem:[%s3096 + $0x1] sm:$0xff] %vm1937, %v3032
    %3098 = vst.msk [vmem:[%s3096 + $0x9] sm:$0xff] %vm1937, %v3033
    %3099 = vst.msk [vmem:[%s3096 + $0x19] sm:$0xff] %vm1937, %v3034
    %3100 = vst.msk [vmem:[%s3096 + $0x21] sm:$0xff] %vm1937, %v3035
    %3101 = vst.msk [vmem:[%s3096 + $0x31] sm:$0xff] %vm1937, %v3036
    %3102 = vst.msk [vmem:[%s3096 + $0x39] sm:$0xff] %vm1937, %v3037
    %3103 = vst.msk [vmem:[%s3096 + $0x49] sm:$0xff] %vm1937, %v3038
    %3104 = vst.msk [vmem:[%s3096 + $0x51] sm:$0xff] %vm1937, %v3039
    %3105 = vst.msk [vmem:[%s3096 + $0x61] sm:$0xff] %vm1937, %v3040
    %3106 = vst.msk [vmem:[%s3096 + $0x69] sm:$0xff] %vm1937, %v3041
    %3107 = vst.msk [vmem:[%s3096 + $0x79] sm:$0xff] %vm1937, %v3042
    %3108 = vst.msk [vmem:[%s3096 + $0x81] sm:$0xff] %vm1937, %v3043
    %3109 = vst.msk [vmem:[%s3096 + $0x91] sm:$0xff] %vm1937, %v3044
    %3110 = vst.msk [vmem:[%s3096 + $0x99] sm:$0xff] %vm1937, %v3045
    %3111 = vst.msk [vmem:[%s3096 + $0xa9] sm:$0xff] %vm1937, %v3046
    %3112 = vst.msk [vmem:[%s3096 + $0xb1] sm:$0xff] %vm1937, %v3047
    %3113 = vst.msk [vmem:[%s3096 + $0xc1] sm:$0xff] %vm1937, %v3048
    %3114 = vst.msk [vmem:[%s3096 + $0xc9] sm:$0xff] %vm1937, %v3049
    %3115 = vst.msk [vmem:[%s3096 + $0xd9] sm:$0xff] %vm1937, %v3050
    %3116 = vst.msk [vmem:[%s3096 + $0xe1] sm:$0xff] %vm1937, %v3051
    %3117 = vst.msk [vmem:[%s3096 + $0xf1] sm:$0xff] %vm1937, %v3052
    %3118 = vst.msk [vmem:[%s3096 + $0xf9] sm:$0xff] %vm1937, %v3053
    %3119 = vst.msk [vmem:[%s3096 + $0x109] sm:$0xff] %vm1937, %v3054
    %3120 = vst.msk [vmem:[%s3096 + $0x111] sm:$0xff] %vm1937, %v3055
    %3121 = vst.msk [vmem:[%s3096 + $0x121] sm:$0xff] %vm1937, %v3056
    %3122 = vst.msk [vmem:[%s3096 + $0x129] sm:$0xff] %vm1937, %v3057
    %3123 = vst.msk [vmem:[%s3096 + $0x139] sm:$0xff] %vm1937, %v3058
    %3124 = vst.msk [vmem:[%s3096 + $0x141] sm:$0xff] %vm1937, %v3059
    %3125 = vst.msk [vmem:[%s3096 + $0x151] sm:$0xff] %vm1937, %v3060
    %3126 = vst.msk [vmem:[%s3096 + $0x159] sm:$0xff] %vm1937, %v3061
    %3127 = vst.msk [vmem:[%s3096 + $0x169] sm:$0xff] %vm1937, %v3062
    %3128 = vst.msk [vmem:[%s3096 + $0x171] sm:$0xff] %vm1937, %v3063
    %3129 = vst.msk [vmem:[%s3096 + $0x1b1] sm:$0xff] %vm1937, %v3064
    %3130 = vst.msk [vmem:[%s3096 + $0x1b9] sm:$0xff] %vm1937, %v3065
    %3131 = vst.msk [vmem:[%s3096 + $0x1c9] sm:$0xff] %vm1937, %v3066
    %3132 = vst.msk [vmem:[%s3096 + $0x1d1] sm:$0xff] %vm1937, %v3067
    %3133 = vst.msk [vmem:[%s3096 + $0x1e1] sm:$0xff] %vm1937, %v3068
    %3134 = vst.msk [vmem:[%s3096 + $0x1e9] sm:$0xff] %vm1937, %v3069
    %3135 = vst.msk [vmem:[%s3096 + $0x1f9] sm:$0xff] %vm1937, %v3070
    %3136 = vst.msk [vmem:[%s3096 + $0x201] sm:$0xff] %vm1937, %v3071
    %3137 = vst.msk [vmem:[%s3096 + $0x211] sm:$0xff] %vm1937, %v3072
    %3138 = vst.msk [vmem:[%s3096 + $0x219] sm:$0xff] %vm1937, %v3073
    %3139 = vst.msk [vmem:[%s3096 + $0x229] sm:$0xff] %vm1937, %v3074
    %3140 = vst.msk [vmem:[%s3096 + $0x231] sm:$0xff] %vm1937, %v3075
    %3141 = vst.msk [vmem:[%s3096 + $0x241] sm:$0xff] %vm1937, %v3076
    %3142 = vst.msk [vmem:[%s3096 + $0x249] sm:$0xff] %vm1937, %v3077
    %3143 = vst.msk [vmem:[%s3096 + $0x259] sm:$0xff] %vm1937, %v3078
    %3144 = vst.msk [vmem:[%s3096 + $0x261] sm:$0xff] %vm1937, %v3079
    %3145 = vst.msk [vmem:[%s3096 + $0x271] sm:$0xff] %vm1937, %v3080
    %3146 = vst.msk [vmem:[%s3096 + $0x279] sm:$0xff] %vm1937, %v3081
    %3147 = vst.msk [vmem:[%s3096 + $0x289] sm:$0xff] %vm1937, %v3082
    %3148 = vst.msk [vmem:[%s3096 + $0x291] sm:$0xff] %vm1937, %v3083
    %3149 = vst.msk [vmem:[%s3096 + $0x2a1] sm:$0xff] %vm1937, %v3084
    %3150 = vst.msk [vmem:[%s3096 + $0x2a9] sm:$0xff] %vm1937, %v3085
    %3151 = vst.msk [vmem:[%s3096 + $0x2b9] sm:$0xff] %vm1937, %v3086
    %3152 = vst.msk [vmem:[%s3096 + $0x2c1] sm:$0xff] %vm1937, %v3087
    %3153 = vst.msk [vmem:[%s3096 + $0x2d1] sm:$0xff] %vm1937, %v3088
    %3154 = vst.msk [vmem:[%s3096 + $0x2d9] sm:$0xff] %vm1937, %v3089
    %3155 = vst.msk [vmem:[%s3096 + $0x2e9] sm:$0xff] %vm1937, %v3090
    %3156 = vst.msk [vmem:[%s3096 + $0x2f1] sm:$0xff] %vm1937, %v3091
    %3157 = vst.msk [vmem:[%s3096 + $0x301] sm:$0xff] %vm1937, %v3092
    %3158 = vst.msk [vmem:[%s3096 + $0x309] sm:$0xff] %vm1937, %v3093
    %3159 = vst.msk [vmem:[%s3096 + $0x319] sm:$0xff] %vm1937, %v3094
    %3160 = vst.msk [vmem:[%s3096 + $0x321] sm:$0xff] %vm1937, %v3095
    %v3161 = vld [vmem:[#allocation2] sm:$0xff]
    %v3162 = vld [vmem:[#allocation2 + $0x8] sm:$0xff]
    %v3163 = vld [vmem:[#allocation2 + $0x10] sm:$0x3]
    %v3164 = vld [vmem:[#allocation2 + $0x18] sm:$0xff]
    %v3165 = vld [vmem:[#allocation2 + $0x20] sm:$0xff]
    %v3166 = vld [vmem:[#allocation2 + $0x28] sm:$0x3]
    %v3167 = vld [vmem:[#allocation2 + $0x30] sm:$0xff]
    %v3168 = vld [vmem:[#allocation2 + $0x38] sm:$0xff]
    %v3169 = vld [vmem:[#allocation2 + $0x40] sm:$0x3]
    %v3170 = vld [vmem:[#allocation2 + $0x48] sm:$0xff]
    %v3171 = vld [vmem:[#allocation2 + $0x50] sm:$0xff]
    %v3172 = vld [vmem:[#allocation2 + $0x58] sm:$0x3]
    %v3173 = vld [vmem:[#allocation2 + $0x60] sm:$0xff]
    %v3174 = vld [vmem:[#allocation2 + $0x68] sm:$0xff]
    %v3175 = vld [vmem:[#allocation2 + $0x70] sm:$0x3]
    %v3176 = vld [vmem:[#allocation2 + $0x78] sm:$0xff]
    %v3177 = vld [vmem:[#allocation2 + $0x80] sm:$0xff]
    %v3178 = vld [vmem:[#allocation2 + $0x88] sm:$0x3]
    %v3179 = vld [vmem:[#allocation2 + $0x90] sm:$0xff]
    %v3180 = vld [vmem:[#allocation2 + $0x98] sm:$0xff]
    %v3181 = vld [vmem:[#allocation2 + $0xa0] sm:$0x3]
    %v3182 = vld [vmem:[#allocation2 + $0xa8] sm:$0xff]
    %v3183 = vld [vmem:[#allocation2 + $0xb0] sm:$0xff]
    %v3184 = vld [vmem:[#allocation2 + $0xb8] sm:$0x3]
    %v3185 = vld [vmem:[#allocation2 + $0xc0] sm:$0xff]
    %v3186 = vld [vmem:[#allocation2 + $0xc8] sm:$0xff]
    %v3187 = vld [vmem:[#allocation2 + $0xd0] sm:$0x3]
    %v3188 = vld [vmem:[#allocation2 + $0xd8] sm:$0xff]
    %v3189 = vld [vmem:[#allocation2 + $0xe0] sm:$0xff]
    %v3190 = vld [vmem:[#allocation2 + $0xe8] sm:$0x3]
    %v3191 = vld [vmem:[#allocation2 + $0xf0] sm:$0xff]
    %v3192 = vld [vmem:[#allocation2 + $0xf8] sm:$0xff]
    %v3193 = vld [vmem:[#allocation2 + $0x100] sm:$0x3]
    %v3194 = vld [vmem:[#allocation2 + $0x108] sm:$0xff]
    %v3195 = vld [vmem:[#allocation2 + $0x110] sm:$0xff]
    %v3196 = vld [vmem:[#allocation2 + $0x118] sm:$0x3]
    %v3197 = vld [vmem:[#allocation2 + $0x120] sm:$0xff]
    %v3198 = vld [vmem:[#allocation2 + $0x128] sm:$0xff]
    %v3199 = vld [vmem:[#allocation2 + $0x130] sm:$0x3]
    %v3200 = vld [vmem:[#allocation2 + $0x138] sm:$0xff]
    %v3201 = vld [vmem:[#allocation2 + $0x140] sm:$0xff]
    %v3202 = vld [vmem:[#allocation2 + $0x148] sm:$0x3]
    %v3203 = vld [vmem:[#allocation2 + $0x150] sm:$0xff]
    %v3204 = vld [vmem:[#allocation2 + $0x158] sm:$0xff]
    %v3205 = vld [vmem:[#allocation2 + $0x160] sm:$0x3]
    %v3206 = vld [vmem:[#allocation2 + $0x168] sm:$0xff]
    %v3207 = vld [vmem:[#allocation2 + $0x170] sm:$0xff]
    %v3208 = vld [vmem:[#allocation2 + $0x178] sm:$0x3]
    %v3209 = vld [vmem:[#allocation2 + $0x180] sm:$0xff]
    %v3210 = vld [vmem:[#allocation2 + $0x188] sm:$0xff]
    %v3211 = vld [vmem:[#allocation2 + $0x190] sm:$0x3]
    %v3212 = vld [vmem:[#allocation2 + $0x198] sm:$0xff]
    %v3213 = vld [vmem:[#allocation2 + $0x1a0] sm:$0xff]
    %v3214 = vld [vmem:[#allocation2 + $0x1a8] sm:$0x3]
    %v3215 = vld [vmem:[#allocation2 + $0x1b0] sm:$0xff]
    %v3216 = vld [vmem:[#allocation2 + $0x1b8] sm:$0xff]
    %v3217 = vld [vmem:[#allocation2 + $0x1c0] sm:$0x3]
    %v3218 = vld [vmem:[#allocation2 + $0x1c8] sm:$0xff]
    %v3219 = vld [vmem:[#allocation2 + $0x1d0] sm:$0xff]
    %v3220 = vld [vmem:[#allocation2 + $0x1d8] sm:$0x3]
    %v3221 = vld [vmem:[#allocation2 + $0x1e0] sm:$0xff]
    %v3222 = vld [vmem:[#allocation2 + $0x1e8] sm:$0xff]
    %v3223 = vld [vmem:[#allocation2 + $0x1f0] sm:$0x3]
    %v3224 = vld [vmem:[#allocation2 + $0x1f8] sm:$0xff]
    %v3225 = vld [vmem:[#allocation2 + $0x200] sm:$0xff]
    %v3226 = vld [vmem:[#allocation2 + $0x208] sm:$0x3]
    %v3227 = vld [vmem:[#allocation2 + $0x210] sm:$0xff]
    %v3228 = vld [vmem:[#allocation2 + $0x218] sm:$0xff]
    %v3229 = vld [vmem:[#allocation2 + $0x220] sm:$0x3]
    %v3230 = vld [vmem:[#allocation2 + $0x228] sm:$0xff]
    %v3231 = vld [vmem:[#allocation2 + $0x230] sm:$0xff]
    %v3232 = vld [vmem:[#allocation2 + $0x238] sm:$0x3]
    %v3233 = vld [vmem:[#allocation2 + $0x240] sm:$0xff]
    %v3234 = vld [vmem:[#allocation2 + $0x248] sm:$0xff]
    %v3235 = vld [vmem:[#allocation2 + $0x250] sm:$0x3]
    %v3236 = vld [vmem:[#allocation2 + $0x258] sm:$0xff]
    %v3237 = vld [vmem:[#allocation2 + $0x260] sm:$0xff]
    %v3238 = vld [vmem:[#allocation2 + $0x268] sm:$0x3]
    %v3239 = vld [vmem:[#allocation2 + $0x270] sm:$0xff]
    %v3240 = vld [vmem:[#allocation2 + $0x278] sm:$0xff]
    %v3241 = vld [vmem:[#allocation2 + $0x280] sm:$0x3]
    %v3242 = vld [vmem:[#allocation2 + $0x288] sm:$0xff]
    %v3243 = vld [vmem:[#allocation2 + $0x290] sm:$0xff]
    %v3244 = vld [vmem:[#allocation2 + $0x298] sm:$0x3]
    %v3245 = vld [vmem:[#allocation2 + $0x2a0] sm:$0xff]
    %v3246 = vld [vmem:[#allocation2 + $0x2a8] sm:$0xff]
    %v3247 = vld [vmem:[#allocation2 + $0x2b0] sm:$0x3]
    %v3248 = vld [vmem:[#allocation2 + $0x2b8] sm:$0xff]
    %v3249 = vld [vmem:[#allocation2 + $0x2c0] sm:$0xff]
    %v3250 = vld [vmem:[#allocation2 + $0x2c8] sm:$0x3]
    %v3251 = vld [vmem:[#allocation2 + $0x2d0] sm:$0xff]
    %v3252 = vld [vmem:[#allocation2 + $0x2d8] sm:$0xff]
    %v3253 = vld [vmem:[#allocation2 + $0x2e0] sm:$0x3]
    %v3254 = vld [vmem:[#allocation2 + $0x2e8] sm:$0xff]
    %v3255 = vld [vmem:[#allocation2 + $0x2f0] sm:$0xff]
    %v3256 = vld [vmem:[#allocation2 + $0x2f8] sm:$0x3]
    %v3257 = vld [vmem:[#allocation2 + $0x300] sm:$0xff]
    %v3258 = vld [vmem:[#allocation2 + $0x308] sm:$0xff]
    %v3259 = vld [vmem:[#allocation2 + $0x310] sm:$0x3]
    %v3260 = vld [vmem:[#allocation2 + $0x318] sm:$0xff]
    %v3261 = vld [vmem:[#allocation2 + $0x320] sm:$0xff]
    %v3262 = vld [vmem:[#allocation2 + $0x328] sm:$0x3]
    %v3263 = vld [vmem:[#allocation2 + $0x330] sm:$0xff]
    %v3264 = vld [vmem:[#allocation2 + $0x338] sm:$0xff]
    %v3265 = vld [vmem:[#allocation2 + $0x340] sm:$0x3]
    %v3266 = vld [vmem:[#allocation2 + $0x348] sm:$0xff]
    %v3267 = vld [vmem:[#allocation2 + $0x350] sm:$0xff]
    %v3268 = vld [vmem:[#allocation2 + $0x358] sm:$0x3]
    %v3365 = vrot.slane %v3161, 1
    %v3366 = vrot.slane %v3162, 1
    %v3367 = vsel %vm219, %v3365, %v3366
    %v3368 = vrot.slane %v3163, 1
    %v3369 = vsel %vm219, %v3366, %v3368
    %v3370 = vrot.slane %v3164, 1
    %v3371 = vrot.slane %v3165, 1
    %v3372 = vsel %vm219, %v3370, %v3371
    %v3373 = vrot.slane %v3166, 1
    %v3374 = vsel %vm219, %v3371, %v3373
    %v3375 = vrot.slane %v3167, 1
    %v3376 = vrot.slane %v3168, 1
    %v3377 = vsel %vm219, %v3375, %v3376
    %v3378 = vrot.slane %v3169, 1
    %v3379 = vsel %vm219, %v3376, %v3378
    %v3380 = vrot.slane %v3170, 1
    %v3381 = vrot.slane %v3171, 1
    %v3382 = vsel %vm219, %v3380, %v3381
    %v3383 = vrot.slane %v3172, 1
    %v3384 = vsel %vm219, %v3381, %v3383
    %v3385 = vrot.slane %v3173, 1
    %v3386 = vrot.slane %v3174, 1
    %v3387 = vsel %vm219, %v3385, %v3386
    %v3388 = vrot.slane %v3175, 1
    %v3389 = vsel %vm219, %v3386, %v3388
    %v3390 = vrot.slane %v3176, 1
    %v3391 = vrot.slane %v3177, 1
    %v3392 = vsel %vm219, %v3390, %v3391
    %v3393 = vrot.slane %v3178, 1
    %v3394 = vsel %vm219, %v3391, %v3393
    %v3395 = vrot.slane %v3179, 1
    %v3396 = vrot.slane %v3180, 1
    %v3397 = vsel %vm219, %v3395, %v3396
    %v3398 = vrot.slane %v3181, 1
    %v3399 = vsel %vm219, %v3396, %v3398
    %v3400 = vrot.slane %v3182, 1
    %v3401 = vrot.slane %v3183, 1
    %v3402 = vsel %vm219, %v3400, %v3401
    %v3403 = vrot.slane %v3184, 1
    %v3404 = vsel %vm219, %v3401, %v3403
    %v3405 = vrot.slane %v3185, 1
    %v3406 = vrot.slane %v3186, 1
    %v3407 = vsel %vm219, %v3405, %v3406
    %v3408 = vrot.slane %v3187, 1
    %v3409 = vsel %vm219, %v3406, %v3408
    %v3410 = vrot.slane %v3188, 1
    %v3411 = vrot.slane %v3189, 1
    %v3412 = vsel %vm219, %v3410, %v3411
    %v3413 = vrot.slane %v3190, 1
    %v3414 = vsel %vm219, %v3411, %v3413
    %v3415 = vrot.slane %v3191, 1
    %v3416 = vrot.slane %v3192, 1
    %v3417 = vsel %vm219, %v3415, %v3416
    %v3418 = vrot.slane %v3193, 1
    %v3419 = vsel %vm219, %v3416, %v3418
    %v3420 = vrot.slane %v3194, 1
    %v3421 = vrot.slane %v3195, 1
    %v3422 = vsel %vm219, %v3420, %v3421
    %v3423 = vrot.slane %v3196, 1
    %v3424 = vsel %vm219, %v3421, %v3423
    %v3425 = vrot.slane %v3197, 1
    %v3426 = vrot.slane %v3198, 1
    %v3427 = vsel %vm219, %v3425, %v3426
    %v3428 = vrot.slane %v3199, 1
    %v3429 = vsel %vm219, %v3426, %v3428
    %v3430 = vrot.slane %v3200, 1
    %v3431 = vrot.slane %v3201, 1
    %v3432 = vsel %vm219, %v3430, %v3431
    %v3433 = vrot.slane %v3202, 1
    %v3434 = vsel %vm219, %v3431, %v3433
    %v3435 = vrot.slane %v3203, 1
    %v3436 = vrot.slane %v3204, 1
    %v3437 = vsel %vm219, %v3435, %v3436
    %v3438 = vrot.slane %v3205, 1
    %v3439 = vsel %vm219, %v3436, %v3438
    %v3440 = vrot.slane %v3206, 1
    %v3441 = vrot.slane %v3207, 1
    %v3442 = vsel %vm219, %v3440, %v3441
    %v3443 = vrot.slane %v3208, 1
    %v3444 = vsel %vm219, %v3441, %v3443
    %v3445 = vrot.slane %v3215, 1
    %v3446 = vrot.slane %v3216, 1
    %v3447 = vsel %vm219, %v3445, %v3446
    %v3448 = vrot.slane %v3217, 1
    %v3449 = vsel %vm219, %v3446, %v3448
    %v3450 = vrot.slane %v3218, 1
    %v3451 = vrot.slane %v3219, 1
    %v3452 = vsel %vm219, %v3450, %v3451
    %v3453 = vrot.slane %v3220, 1
    %v3454 = vsel %vm219, %v3451, %v3453
    %v3455 = vrot.slane %v3221, 1
    %v3456 = vrot.slane %v3222, 1
    %v3457 = vsel %vm219, %v3455, %v3456
    %v3458 = vrot.slane %v3223, 1
    %v3459 = vsel %vm219, %v3456, %v3458
    %v3460 = vrot.slane %v3224, 1
    %v3461 = vrot.slane %v3225, 1
    %v3462 = vsel %vm219, %v3460, %v3461
    %v3463 = vrot.slane %v3226, 1
    %v3464 = vsel %vm219, %v3461, %v3463
    %v3465 = vrot.slane %v3227, 1
    %v3466 = vrot.slane %v3228, 1
    %v3467 = vsel %vm219, %v3465, %v3466
    %v3468 = vrot.slane %v3229, 1
    %v3469 = vsel %vm219, %v3466, %v3468
    %v3470 = vrot.slane %v3230, 1
    %v3471 = vrot.slane %v3231, 1
    %v3472 = vsel %vm219, %v3470, %v3471
    %v3473 = vrot.slane %v3232, 1
    %v3474 = vsel %vm219, %v3471, %v3473
    %v3475 = vrot.slane %v3233, 1
    %v3476 = vrot.slane %v3234, 1
    %v3477 = vsel %vm219, %v3475, %v3476
    %v3478 = vrot.slane %v3235, 1
    %v3479 = vsel %vm219, %v3476, %v3478
    %v3480 = vrot.slane %v3236, 1
    %v3481 = vrot.slane %v3237, 1
    %v3482 = vsel %vm219, %v3480, %v3481
    %v3483 = vrot.slane %v3238, 1
    %v3484 = vsel %vm219, %v3481, %v3483
    %v3485 = vrot.slane %v3239, 1
    %v3486 = vrot.slane %v3240, 1
    %v3487 = vsel %vm219, %v3485, %v3486
    %v3488 = vrot.slane %v3241, 1
    %v3489 = vsel %vm219, %v3486, %v3488
    %v3490 = vrot.slane %v3242, 1
    %v3491 = vrot.slane %v3243, 1
    %v3492 = vsel %vm219, %v3490, %v3491
    %v3493 = vrot.slane %v3244, 1
    %v3494 = vsel %vm219, %v3491, %v3493
    %v3495 = vrot.slane %v3245, 1
    %v3496 = vrot.slane %v3246, 1
    %v3497 = vsel %vm219, %v3495, %v3496
    %v3498 = vrot.slane %v3247, 1
    %v3499 = vsel %vm219, %v3496, %v3498
    %v3500 = vrot.slane %v3248, 1
    %v3501 = vrot.slane %v3249, 1
    %v3502 = vsel %vm219, %v3500, %v3501
    %v3503 = vrot.slane %v3250, 1
    %v3504 = vsel %vm219, %v3501, %v3503
    %v3505 = vrot.slane %v3251, 1
    %v3506 = vrot.slane %v3252, 1
    %v3507 = vsel %vm219, %v3505, %v3506
    %v3508 = vrot.slane %v3253, 1
    %v3509 = vsel %vm219, %v3506, %v3508
    %v3510 = vrot.slane %v3254, 1
    %v3511 = vrot.slane %v3255, 1
    %v3512 = vsel %vm219, %v3510, %v3511
    %v3513 = vrot.slane %v3256, 1
    %v3514 = vsel %vm219, %v3511, %v3513
    %v3515 = vrot.slane %v3257, 1
    %v3516 = vrot.slane %v3258, 1
    %v3517 = vsel %vm219, %v3515, %v3516
    %v3518 = vrot.slane %v3259, 1
    %v3519 = vsel %vm219, %v3516, %v3518
    %v3520 = vrot.slane %v3260, 1
    %v3521 = vrot.slane %v3261, 1
    %v3522 = vsel %vm219, %v3520, %v3521
    %v3523 = vrot.slane %v3262, 1
    %v3524 = vsel %vm219, %v3521, %v3523
    %3525 = vrot.lane.b32.xlu0 %v3367, 16
    %v3526 = vpop.permute.xlu0 %3525
    %3527 = vrot.lane.b32.xlu0 %v3369, 16
    %v3528 = vpop.permute.xlu0 %3527
    %3529 = vrot.lane.b32.xlu0 %v3372, 16
    %v3530 = vpop.permute.xlu0 %3529
    %3531 = vrot.lane.b32.xlu0 %v3374, 16
    %v3532 = vpop.permute.xlu0 %3531
    %3533 = vrot.lane.b32.xlu0 %v3377, 16
    %v3534 = vpop.permute.xlu0 %3533
    %3535 = vrot.lane.b32.xlu0 %v3379, 16
    %v3536 = vpop.permute.xlu0 %3535
    %3537 = vrot.lane.b32.xlu0 %v3382, 16
    %v3538 = vpop.permute.xlu0 %3537
    %3539 = vrot.lane.b32.xlu0 %v3384, 16
    %v3540 = vpop.permute.xlu0 %3539
    %3541 = vrot.lane.b32.xlu0 %v3387, 16
    %v3542 = vpop.permute.xlu0 %3541
    %3543 = vrot.lane.b32.xlu0 %v3389, 16
    %v3544 = vpop.permute.xlu0 %3543
    %3545 = vrot.lane.b32.xlu0 %v3392, 16
    %v3546 = vpop.permute.xlu0 %3545
    %3547 = vrot.lane.b32.xlu0 %v3394, 16
    %v3548 = vpop.permute.xlu0 %3547
    %3549 = vrot.lane.b32.xlu0 %v3397, 16
    %v3550 = vpop.permute.xlu0 %3549
    %3551 = vrot.lane.b32.xlu0 %v3399, 16
    %v3552 = vpop.permute.xlu0 %3551
    %3553 = vrot.lane.b32.xlu0 %v3402, 16
    %v3554 = vpop.permute.xlu0 %3553
    %3555 = vrot.lane.b32.xlu0 %v3404, 16
    %v3556 = vpop.permute.xlu0 %3555
    %3557 = vrot.lane.b32.xlu0 %v3407, 16
    %v3558 = vpop.permute.xlu0 %3557
    %3559 = vrot.lane.b32.xlu0 %v3409, 16
    %v3560 = vpop.permute.xlu0 %3559
    %3561 = vrot.lane.b32.xlu0 %v3412, 16
    %v3562 = vpop.permute.xlu0 %3561
    %3563 = vrot.lane.b32.xlu0 %v3414, 16
    %v3564 = vpop.permute.xlu0 %3563
    %3565 = vrot.lane.b32.xlu0 %v3417, 16
    %v3566 = vpop.permute.xlu0 %3565
    %3567 = vrot.lane.b32.xlu0 %v3419, 16
    %v3568 = vpop.permute.xlu0 %3567
    %3569 = vrot.lane.b32.xlu0 %v3422, 16
    %v3570 = vpop.permute.xlu0 %3569
    %3571 = vrot.lane.b32.xlu0 %v3424, 16
    %v3572 = vpop.permute.xlu0 %3571
    %3573 = vrot.lane.b32.xlu0 %v3427, 16
    %v3574 = vpop.permute.xlu0 %3573
    %3575 = vrot.lane.b32.xlu0 %v3429, 16
    %v3576 = vpop.permute.xlu0 %3575
    %3577 = vrot.lane.b32.xlu0 %v3432, 16
    %v3578 = vpop.permute.xlu0 %3577
    %3579 = vrot.lane.b32.xlu0 %v3434, 16
    %v3580 = vpop.permute.xlu0 %3579
    %3581 = vrot.lane.b32.xlu0 %v3437, 16
    %v3582 = vpop.permute.xlu0 %3581
    %3583 = vrot.lane.b32.xlu0 %v3439, 16
    %v3584 = vpop.permute.xlu0 %3583
    %3585 = vrot.lane.b32.xlu0 %v3442, 16
    %v3586 = vpop.permute.xlu0 %3585
    %3587 = vrot.lane.b32.xlu0 %v3444, 16
    %v3588 = vpop.permute.xlu0 %3587
    %3589 = vrot.lane.b32.xlu0 %v3447, 16
    %v3590 = vpop.permute.xlu0 %3589
    %3591 = vrot.lane.b32.xlu0 %v3449, 16
    %v3592 = vpop.permute.xlu0 %3591
    %3593 = vrot.lane.b32.xlu0 %v3452, 16
    %v3594 = vpop.permute.xlu0 %3593
    %3595 = vrot.lane.b32.xlu0 %v3454, 16
    %v3596 = vpop.permute.xlu0 %3595
    %3597 = vrot.lane.b32.xlu0 %v3457, 16
    %v3598 = vpop.permute.xlu0 %3597
    %3599 = vrot.lane.b32.xlu0 %v3459, 16
    %v3600 = vpop.permute.xlu0 %3599
    %3601 = vrot.lane.b32.xlu0 %v3462, 16
    %v3602 = vpop.permute.xlu0 %3601
    %3603 = vrot.lane.b32.xlu0 %v3464, 16
    %v3604 = vpop.permute.xlu0 %3603
    %3605 = vrot.lane.b32.xlu0 %v3467, 16
    %v3606 = vpop.permute.xlu0 %3605
    %3607 = vrot.lane.b32.xlu0 %v3469, 16
    %v3608 = vpop.permute.xlu0 %3607
    %3609 = vrot.lane.b32.xlu0 %v3472, 16
    %v3610 = vpop.permute.xlu0 %3609
    %3611 = vrot.lane.b32.xlu0 %v3474, 16
    %v3612 = vpop.permute.xlu0 %3611
    %3613 = vrot.lane.b32.xlu0 %v3477, 16
    %v3614 = vpop.permute.xlu0 %3613
    %3615 = vrot.lane.b32.xlu0 %v3479, 16
    %v3616 = vpop.permute.xlu0 %3615
    %3617 = vrot.lane.b32.xlu0 %v3482, 16
    %v3618 = vpop.permute.xlu0 %3617
    %3619 = vrot.lane.b32.xlu0 %v3484, 16
    %v3620 = vpop.permute.xlu0 %3619
    %3621 = vrot.lane.b32.xlu0 %v3487, 16
    %v3622 = vpop.permute.xlu0 %3621
    %3623 = vrot.lane.b32.xlu0 %v3489, 16
    %v3624 = vpop.permute.xlu0 %3623
    %3625 = vrot.lane.b32.xlu0 %v3492, 16
    %v3626 = vpop.permute.xlu0 %3625
    %3627 = vrot.lane.b32.xlu0 %v3494, 16
    %v3628 = vpop.permute.xlu0 %3627
    %3629 = vrot.lane.b32.xlu0 %v3497, 16
    %v3630 = vpop.permute.xlu0 %3629
    %3631 = vrot.lane.b32.xlu0 %v3499, 16
    %v3632 = vpop.permute.xlu0 %3631
    %3633 = vrot.lane.b32.xlu0 %v3502, 16
    %v3634 = vpop.permute.xlu0 %3633
    %3635 = vrot.lane.b32.xlu0 %v3504, 16
    %v3636 = vpop.permute.xlu0 %3635
    %3637 = vrot.lane.b32.xlu0 %v3507, 16
    %v3638 = vpop.permute.xlu0 %3637
    %3639 = vrot.lane.b32.xlu0 %v3509, 16
    %v3640 = vpop.permute.xlu0 %3639
    %3641 = vrot.lane.b32.xlu0 %v3512, 16
    %v3642 = vpop.permute.xlu0 %3641
    %3643 = vrot.lane.b32.xlu0 %v3514, 16
    %v3644 = vpop.permute.xlu0 %3643
    %3645 = vrot.lane.b32.xlu0 %v3517, 16
    %v3646 = vpop.permute.xlu0 %3645
    %3647 = vrot.lane.b32.xlu0 %v3519, 16
    %v3648 = vpop.permute.xlu0 %3647
    %3649 = vrot.lane.b32.xlu0 %v3522, 16
    %v3650 = vpop.permute.xlu0 %3649
    %3651 = vrot.lane.b32.xlu0 %v3524, 16
    %v3652 = vpop.permute.xlu0 %3651
    %v3717 = vrot.slane %v3161, 2
    %v3718 = vrot.slane %v3162, 2
    %v3719 = vsel %vm572, %v3717, %v3718
    %v3720 = vrot.slane %v3163, 2
    %v3721 = vsel %vm572, %v3718, %v3720
    %v3722 = vrot.slane %v3164, 2
    %v3723 = vrot.slane %v3165, 2
    %v3724 = vsel %vm572, %v3722, %v3723
    %v3725 = vrot.slane %v3166, 2
    %v3726 = vsel %vm572, %v3723, %v3725
    %v3727 = vrot.slane %v3167, 2
    %v3728 = vrot.slane %v3168, 2
    %v3729 = vsel %vm572, %v3727, %v3728
    %v3730 = vrot.slane %v3169, 2
    %v3731 = vsel %vm572, %v3728, %v3730
    %v3732 = vrot.slane %v3170, 2
    %v3733 = vrot.slane %v3171, 2
    %v3734 = vsel %vm572, %v3732, %v3733
    %v3735 = vrot.slane %v3172, 2
    %v3736 = vsel %vm572, %v3733, %v3735
    %v3737 = vrot.slane %v3173, 2
    %v3738 = vrot.slane %v3174, 2
    %v3739 = vsel %vm572, %v3737, %v3738
    %v3740 = vrot.slane %v3175, 2
    %v3741 = vsel %vm572, %v3738, %v3740
    %v3742 = vrot.slane %v3176, 2
    %v3743 = vrot.slane %v3177, 2
    %v3744 = vsel %vm572, %v3742, %v3743
    %v3745 = vrot.slane %v3178, 2
    %v3746 = vsel %vm572, %v3743, %v3745
    %v3747 = vrot.slane %v3179, 2
    %v3748 = vrot.slane %v3180, 2
    %v3749 = vsel %vm572, %v3747, %v3748
    %v3750 = vrot.slane %v3181, 2
    %v3751 = vsel %vm572, %v3748, %v3750
    %v3752 = vrot.slane %v3182, 2
    %v3753 = vrot.slane %v3183, 2
    %v3754 = vsel %vm572, %v3752, %v3753
    %v3755 = vrot.slane %v3184, 2
    %v3756 = vsel %vm572, %v3753, %v3755
    %v3757 = vrot.slane %v3185, 2
    %v3758 = vrot.slane %v3186, 2
    %v3759 = vsel %vm572, %v3757, %v3758
    %v3760 = vrot.slane %v3187, 2
    %v3761 = vsel %vm572, %v3758, %v3760
    %v3762 = vrot.slane %v3188, 2
    %v3763 = vrot.slane %v3189, 2
    %v3764 = vsel %vm572, %v3762, %v3763
    %v3765 = vrot.slane %v3190, 2
    %v3766 = vsel %vm572, %v3763, %v3765
    %v3767 = vrot.slane %v3191, 2
    %v3768 = vrot.slane %v3192, 2
    %v3769 = vsel %vm572, %v3767, %v3768
    %v3770 = vrot.slane %v3193, 2
    %v3771 = vsel %vm572, %v3768, %v3770
    %v3772 = vrot.slane %v3194, 2
    %v3773 = vrot.slane %v3195, 2
    %v3774 = vsel %vm572, %v3772, %v3773
    %v3775 = vrot.slane %v3196, 2
    %v3776 = vsel %vm572, %v3773, %v3775
    %v3777 = vrot.slane %v3197, 2
    %v3778 = vrot.slane %v3198, 2
    %v3779 = vsel %vm572, %v3777, %v3778
    %v3780 = vrot.slane %v3199, 2
    %v3781 = vsel %vm572, %v3778, %v3780
    %v3782 = vrot.slane %v3200, 2
    %v3783 = vrot.slane %v3201, 2
    %v3784 = vsel %vm572, %v3782, %v3783
    %v3785 = vrot.slane %v3202, 2
    %v3786 = vsel %vm572, %v3783, %v3785
    %v3787 = vrot.slane %v3203, 2
    %v3788 = vrot.slane %v3204, 2
    %v3789 = vsel %vm572, %v3787, %v3788
    %v3790 = vrot.slane %v3205, 2
    %v3791 = vsel %vm572, %v3788, %v3790
    %v3792 = vrot.slane %v3206, 2
    %v3793 = vrot.slane %v3207, 2
    %v3794 = vsel %vm572, %v3792, %v3793
    %v3795 = vrot.slane %v3208, 2
    %v3796 = vsel %vm572, %v3793, %v3795
    %v3797 = vrot.slane %v3215, 2
    %v3798 = vrot.slane %v3216, 2
    %v3799 = vsel %vm572, %v3797, %v3798
    %v3800 = vrot.slane %v3217, 2
    %v3801 = vsel %vm572, %v3798, %v3800
    %v3802 = vrot.slane %v3218, 2
    %v3803 = vrot.slane %v3219, 2
    %v3804 = vsel %vm572, %v3802, %v3803
    %v3805 = vrot.slane %v3220, 2
    %v3806 = vsel %vm572, %v3803, %v3805
    %v3807 = vrot.slane %v3221, 2
    %v3808 = vrot.slane %v3222, 2
    %v3809 = vsel %vm572, %v3807, %v3808
    %v3810 = vrot.slane %v3223, 2
    %v3811 = vsel %vm572, %v3808, %v3810
    %v3812 = vrot.slane %v3224, 2
    %v3813 = vrot.slane %v3225, 2
    %v3814 = vsel %vm572, %v3812, %v3813
    %v3815 = vrot.slane %v3226, 2
    %v3816 = vsel %vm572, %v3813, %v3815
    %v3817 = vrot.slane %v3227, 2
    %v3818 = vrot.slane %v3228, 2
    %v3819 = vsel %vm572, %v3817, %v3818
    %v3820 = vrot.slane %v3229, 2
    %v3821 = vsel %vm572, %v3818, %v3820
    %v3822 = vrot.slane %v3230, 2
    %v3823 = vrot.slane %v3231, 2
    %v3824 = vsel %vm572, %v3822, %v3823
    %v3825 = vrot.slane %v3232, 2
    %v3826 = vsel %vm572, %v3823, %v3825
    %v3827 = vrot.slane %v3233, 2
    %v3828 = vrot.slane %v3234, 2
    %v3829 = vsel %vm572, %v3827, %v3828
    %v3830 = vrot.slane %v3235, 2
    %v3831 = vsel %vm572, %v3828, %v3830
    %v3832 = vrot.slane %v3236, 2
    %v3833 = vrot.slane %v3237, 2
    %v3834 = vsel %vm572, %v3832, %v3833
    %v3835 = vrot.slane %v3238, 2
    %v3836 = vsel %vm572, %v3833, %v3835
    %v3837 = vrot.slane %v3239, 2
    %v3838 = vrot.slane %v3240, 2
    %v3839 = vsel %vm572, %v3837, %v3838
    %v3840 = vrot.slane %v3241, 2
    %v3841 = vsel %vm572, %v3838, %v3840
    %v3842 = vrot.slane %v3242, 2
    %v3843 = vrot.slane %v3243, 2
    %v3844 = vsel %vm572, %v3842, %v3843
    %v3845 = vrot.slane %v3244, 2
    %v3846 = vsel %vm572, %v3843, %v3845
    %v3847 = vrot.slane %v3245, 2
    %v3848 = vrot.slane %v3246, 2
    %v3849 = vsel %vm572, %v3847, %v3848
    %v3850 = vrot.slane %v3247, 2
    %v3851 = vsel %vm572, %v3848, %v3850
    %v3852 = vrot.slane %v3248, 2
    %v3853 = vrot.slane %v3249, 2
    %v3854 = vsel %vm572, %v3852, %v3853
    %v3855 = vrot.slane %v3250, 2
    %v3856 = vsel %vm572, %v3853, %v3855
    %v3857 = vrot.slane %v3251, 2
    %v3858 = vrot.slane %v3252, 2
    %v3859 = vsel %vm572, %v3857, %v3858
    %v3860 = vrot.slane %v3253, 2
    %v3861 = vsel %vm572, %v3858, %v3860
    %v3862 = vrot.slane %v3254, 2
    %v3863 = vrot.slane %v3255, 2
    %v3864 = vsel %vm572, %v3862, %v3863
    %v3865 = vrot.slane %v3256, 2
    %v3866 = vsel %vm572, %v3863, %v3865
    %v3867 = vrot.slane %v3257, 2
    %v3868 = vrot.slane %v3258, 2
    %v3869 = vsel %vm572, %v3867, %v3868
    %v3870 = vrot.slane %v3259, 2
    %v3871 = vsel %vm572, %v3868, %v3870
    %v3872 = vrot.slane %v3260, 2
    %v3873 = vrot.slane %v3261, 2
    %v3874 = vsel %vm572, %v3872, %v3873
    %v3875 = vrot.slane %v3262, 2
    %v3876 = vsel %vm572, %v3873, %v3875
    %3877 = vrot.lane.b32.xlu0 %v3719, 32
    %v3878 = vpop.permute.xlu0 %3877
    %3879 = vrot.lane.b32.xlu0 %v3721, 32
    %v3880 = vpop.permute.xlu0 %3879
    %3881 = vrot.lane.b32.xlu0 %v3724, 32
    %v3882 = vpop.permute.xlu0 %3881
    %3883 = vrot.lane.b32.xlu0 %v3726, 32
    %v3884 = vpop.permute.xlu0 %3883
    %3885 = vrot.lane.b32.xlu0 %v3729, 32
    %v3886 = vpop.permute.xlu0 %3885
    %3887 = vrot.lane.b32.xlu0 %v3731, 32
    %v3888 = vpop.permute.xlu0 %3887
    %3889 = vrot.lane.b32.xlu0 %v3734, 32
    %v3890 = vpop.permute.xlu0 %3889
    %3891 = vrot.lane.b32.xlu0 %v3736, 32
    %v3892 = vpop.permute.xlu0 %3891
    %3893 = vrot.lane.b32.xlu0 %v3739, 32
    %v3894 = vpop.permute.xlu0 %3893
    %3895 = vrot.lane.b32.xlu0 %v3741, 32
    %v3896 = vpop.permute.xlu0 %3895
    %3897 = vrot.lane.b32.xlu0 %v3744, 32
    %v3898 = vpop.permute.xlu0 %3897
    %3899 = vrot.lane.b32.xlu0 %v3746, 32
    %v3900 = vpop.permute.xlu0 %3899
    %3901 = vrot.lane.b32.xlu0 %v3749, 32
    %v3902 = vpop.permute.xlu0 %3901
    %3903 = vrot.lane.b32.xlu0 %v3751, 32
    %v3904 = vpop.permute.xlu0 %3903
    %3905 = vrot.lane.b32.xlu0 %v3754, 32
    %v3906 = vpop.permute.xlu0 %3905
    %3907 = vrot.lane.b32.xlu0 %v3756, 32
    %v3908 = vpop.permute.xlu0 %3907
    %3909 = vrot.lane.b32.xlu0 %v3759, 32
    %v3910 = vpop.permute.xlu0 %3909
    %3911 = vrot.lane.b32.xlu0 %v3761, 32
    %v3912 = vpop.permute.xlu0 %3911
    %3913 = vrot.lane.b32.xlu0 %v3764, 32
    %v3914 = vpop.permute.xlu0 %3913
    %3915 = vrot.lane.b32.xlu0 %v3766, 32
    %v3916 = vpop.permute.xlu0 %3915
    %3917 = vrot.lane.b32.xlu0 %v3769, 32
    %v3918 = vpop.permute.xlu0 %3917
    %3919 = vrot.lane.b32.xlu0 %v3771, 32
    %v3920 = vpop.permute.xlu0 %3919
    %3921 = vrot.lane.b32.xlu0 %v3774, 32
    %v3922 = vpop.permute.xlu0 %3921
    %3923 = vrot.lane.b32.xlu0 %v3776, 32
    %v3924 = vpop.permute.xlu0 %3923
    %3925 = vrot.lane.b32.xlu0 %v3779, 32
    %v3926 = vpop.permute.xlu0 %3925
    %3927 = vrot.lane.b32.xlu0 %v3781, 32
    %v3928 = vpop.permute.xlu0 %3927
    %3929 = vrot.lane.b32.xlu0 %v3784, 32
    %v3930 = vpop.permute.xlu0 %3929
    %3931 = vrot.lane.b32.xlu0 %v3786, 32
    %v3932 = vpop.permute.xlu0 %3931
    %3933 = vrot.lane.b32.xlu0 %v3789, 32
    %v3934 = vpop.permute.xlu0 %3933
    %3935 = vrot.lane.b32.xlu0 %v3791, 32
    %v3936 = vpop.permute.xlu0 %3935
    %3937 = vrot.lane.b32.xlu0 %v3794, 32
    %v3938 = vpop.permute.xlu0 %3937
    %3939 = vrot.lane.b32.xlu0 %v3796, 32
    %v3940 = vpop.permute.xlu0 %3939
    %3941 = vrot.lane.b32.xlu0 %v3799, 32
    %v3942 = vpop.permute.xlu0 %3941
    %3943 = vrot.lane.b32.xlu0 %v3801, 32
    %v3944 = vpop.permute.xlu0 %3943
    %3945 = vrot.lane.b32.xlu0 %v3804, 32
    %v3946 = vpop.permute.xlu0 %3945
    %3947 = vrot.lane.b32.xlu0 %v3806, 32
    %v3948 = vpop.permute.xlu0 %3947
    %3949 = vrot.lane.b32.xlu0 %v3809, 32
    %v3950 = vpop.permute.xlu0 %3949
    %3951 = vrot.lane.b32.xlu0 %v3811, 32
    %v3952 = vpop.permute.xlu0 %3951
    %3953 = vrot.lane.b32.xlu0 %v3814, 32
    %v3954 = vpop.permute.xlu0 %3953
    %3955 = vrot.lane.b32.xlu0 %v3816, 32
    %v3956 = vpop.permute.xlu0 %3955
    %3957 = vrot.lane.b32.xlu0 %v3819, 32
    %v3958 = vpop.permute.xlu0 %3957
    %3959 = vrot.lane.b32.xlu0 %v3821, 32
    %v3960 = vpop.permute.xlu0 %3959
    %3961 = vrot.lane.b32.xlu0 %v3824, 32
    %v3962 = vpop.permute.xlu0 %3961
    %3963 = vrot.lane.b32.xlu0 %v3826, 32
    %v3964 = vpop.permute.xlu0 %3963
    %3965 = vrot.lane.b32.xlu0 %v3829, 32
    %v3966 = vpop.permute.xlu0 %3965
    %3967 = vrot.lane.b32.xlu0 %v3831, 32
    %v3968 = vpop.permute.xlu0 %3967
    %3969 = vrot.lane.b32.xlu0 %v3834, 32
    %v3970 = vpop.permute.xlu0 %3969
    %3971 = vrot.lane.b32.xlu0 %v3836, 32
    %v3972 = vpop.permute.xlu0 %3971
    %3973 = vrot.lane.b32.xlu0 %v3839, 32
    %v3974 = vpop.permute.xlu0 %3973
    %3975 = vrot.lane.b32.xlu0 %v3841, 32
    %v3976 = vpop.permute.xlu0 %3975
    %3977 = vrot.lane.b32.xlu0 %v3844, 32
    %v3978 = vpop.permute.xlu0 %3977
    %3979 = vrot.lane.b32.xlu0 %v3846, 32
    %v3980 = vpop.permute.xlu0 %3979
    %3981 = vrot.lane.b32.xlu0 %v3849, 32
    %v3982 = vpop.permute.xlu0 %3981
    %3983 = vrot.lane.b32.xlu0 %v3851, 32
    %v3984 = vpop.permute.xlu0 %3983
    %3985 = vrot.lane.b32.xlu0 %v3854, 32
    %v3986 = vpop.permute.xlu0 %3985
    %3987 = vrot.lane.b32.xlu0 %v3856, 32
    %v3988 = vpop.permute.xlu0 %3987
    %3989 = vrot.lane.b32.xlu0 %v3859, 32
    %v3990 = vpop.permute.xlu0 %3989
    %3991 = vrot.lane.b32.xlu0 %v3861, 32
    %v3992 = vpop.permute.xlu0 %3991
    %3993 = vrot.lane.b32.xlu0 %v3864, 32
    %v3994 = vpop.permute.xlu0 %3993
    %3995 = vrot.lane.b32.xlu0 %v3866, 32
    %v3996 = vpop.permute.xlu0 %3995
    %3997 = vrot.lane.b32.xlu0 %v3869, 32
    %v3998 = vpop.permute.xlu0 %3997
    %3999 = vrot.lane.b32.xlu0 %v3871, 32
    %v4000 = vpop.permute.xlu0 %3999
    %4001 = vrot.lane.b32.xlu0 %v3874, 32
    %v4002 = vpop.permute.xlu0 %4001
    %4003 = vrot.lane.b32.xlu0 %v3876, 32
    %v4004 = vpop.permute.xlu0 %4003
    %4073 = vrot.lane.b32.xlu0 %v3164, 48
    %v4074 = vpop.permute.xlu0 %4073
    %4075 = vrot.lane.b32.xlu0 %v3165, 48
    %v4076 = vpop.permute.xlu0 %4075
    %4077 = vrot.lane.b32.xlu0 %v3167, 48
    %v4078 = vpop.permute.xlu0 %4077
    %4079 = vrot.lane.b32.xlu0 %v3168, 48
    %v4080 = vpop.permute.xlu0 %4079
    %4081 = vrot.lane.b32.xlu0 %v3170, 48
    %v4082 = vpop.permute.xlu0 %4081
    %4083 = vrot.lane.b32.xlu0 %v3171, 48
    %v4084 = vpop.permute.xlu0 %4083
    %4085 = vrot.lane.b32.xlu0 %v3173, 48
    %v4086 = vpop.permute.xlu0 %4085
    %4087 = vrot.lane.b32.xlu0 %v3174, 48
    %v4088 = vpop.permute.xlu0 %4087
    %4089 = vrot.lane.b32.xlu0 %v3176, 48
    %v4090 = vpop.permute.xlu0 %4089
    %4091 = vrot.lane.b32.xlu0 %v3177, 48
    %v4092 = vpop.permute.xlu0 %4091
    %4093 = vrot.lane.b32.xlu0 %v3179, 48
    %v4094 = vpop.permute.xlu0 %4093
    %4095 = vrot.lane.b32.xlu0 %v3180, 48
    %v4096 = vpop.permute.xlu0 %4095
    %4097 = vrot.lane.b32.xlu0 %v3182, 48
    %v4098 = vpop.permute.xlu0 %4097
    %4099 = vrot.lane.b32.xlu0 %v3183, 48
    %v4100 = vpop.permute.xlu0 %4099
    %4101 = vrot.lane.b32.xlu0 %v3185, 48
    %v4102 = vpop.permute.xlu0 %4101
    %4103 = vrot.lane.b32.xlu0 %v3186, 48
    %v4104 = vpop.permute.xlu0 %4103
    %4105 = vrot.lane.b32.xlu0 %v3188, 48
    %v4106 = vpop.permute.xlu0 %4105
    %4107 = vrot.lane.b32.xlu0 %v3189, 48
    %v4108 = vpop.permute.xlu0 %4107
    %4109 = vrot.lane.b32.xlu0 %v3191, 48
    %v4110 = vpop.permute.xlu0 %4109
    %4111 = vrot.lane.b32.xlu0 %v3192, 48
    %v4112 = vpop.permute.xlu0 %4111
    %4113 = vrot.lane.b32.xlu0 %v3194, 48
    %v4114 = vpop.permute.xlu0 %4113
    %4115 = vrot.lane.b32.xlu0 %v3195, 48
    %v4116 = vpop.permute.xlu0 %4115
    %4117 = vrot.lane.b32.xlu0 %v3197, 48
    %v4118 = vpop.permute.xlu0 %4117
    %4119 = vrot.lane.b32.xlu0 %v3198, 48
    %v4120 = vpop.permute.xlu0 %4119
    %4121 = vrot.lane.b32.xlu0 %v3200, 48
    %v4122 = vpop.permute.xlu0 %4121
    %4123 = vrot.lane.b32.xlu0 %v3201, 48
    %v4124 = vpop.permute.xlu0 %4123
    %4125 = vrot.lane.b32.xlu0 %v3203, 48
    %v4126 = vpop.permute.xlu0 %4125
    %4127 = vrot.lane.b32.xlu0 %v3204, 48
    %v4128 = vpop.permute.xlu0 %4127
    %4129 = vrot.lane.b32.xlu0 %v3206, 48
    %v4130 = vpop.permute.xlu0 %4129
    %4131 = vrot.lane.b32.xlu0 %v3207, 48
    %v4132 = vpop.permute.xlu0 %4131
    %4133 = vrot.lane.b32.xlu0 %v3209, 48
    %v4134 = vpop.permute.xlu0 %4133
    %4135 = vrot.lane.b32.xlu0 %v3210, 48
    %v4136 = vpop.permute.xlu0 %4135
    %4137 = vrot.lane.b32.xlu0 %v3218, 48
    %v4138 = vpop.permute.xlu0 %4137
    %4139 = vrot.lane.b32.xlu0 %v3219, 48
    %v4140 = vpop.permute.xlu0 %4139
    %4141 = vrot.lane.b32.xlu0 %v3221, 48
    %v4142 = vpop.permute.xlu0 %4141
    %4143 = vrot.lane.b32.xlu0 %v3222, 48
    %v4144 = vpop.permute.xlu0 %4143
    %4145 = vrot.lane.b32.xlu0 %v3224, 48
    %v4146 = vpop.permute.xlu0 %4145
    %4147 = vrot.lane.b32.xlu0 %v3225, 48
    %v4148 = vpop.permute.xlu0 %4147
    %4149 = vrot.lane.b32.xlu0 %v3227, 48
    %v4150 = vpop.permute.xlu0 %4149
    %4151 = vrot.lane.b32.xlu0 %v3228, 48
    %v4152 = vpop.permute.xlu0 %4151
    %4153 = vrot.lane.b32.xlu0 %v3230, 48
    %v4154 = vpop.permute.xlu0 %4153
    %4155 = vrot.lane.b32.xlu0 %v3231, 48
    %v4156 = vpop.permute.xlu0 %4155
    %4157 = vrot.lane.b32.xlu0 %v3233, 48
    %v4158 = vpop.permute.xlu0 %4157
    %4159 = vrot.lane.b32.xlu0 %v3234, 48
    %v4160 = vpop.permute.xlu0 %4159
    %4161 = vrot.lane.b32.xlu0 %v3236, 48
    %v4162 = vpop.permute.xlu0 %4161
    %4163 = vrot.lane.b32.xlu0 %v3237, 48
    %v4164 = vpop.permute.xlu0 %4163
    %4165 = vrot.lane.b32.xlu0 %v3239, 48
    %v4166 = vpop.permute.xlu0 %4165
    %4167 = vrot.lane.b32.xlu0 %v3240, 48
    %v4168 = vpop.permute.xlu0 %4167
    %4169 = vrot.lane.b32.xlu0 %v3242, 48
    %v4170 = vpop.permute.xlu0 %4169
    %4171 = vrot.lane.b32.xlu0 %v3243, 48
    %v4172 = vpop.permute.xlu0 %4171
    %4173 = vrot.lane.b32.xlu0 %v3245, 48
    %v4174 = vpop.permute.xlu0 %4173
    %4175 = vrot.lane.b32.xlu0 %v3246, 48
    %v4176 = vpop.permute.xlu0 %4175
    %4177 = vrot.lane.b32.xlu0 %v3248, 48
    %v4178 = vpop.permute.xlu0 %4177
    %4179 = vrot.lane.b32.xlu0 %v3249, 48
    %v4180 = vpop.permute.xlu0 %4179
    %4181 = vrot.lane.b32.xlu0 %v3251, 48
    %v4182 = vpop.permute.xlu0 %4181
    %4183 = vrot.lane.b32.xlu0 %v3252, 48
    %v4184 = vpop.permute.xlu0 %4183
    %4185 = vrot.lane.b32.xlu0 %v3254, 48
    %v4186 = vpop.permute.xlu0 %4185
    %4187 = vrot.lane.b32.xlu0 %v3255, 48
    %v4188 = vpop.permute.xlu0 %4187
    %4189 = vrot.lane.b32.xlu0 %v3257, 48
    %v4190 = vpop.permute.xlu0 %4189
    %4191 = vrot.lane.b32.xlu0 %v3258, 48
    %v4192 = vpop.permute.xlu0 %4191
    %4193 = vrot.lane.b32.xlu0 %v3260, 48
    %v4194 = vpop.permute.xlu0 %4193
    %4195 = vrot.lane.b32.xlu0 %v3261, 48
    %v4196 = vpop.permute.xlu0 %4195
    %4197 = vrot.lane.b32.xlu0 %v3263, 48
    %v4198 = vpop.permute.xlu0 %4197
    %4199 = vrot.lane.b32.xlu0 %v3264, 48
    %v4200 = vpop.permute.xlu0 %4199
    %v4267 = vrot.slane %v3209, 1
    %v4268 = vrot.slane %v3210, 1
    %v4269 = vsel %vm219, %v4267, %v4268
    %v4270 = vrot.slane %v3211, 1
    %v4271 = vsel %vm219, %v4268, %v4270
    %v4272 = vrot.slane %v3263, 1
    %v4273 = vrot.slane %v3264, 1
    %v4274 = vsel %vm219, %v4272, %v4273
    %v4275 = vrot.slane %v3265, 1
    %v4276 = vsel %vm219, %v4273, %v4275
    %4277 = vrot.lane.b32.xlu0 %v3372, 64
    %v4278 = vpop.permute.xlu0 %4277
    %4279 = vrot.lane.b32.xlu0 %v3374, 64
    %v4280 = vpop.permute.xlu0 %4279
    %4281 = vrot.lane.b32.xlu0 %v3377, 64
    %v4282 = vpop.permute.xlu0 %4281
    %4283 = vrot.lane.b32.xlu0 %v3379, 64
    %v4284 = vpop.permute.xlu0 %4283
    %4285 = vrot.lane.b32.xlu0 %v3382, 64
    %v4286 = vpop.permute.xlu0 %4285
    %4287 = vrot.lane.b32.xlu0 %v3384, 64
    %v4288 = vpop.permute.xlu0 %4287
    %4289 = vrot.lane.b32.xlu0 %v3387, 64
    %v4290 = vpop.permute.xlu0 %4289
    %4291 = vrot.lane.b32.xlu0 %v3389, 64
    %v4292 = vpop.permute.xlu0 %4291
    %4293 = vrot.lane.b32.xlu0 %v3392, 64
    %v4294 = vpop.permute.xlu0 %4293
    %4295 = vrot.lane.b32.xlu0 %v3394, 64
    %v4296 = vpop.permute.xlu0 %4295
    %4297 = vrot.lane.b32.xlu0 %v3397, 64
    %v4298 = vpop.permute.xlu0 %4297
    %4299 = vrot.lane.b32.xlu0 %v3399, 64
    %v4300 = vpop.permute.xlu0 %4299
    %4301 = vrot.lane.b32.xlu0 %v3402, 64
    %v4302 = vpop.permute.xlu0 %4301
    %4303 = vrot.lane.b32.xlu0 %v3404, 64
    %v4304 = vpop.permute.xlu0 %4303
    %4305 = vrot.lane.b32.xlu0 %v3407, 64
    %v4306 = vpop.permute.xlu0 %4305
    %4307 = vrot.lane.b32.xlu0 %v3409, 64
    %v4308 = vpop.permute.xlu0 %4307
    %4309 = vrot.lane.b32.xlu0 %v3412, 64
    %v4310 = vpop.permute.xlu0 %4309
    %4311 = vrot.lane.b32.xlu0 %v3414, 64
    %v4312 = vpop.permute.xlu0 %4311
    %4313 = vrot.lane.b32.xlu0 %v3417, 64
    %v4314 = vpop.permute.xlu0 %4313
    %4315 = vrot.lane.b32.xlu0 %v3419, 64
    %v4316 = vpop.permute.xlu0 %4315
    %4317 = vrot.lane.b32.xlu0 %v3422, 64
    %v4318 = vpop.permute.xlu0 %4317
    %4319 = vrot.lane.b32.xlu0 %v3424, 64
    %v4320 = vpop.permute.xlu0 %4319
    %4321 = vrot.lane.b32.xlu0 %v3427, 64
    %v4322 = vpop.permute.xlu0 %4321
    %4323 = vrot.lane.b32.xlu0 %v3429, 64
    %v4324 = vpop.permute.xlu0 %4323
    %4325 = vrot.lane.b32.xlu0 %v3432, 64
    %v4326 = vpop.permute.xlu0 %4325
    %4327 = vrot.lane.b32.xlu0 %v3434, 64
    %v4328 = vpop.permute.xlu0 %4327
    %4329 = vrot.lane.b32.xlu0 %v3437, 64
    %v4330 = vpop.permute.xlu0 %4329
    %4331 = vrot.lane.b32.xlu0 %v3439, 64
    %v4332 = vpop.permute.xlu0 %4331
    %4333 = vrot.lane.b32.xlu0 %v3442, 64
    %v4334 = vpop.permute.xlu0 %4333
    %4335 = vrot.lane.b32.xlu0 %v3444, 64
    %v4336 = vpop.permute.xlu0 %4335
    %4337 = vrot.lane.b32.xlu0 %v4269, 64
    %v4338 = vpop.permute.xlu0 %4337
    %4339 = vrot.lane.b32.xlu0 %v4271, 64
    %v4340 = vpop.permute.xlu0 %4339
    %4341 = vrot.lane.b32.xlu0 %v3452, 64
    %v4342 = vpop.permute.xlu0 %4341
    %4343 = vrot.lane.b32.xlu0 %v3454, 64
    %v4344 = vpop.permute.xlu0 %4343
    %4345 = vrot.lane.b32.xlu0 %v3457, 64
    %v4346 = vpop.permute.xlu0 %4345
    %4347 = vrot.lane.b32.xlu0 %v3459, 64
    %v4348 = vpop.permute.xlu0 %4347
    %4349 = vrot.lane.b32.xlu0 %v3462, 64
    %v4350 = vpop.permute.xlu0 %4349
    %4351 = vrot.lane.b32.xlu0 %v3464, 64
    %v4352 = vpop.permute.xlu0 %4351
    %4353 = vrot.lane.b32.xlu0 %v3467, 64
    %v4354 = vpop.permute.xlu0 %4353
    %4355 = vrot.lane.b32.xlu0 %v3469, 64
    %v4356 = vpop.permute.xlu0 %4355
    %4357 = vrot.lane.b32.xlu0 %v3472, 64
    %v4358 = vpop.permute.xlu0 %4357
    %4359 = vrot.lane.b32.xlu0 %v3474, 64
    %v4360 = vpop.permute.xlu0 %4359
    %4361 = vrot.lane.b32.xlu0 %v3477, 64
    %v4362 = vpop.permute.xlu0 %4361
    %4363 = vrot.lane.b32.xlu0 %v3479, 64
    %v4364 = vpop.permute.xlu0 %4363
    %4365 = vrot.lane.b32.xlu0 %v3482, 64
    %v4366 = vpop.permute.xlu0 %4365
    %4367 = vrot.lane.b32.xlu0 %v3484, 64
    %v4368 = vpop.permute.xlu0 %4367
    %4369 = vrot.lane.b32.xlu0 %v3487, 64
    %v4370 = vpop.permute.xlu0 %4369
    %4371 = vrot.lane.b32.xlu0 %v3489, 64
    %v4372 = vpop.permute.xlu0 %4371
    %4373 = vrot.lane.b32.xlu0 %v3492, 64
    %v4374 = vpop.permute.xlu0 %4373
    %4375 = vrot.lane.b32.xlu0 %v3494, 64
    %v4376 = vpop.permute.xlu0 %4375
    %4377 = vrot.lane.b32.xlu0 %v3497, 64
    %v4378 = vpop.permute.xlu0 %4377
    %4379 = vrot.lane.b32.xlu0 %v3499, 64
    %v4380 = vpop.permute.xlu0 %4379
    %4381 = vrot.lane.b32.xlu0 %v3502, 64
    %v4382 = vpop.permute.xlu0 %4381
    %4383 = vrot.lane.b32.xlu0 %v3504, 64
    %v4384 = vpop.permute.xlu0 %4383
    %4385 = vrot.lane.b32.xlu0 %v3507, 64
    %v4386 = vpop.permute.xlu0 %4385
    %4387 = vrot.lane.b32.xlu0 %v3509, 64
    %v4388 = vpop.permute.xlu0 %4387
    %4389 = vrot.lane.b32.xlu0 %v3512, 64
    %v4390 = vpop.permute.xlu0 %4389
    %4391 = vrot.lane.b32.xlu0 %v3514, 64
    %v4392 = vpop.permute.xlu0 %4391
    %4393 = vrot.lane.b32.xlu0 %v3517, 64
    %v4394 = vpop.permute.xlu0 %4393
    %4395 = vrot.lane.b32.xlu0 %v3519, 64
    %v4396 = vpop.permute.xlu0 %4395
    %4397 = vrot.lane.b32.xlu0 %v3522, 64
    %v4398 = vpop.permute.xlu0 %4397
    %4399 = vrot.lane.b32.xlu0 %v3524, 64
    %v4400 = vpop.permute.xlu0 %4399
    %4401 = vrot.lane.b32.xlu0 %v4274, 64
    %v4402 = vpop.permute.xlu0 %4401
    %4403 = vrot.lane.b32.xlu0 %v4276, 64
    %v4404 = vpop.permute.xlu0 %4403
    %v4469 = vrot.slane %v3209, 2
    %v4470 = vrot.slane %v3210, 2
    %v4471 = vsel %vm572, %v4469, %v4470
    %v4472 = vrot.slane %v3211, 2
    %v4473 = vsel %vm572, %v4470, %v4472
    %v4474 = vrot.slane %v3263, 2
    %v4475 = vrot.slane %v3264, 2
    %v4476 = vsel %vm572, %v4474, %v4475
    %v4477 = vrot.slane %v3265, 2
    %v4478 = vsel %vm572, %v4475, %v4477
    %4479 = vrot.lane.b32.xlu0 %v3724, 80
    %v4480 = vpop.permute.xlu0 %4479
    %4481 = vrot.lane.b32.xlu0 %v3726, 80
    %v4482 = vpop.permute.xlu0 %4481
    %4483 = vrot.lane.b32.xlu0 %v3729, 80
    %v4484 = vpop.permute.xlu0 %4483
    %4485 = vrot.lane.b32.xlu0 %v3731, 80
    %v4486 = vpop.permute.xlu0 %4485
    %4487 = vrot.lane.b32.xlu0 %v3734, 80
    %v4488 = vpop.permute.xlu0 %4487
    %4489 = vrot.lane.b32.xlu0 %v3736, 80
    %v4490 = vpop.permute.xlu0 %4489
    %4491 = vrot.lane.b32.xlu0 %v3739, 80
    %v4492 = vpop.permute.xlu0 %4491
    %4493 = vrot.lane.b32.xlu0 %v3741, 80
    %v4494 = vpop.permute.xlu0 %4493
    %4495 = vrot.lane.b32.xlu0 %v3744, 80
    %v4496 = vpop.permute.xlu0 %4495
    %4497 = vrot.lane.b32.xlu0 %v3746, 80
    %v4498 = vpop.permute.xlu0 %4497
    %4499 = vrot.lane.b32.xlu0 %v3749, 80
    %v4500 = vpop.permute.xlu0 %4499
    %4501 = vrot.lane.b32.xlu0 %v3751, 80
    %v4502 = vpop.permute.xlu0 %4501
    %4503 = vrot.lane.b32.xlu0 %v3754, 80
    %v4504 = vpop.permute.xlu0 %4503
    %4505 = vrot.lane.b32.xlu0 %v3756, 80
    %v4506 = vpop.permute.xlu0 %4505
    %4507 = vrot.lane.b32.xlu0 %v3759, 80
    %v4508 = vpop.permute.xlu0 %4507
    %4509 = vrot.lane.b32.xlu0 %v3761, 80
    %v4510 = vpop.permute.xlu0 %4509
    %4511 = vrot.lane.b32.xlu0 %v3764, 80
    %v4512 = vpop.permute.xlu0 %4511
    %4513 = vrot.lane.b32.xlu0 %v3766, 80
    %v4514 = vpop.permute.xlu0 %4513
    %4515 = vrot.lane.b32.xlu0 %v3769, 80
    %v4516 = vpop.permute.xlu0 %4515
    %4517 = vrot.lane.b32.xlu0 %v3771, 80
    %v4518 = vpop.permute.xlu0 %4517
    %4519 = vrot.lane.b32.xlu0 %v3774, 80
    %v4520 = vpop.permute.xlu0 %4519
    %4521 = vrot.lane.b32.xlu0 %v3776, 80
    %v4522 = vpop.permute.xlu0 %4521
    %4523 = vrot.lane.b32.xlu0 %v3779, 80
    %v4524 = vpop.permute.xlu0 %4523
    %4525 = vrot.lane.b32.xlu0 %v3781, 80
    %v4526 = vpop.permute.xlu0 %4525
    %4527 = vrot.lane.b32.xlu0 %v3784, 80
    %v4528 = vpop.permute.xlu0 %4527
    %4529 = vrot.lane.b32.xlu0 %v3786, 80
    %v4530 = vpop.permute.xlu0 %4529
    %4531 = vrot.lane.b32.xlu0 %v3789, 80
    %v4532 = vpop.permute.xlu0 %4531
    %4533 = vrot.lane.b32.xlu0 %v3791, 80
    %v4534 = vpop.permute.xlu0 %4533
    %4535 = vrot.lane.b32.xlu0 %v3794, 80
    %v4536 = vpop.permute.xlu0 %4535
    %4537 = vrot.lane.b32.xlu0 %v3796, 80
    %v4538 = vpop.permute.xlu0 %4537
    %4539 = vrot.lane.b32.xlu0 %v4471, 80
    %v4540 = vpop.permute.xlu0 %4539
    %4541 = vrot.lane.b32.xlu0 %v4473, 80
    %v4542 = vpop.permute.xlu0 %4541
    %4543 = vrot.lane.b32.xlu0 %v3804, 80
    %v4544 = vpop.permute.xlu0 %4543
    %4545 = vrot.lane.b32.xlu0 %v3806, 80
    %v4546 = vpop.permute.xlu0 %4545
    %4547 = vrot.lane.b32.xlu0 %v3809, 80
    %v4548 = vpop.permute.xlu0 %4547
    %4549 = vrot.lane.b32.xlu0 %v3811, 80
    %v4550 = vpop.permute.xlu0 %4549
    %4551 = vrot.lane.b32.xlu0 %v3814, 80
    %v4552 = vpop.permute.xlu0 %4551
    %4553 = vrot.lane.b32.xlu0 %v3816, 80
    %v4554 = vpop.permute.xlu0 %4553
    %4555 = vrot.lane.b32.xlu0 %v3819, 80
    %v4556 = vpop.permute.xlu0 %4555
    %4557 = vrot.lane.b32.xlu0 %v3821, 80
    %v4558 = vpop.permute.xlu0 %4557
    %4559 = vrot.lane.b32.xlu0 %v3824, 80
    %v4560 = vpop.permute.xlu0 %4559
    %4561 = vrot.lane.b32.xlu0 %v3826, 80
    %v4562 = vpop.permute.xlu0 %4561
    %4563 = vrot.lane.b32.xlu0 %v3829, 80
    %v4564 = vpop.permute.xlu0 %4563
    %4565 = vrot.lane.b32.xlu0 %v3831, 80
    %v4566 = vpop.permute.xlu0 %4565
    %4567 = vrot.lane.b32.xlu0 %v3834, 80
    %v4568 = vpop.permute.xlu0 %4567
    %4569 = vrot.lane.b32.xlu0 %v3836, 80
    %v4570 = vpop.permute.xlu0 %4569
    %4571 = vrot.lane.b32.xlu0 %v3839, 80
    %v4572 = vpop.permute.xlu0 %4571
    %4573 = vrot.lane.b32.xlu0 %v3841, 80
    %v4574 = vpop.permute.xlu0 %4573
    %4575 = vrot.lane.b32.xlu0 %v3844, 80
    %v4576 = vpop.permute.xlu0 %4575
    %4577 = vrot.lane.b32.xlu0 %v3846, 80
    %v4578 = vpop.permute.xlu0 %4577
    %4579 = vrot.lane.b32.xlu0 %v3849, 80
    %v4580 = vpop.permute.xlu0 %4579
    %4581 = vrot.lane.b32.xlu0 %v3851, 80
    %v4582 = vpop.permute.xlu0 %4581
    %4583 = vrot.lane.b32.xlu0 %v3854, 80
    %v4584 = vpop.permute.xlu0 %4583
    %4585 = vrot.lane.b32.xlu0 %v3856, 80
    %v4586 = vpop.permute.xlu0 %4585
    %4587 = vrot.lane.b32.xlu0 %v3859, 80
    %v4588 = vpop.permute.xlu0 %4587
    %4589 = vrot.lane.b32.xlu0 %v3861, 80
    %v4590 = vpop.permute.xlu0 %4589
    %4591 = vrot.lane.b32.xlu0 %v3864, 80
    %v4592 = vpop.permute.xlu0 %4591
    %4593 = vrot.lane.b32.xlu0 %v3866, 80
    %v4594 = vpop.permute.xlu0 %4593
    %4595 = vrot.lane.b32.xlu0 %v3869, 80
    %v4596 = vpop.permute.xlu0 %4595
    %4597 = vrot.lane.b32.xlu0 %v3871, 80
    %v4598 = vpop.permute.xlu0 %4597
    %4599 = vrot.lane.b32.xlu0 %v3874, 80
    %v4600 = vpop.permute.xlu0 %4599
    %4601 = vrot.lane.b32.xlu0 %v3876, 80
    %v4602 = vpop.permute.xlu0 %4601
    %4603 = vrot.lane.b32.xlu0 %v4476, 80
    %v4604 = vpop.permute.xlu0 %4603
    %4605 = vrot.lane.b32.xlu0 %v4478, 80
    %v4606 = vpop.permute.xlu0 %4605
    %4675 = vrot.lane.b32.xlu0 %v3167, 96
    %v4676 = vpop.permute.xlu0 %4675
    %4677 = vrot.lane.b32.xlu0 %v3168, 96
    %v4678 = vpop.permute.xlu0 %4677
    %4679 = vrot.lane.b32.xlu0 %v3170, 96
    %v4680 = vpop.permute.xlu0 %4679
    %4681 = vrot.lane.b32.xlu0 %v3171, 96
    %v4682 = vpop.permute.xlu0 %4681
    %4683 = vrot.lane.b32.xlu0 %v3173, 96
    %v4684 = vpop.permute.xlu0 %4683
    %4685 = vrot.lane.b32.xlu0 %v3174, 96
    %v4686 = vpop.permute.xlu0 %4685
    %4687 = vrot.lane.b32.xlu0 %v3176, 96
    %v4688 = vpop.permute.xlu0 %4687
    %4689 = vrot.lane.b32.xlu0 %v3177, 96
    %v4690 = vpop.permute.xlu0 %4689
    %4691 = vrot.lane.b32.xlu0 %v3179, 96
    %v4692 = vpop.permute.xlu0 %4691
    %4693 = vrot.lane.b32.xlu0 %v3180, 96
    %v4694 = vpop.permute.xlu0 %4693
    %4695 = vrot.lane.b32.xlu0 %v3182, 96
    %v4696 = vpop.permute.xlu0 %4695
    %4697 = vrot.lane.b32.xlu0 %v3183, 96
    %v4698 = vpop.permute.xlu0 %4697
    %4699 = vrot.lane.b32.xlu0 %v3185, 96
    %v4700 = vpop.permute.xlu0 %4699
    %4701 = vrot.lane.b32.xlu0 %v3186, 96
    %v4702 = vpop.permute.xlu0 %4701
    %4703 = vrot.lane.b32.xlu0 %v3188, 96
    %v4704 = vpop.permute.xlu0 %4703
    %4705 = vrot.lane.b32.xlu0 %v3189, 96
    %v4706 = vpop.permute.xlu0 %4705
    %4707 = vrot.lane.b32.xlu0 %v3191, 96
    %v4708 = vpop.permute.xlu0 %4707
    %4709 = vrot.lane.b32.xlu0 %v3192, 96
    %v4710 = vpop.permute.xlu0 %4709
    %4711 = vrot.lane.b32.xlu0 %v3194, 96
    %v4712 = vpop.permute.xlu0 %4711
    %4713 = vrot.lane.b32.xlu0 %v3195, 96
    %v4714 = vpop.permute.xlu0 %4713
    %4715 = vrot.lane.b32.xlu0 %v3197, 96
    %v4716 = vpop.permute.xlu0 %4715
    %4717 = vrot.lane.b32.xlu0 %v3198, 96
    %v4718 = vpop.permute.xlu0 %4717
    %4719 = vrot.lane.b32.xlu0 %v3200, 96
    %v4720 = vpop.permute.xlu0 %4719
    %4721 = vrot.lane.b32.xlu0 %v3201, 96
    %v4722 = vpop.permute.xlu0 %4721
    %4723 = vrot.lane.b32.xlu0 %v3203, 96
    %v4724 = vpop.permute.xlu0 %4723
    %4725 = vrot.lane.b32.xlu0 %v3204, 96
    %v4726 = vpop.permute.xlu0 %4725
    %4727 = vrot.lane.b32.xlu0 %v3206, 96
    %v4728 = vpop.permute.xlu0 %4727
    %4729 = vrot.lane.b32.xlu0 %v3207, 96
    %v4730 = vpop.permute.xlu0 %4729
    %4731 = vrot.lane.b32.xlu0 %v3209, 96
    %v4732 = vpop.permute.xlu0 %4731
    %4733 = vrot.lane.b32.xlu0 %v3210, 96
    %v4734 = vpop.permute.xlu0 %4733
    %4735 = vrot.lane.b32.xlu0 %v3212, 96
    %v4736 = vpop.permute.xlu0 %4735
    %4737 = vrot.lane.b32.xlu0 %v3213, 96
    %v4738 = vpop.permute.xlu0 %4737
    %4739 = vrot.lane.b32.xlu0 %v3221, 96
    %v4740 = vpop.permute.xlu0 %4739
    %4741 = vrot.lane.b32.xlu0 %v3222, 96
    %v4742 = vpop.permute.xlu0 %4741
    %4743 = vrot.lane.b32.xlu0 %v3224, 96
    %v4744 = vpop.permute.xlu0 %4743
    %4745 = vrot.lane.b32.xlu0 %v3225, 96
    %v4746 = vpop.permute.xlu0 %4745
    %4747 = vrot.lane.b32.xlu0 %v3227, 96
    %v4748 = vpop.permute.xlu0 %4747
    %4749 = vrot.lane.b32.xlu0 %v3228, 96
    %v4750 = vpop.permute.xlu0 %4749
    %4751 = vrot.lane.b32.xlu0 %v3230, 96
    %v4752 = vpop.permute.xlu0 %4751
    %4753 = vrot.lane.b32.xlu0 %v3231, 96
    %v4754 = vpop.permute.xlu0 %4753
    %4755 = vrot.lane.b32.xlu0 %v3233, 96
    %v4756 = vpop.permute.xlu0 %4755
    %4757 = vrot.lane.b32.xlu0 %v3234, 96
    %v4758 = vpop.permute.xlu0 %4757
    %4759 = vrot.lane.b32.xlu0 %v3236, 96
    %v4760 = vpop.permute.xlu0 %4759
    %4761 = vrot.lane.b32.xlu0 %v3237, 96
    %v4762 = vpop.permute.xlu0 %4761
    %4763 = vrot.lane.b32.xlu0 %v3239, 96
    %v4764 = vpop.permute.xlu0 %4763
    %4765 = vrot.lane.b32.xlu0 %v3240, 96
    %v4766 = vpop.permute.xlu0 %4765
    %4767 = vrot.lane.b32.xlu0 %v3242, 96
    %v4768 = vpop.permute.xlu0 %4767
    %4769 = vrot.lane.b32.xlu0 %v3243, 96
    %v4770 = vpop.permute.xlu0 %4769
    %4771 = vrot.lane.b32.xlu0 %v3245, 96
    %v4772 = vpop.permute.xlu0 %4771
    %4773 = vrot.lane.b32.xlu0 %v3246, 96
    %v4774 = vpop.permute.xlu0 %4773
    %4775 = vrot.lane.b32.xlu0 %v3248, 96
    %v4776 = vpop.permute.xlu0 %4775
    %4777 = vrot.lane.b32.xlu0 %v3249, 96
    %v4778 = vpop.permute.xlu0 %4777
    %4779 = vrot.lane.b32.xlu0 %v3251, 96
    %v4780 = vpop.permute.xlu0 %4779
    %4781 = vrot.lane.b32.xlu0 %v3252, 96
    %v4782 = vpop.permute.xlu0 %4781
    %4783 = vrot.lane.b32.xlu0 %v3254, 96
    %v4784 = vpop.permute.xlu0 %4783
    %4785 = vrot.lane.b32.xlu0 %v3255, 96
    %v4786 = vpop.permute.xlu0 %4785
    %4787 = vrot.lane.b32.xlu0 %v3257, 96
    %v4788 = vpop.permute.xlu0 %4787
    %4789 = vrot.lane.b32.xlu0 %v3258, 96
    %v4790 = vpop.permute.xlu0 %4789
    %4791 = vrot.lane.b32.xlu0 %v3260, 96
    %v4792 = vpop.permute.xlu0 %4791
    %4793 = vrot.lane.b32.xlu0 %v3261, 96
    %v4794 = vpop.permute.xlu0 %4793
    %4795 = vrot.lane.b32.xlu0 %v3263, 96
    %v4796 = vpop.permute.xlu0 %4795
    %4797 = vrot.lane.b32.xlu0 %v3264, 96
    %v4798 = vpop.permute.xlu0 %4797
    %4799 = vrot.lane.b32.xlu0 %v3266, 96
    %v4800 = vpop.permute.xlu0 %4799
    %4801 = vrot.lane.b32.xlu0 %v3267, 96
    %v4802 = vpop.permute.xlu0 %4801
    %v4869 = vrot.slane %v3212, 1
    %v4870 = vrot.slane %v3213, 1
    %v4871 = vsel %vm219, %v4869, %v4870
    %v4872 = vrot.slane %v3214, 1
    %v4873 = vsel %vm219, %v4870, %v4872
    %v4874 = vrot.slane %v3266, 1
    %v4875 = vrot.slane %v3267, 1
    %v4876 = vsel %vm219, %v4874, %v4875
    %v4877 = vrot.slane %v3268, 1
    %v4878 = vsel %vm219, %v4875, %v4877
    %4879 = vrot.lane.b32.xlu0 %v3377, 112
    %v4880 = vpop.permute.xlu0 %4879
    %4881 = vrot.lane.b32.xlu0 %v3379, 112
    %v4882 = vpop.permute.xlu0 %4881
    %4883 = vrot.lane.b32.xlu0 %v3382, 112
    %v4884 = vpop.permute.xlu0 %4883
    %4885 = vrot.lane.b32.xlu0 %v3384, 112
    %v4886 = vpop.permute.xlu0 %4885
    %4887 = vrot.lane.b32.xlu0 %v3387, 112
    %v4888 = vpop.permute.xlu0 %4887
    %4889 = vrot.lane.b32.xlu0 %v3389, 112
    %v4890 = vpop.permute.xlu0 %4889
    %4891 = vrot.lane.b32.xlu0 %v3392, 112
    %v4892 = vpop.permute.xlu0 %4891
    %4893 = vrot.lane.b32.xlu0 %v3394, 112
    %v4894 = vpop.permute.xlu0 %4893
    %4895 = vrot.lane.b32.xlu0 %v3397, 112
    %v4896 = vpop.permute.xlu0 %4895
    %4897 = vrot.lane.b32.xlu0 %v3399, 112
    %v4898 = vpop.permute.xlu0 %4897
    %4899 = vrot.lane.b32.xlu0 %v3402, 112
    %v4900 = vpop.permute.xlu0 %4899
    %4901 = vrot.lane.b32.xlu0 %v3404, 112
    %v4902 = vpop.permute.xlu0 %4901
    %4903 = vrot.lane.b32.xlu0 %v3407, 112
    %v4904 = vpop.permute.xlu0 %4903
    %4905 = vrot.lane.b32.xlu0 %v3409, 112
    %v4906 = vpop.permute.xlu0 %4905
    %4907 = vrot.lane.b32.xlu0 %v3412, 112
    %v4908 = vpop.permute.xlu0 %4907
    %4909 = vrot.lane.b32.xlu0 %v3414, 112
    %v4910 = vpop.permute.xlu0 %4909
    %4911 = vrot.lane.b32.xlu0 %v3417, 112
    %v4912 = vpop.permute.xlu0 %4911
    %4913 = vrot.lane.b32.xlu0 %v3419, 112
    %v4914 = vpop.permute.xlu0 %4913
    %4915 = vrot.lane.b32.xlu0 %v3422, 112
    %v4916 = vpop.permute.xlu0 %4915
    %4917 = vrot.lane.b32.xlu0 %v3424, 112
    %v4918 = vpop.permute.xlu0 %4917
    %4919 = vrot.lane.b32.xlu0 %v3427, 112
    %v4920 = vpop.permute.xlu0 %4919
    %4921 = vrot.lane.b32.xlu0 %v3429, 112
    %v4922 = vpop.permute.xlu0 %4921
    %4923 = vrot.lane.b32.xlu0 %v3432, 112
    %v4924 = vpop.permute.xlu0 %4923
    %4925 = vrot.lane.b32.xlu0 %v3434, 112
    %v4926 = vpop.permute.xlu0 %4925
    %4927 = vrot.lane.b32.xlu0 %v3437, 112
    %v4928 = vpop.permute.xlu0 %4927
    %4929 = vrot.lane.b32.xlu0 %v3439, 112
    %v4930 = vpop.permute.xlu0 %4929
    %4931 = vrot.lane.b32.xlu0 %v3442, 112
    %v4932 = vpop.permute.xlu0 %4931
    %4933 = vrot.lane.b32.xlu0 %v3444, 112
    %v4934 = vpop.permute.xlu0 %4933
    %4935 = vrot.lane.b32.xlu0 %v4269, 112
    %v4936 = vpop.permute.xlu0 %4935
    %4937 = vrot.lane.b32.xlu0 %v4271, 112
    %v4938 = vpop.permute.xlu0 %4937
    %4939 = vrot.lane.b32.xlu0 %v4871, 112
    %v4940 = vpop.permute.xlu0 %4939
    %4941 = vrot.lane.b32.xlu0 %v4873, 112
    %v4942 = vpop.permute.xlu0 %4941
    %4943 = vrot.lane.b32.xlu0 %v3457, 112
    %v4944 = vpop.permute.xlu0 %4943
    %4945 = vrot.lane.b32.xlu0 %v3459, 112
    %v4946 = vpop.permute.xlu0 %4945
    %4947 = vrot.lane.b32.xlu0 %v3462, 112
    %v4948 = vpop.permute.xlu0 %4947
    %4949 = vrot.lane.b32.xlu0 %v3464, 112
    %v4950 = vpop.permute.xlu0 %4949
    %4951 = vrot.lane.b32.xlu0 %v3467, 112
    %v4952 = vpop.permute.xlu0 %4951
    %4953 = vrot.lane.b32.xlu0 %v3469, 112
    %v4954 = vpop.permute.xlu0 %4953
    %4955 = vrot.lane.b32.xlu0 %v3472, 112
    %v4956 = vpop.permute.xlu0 %4955
    %4957 = vrot.lane.b32.xlu0 %v3474, 112
    %v4958 = vpop.permute.xlu0 %4957
    %4959 = vrot.lane.b32.xlu0 %v3477, 112
    %v4960 = vpop.permute.xlu0 %4959
    %4961 = vrot.lane.b32.xlu0 %v3479, 112
    %v4962 = vpop.permute.xlu0 %4961
    %4963 = vrot.lane.b32.xlu0 %v3482, 112
    %v4964 = vpop.permute.xlu0 %4963
    %4965 = vrot.lane.b32.xlu0 %v3484, 112
    %v4966 = vpop.permute.xlu0 %4965
    %4967 = vrot.lane.b32.xlu0 %v3487, 112
    %v4968 = vpop.permute.xlu0 %4967
    %4969 = vrot.lane.b32.xlu0 %v3489, 112
    %v4970 = vpop.permute.xlu0 %4969
    %4971 = vrot.lane.b32.xlu0 %v3492, 112
    %v4972 = vpop.permute.xlu0 %4971
    %4973 = vrot.lane.b32.xlu0 %v3494, 112
    %v4974 = vpop.permute.xlu0 %4973
    %4975 = vrot.lane.b32.xlu0 %v3497, 112
    %v4976 = vpop.permute.xlu0 %4975
    %4977 = vrot.lane.b32.xlu0 %v3499, 112
    %v4978 = vpop.permute.xlu0 %4977
    %4979 = vrot.lane.b32.xlu0 %v3502, 112
    %v4980 = vpop.permute.xlu0 %4979
    %4981 = vrot.lane.b32.xlu0 %v3504, 112
    %v4982 = vpop.permute.xlu0 %4981
    %4983 = vrot.lane.b32.xlu0 %v3507, 112
    %v4984 = vpop.permute.xlu0 %4983
    %4985 = vrot.lane.b32.xlu0 %v3509, 112
    %v4986 = vpop.permute.xlu0 %4985
    %4987 = vrot.lane.b32.xlu0 %v3512, 112
    %v4988 = vpop.permute.xlu0 %4987
    %4989 = vrot.lane.b32.xlu0 %v3514, 112
    %v4990 = vpop.permute.xlu0 %4989
    %4991 = vrot.lane.b32.xlu0 %v3517, 112
    %v4992 = vpop.permute.xlu0 %4991
    %4993 = vrot.lane.b32.xlu0 %v3519, 112
    %v4994 = vpop.permute.xlu0 %4993
    %4995 = vrot.lane.b32.xlu0 %v3522, 112
    %v4996 = vpop.permute.xlu0 %4995
    %4997 = vrot.lane.b32.xlu0 %v3524, 112
    %v4998 = vpop.permute.xlu0 %4997
    %4999 = vrot.lane.b32.xlu0 %v4274, 112
    %v5000 = vpop.permute.xlu0 %4999
    %5001 = vrot.lane.b32.xlu0 %v4276, 112
    %v5002 = vpop.permute.xlu0 %5001
    %5003 = vrot.lane.b32.xlu0 %v4876, 112
    %v5004 = vpop.permute.xlu0 %5003
    %5005 = vrot.lane.b32.xlu0 %v4878, 112
    %v5006 = vpop.permute.xlu0 %5005
    %v5071 = vrot.slane %v3212, 2
    %v5072 = vrot.slane %v3213, 2
    %v5073 = vsel %vm572, %v5071, %v5072
    %v5074 = vrot.slane %v3214, 2
    %v5075 = vsel %vm572, %v5072, %v5074
    %v5076 = vrot.slane %v3266, 2
    %v5077 = vrot.slane %v3267, 2
    %v5078 = vsel %vm572, %v5076, %v5077
    %v5079 = vrot.slane %v3268, 2
    %v5080 = vsel %vm572, %v5077, %v5079
    %v5081 = vsel %vm1937, %v3161, %v3526
    %v5082 = vsel %vm1937, %v3162, %v3528
    %v5083 = vsel %vm1937, %v3164, %v3530
    %v5084 = vsel %vm1937, %v3165, %v3532
    %v5085 = vsel %vm1937, %v3167, %v3534
    %v5086 = vsel %vm1937, %v3168, %v3536
    %v5087 = vsel %vm1937, %v3170, %v3538
    %v5088 = vsel %vm1937, %v3171, %v3540
    %v5089 = vsel %vm1937, %v3173, %v3542
    %v5090 = vsel %vm1937, %v3174, %v3544
    %v5091 = vsel %vm1937, %v3176, %v3546
    %v5092 = vsel %vm1937, %v3177, %v3548
    %v5093 = vsel %vm1937, %v3179, %v3550
    %v5094 = vsel %vm1937, %v3180, %v3552
    %v5095 = vsel %vm1937, %v3182, %v3554
    %v5096 = vsel %vm1937, %v3183, %v3556
    %v5097 = vsel %vm1937, %v3185, %v3558
    %v5098 = vsel %vm1937, %v3186, %v3560
    %v5099 = vsel %vm1937, %v3188, %v3562
    %v5100 = vsel %vm1937, %v3189, %v3564
    %v5101 = vsel %vm1937, %v3191, %v3566
    %v5102 = vsel %vm1937, %v3192, %v3568
    %v5103 = vsel %vm1937, %v3194, %v3570
    %v5104 = vsel %vm1937, %v3195, %v3572
    %v5105 = vsel %vm1937, %v3197, %v3574
    %v5106 = vsel %vm1937, %v3198, %v3576
    %v5107 = vsel %vm1937, %v3200, %v3578
    %v5108 = vsel %vm1937, %v3201, %v3580
    %v5109 = vsel %vm1937, %v3203, %v3582
    %v5110 = vsel %vm1937, %v3204, %v3584
    %v5111 = vsel %vm1937, %v3206, %v3586
    %v5112 = vsel %vm1937, %v3207, %v3588
    %v5113 = vsel %vm1937, %v3215, %v3590
    %v5114 = vsel %vm1937, %v3216, %v3592
    %v5115 = vsel %vm1937, %v3218, %v3594
    %v5116 = vsel %vm1937, %v3219, %v3596
    %v5117 = vsel %vm1937, %v3221, %v3598
    %v5118 = vsel %vm1937, %v3222, %v3600
    %v5119 = vsel %vm1937, %v3224, %v3602
    %v5120 = vsel %vm1937, %v3225, %v3604
    %v5121 = vsel %vm1937, %v3227, %v3606
    %v5122 = vsel %vm1937, %v3228, %v3608
    %v5123 = vsel %vm1937, %v3230, %v3610
    %v5124 = vsel %vm1937, %v3231, %v3612
    %v5125 = vsel %vm1937, %v3233, %v3614
    %v5126 = vsel %vm1937, %v3234, %v3616
    %v5127 = vsel %vm1937, %v3236, %v3618
    %v5128 = vsel %vm1937, %v3237, %v3620
    %v5129 = vsel %vm1937, %v3239, %v3622
    %v5130 = vsel %vm1937, %v3240, %v3624
    %v5131 = vsel %vm1937, %v3242, %v3626
    %v5132 = vsel %vm1937, %v3243, %v3628
    %v5133 = vsel %vm1937, %v3245, %v3630
    %v5134 = vsel %vm1937, %v3246, %v3632
    %v5135 = vsel %vm1937, %v3248, %v3634
    %v5136 = vsel %vm1937, %v3249, %v3636
    %v5137 = vsel %vm1937, %v3251, %v3638
    %v5138 = vsel %vm1937, %v3252, %v3640
    %v5139 = vsel %vm1937, %v3254, %v3642
    %v5140 = vsel %vm1937, %v3255, %v3644
    %v5141 = vsel %vm1937, %v3257, %v3646
    %v5142 = vsel %vm1937, %v3258, %v3648
    %v5143 = vsel %vm1937, %v3260, %v3650
    %v5144 = vsel %vm1937, %v3261, %v3652
    %v5145 = vsel %vm2002, %v5081, %v3878
    %v5146 = vsel %vm2002, %v5082, %v3880
    %v5147 = vsel %vm2002, %v5083, %v3882
    %v5148 = vsel %vm2002, %v5084, %v3884
    %v5149 = vsel %vm2002, %v5085, %v3886
    %v5150 = vsel %vm2002, %v5086, %v3888
    %v5151 = vsel %vm2002, %v5087, %v3890
    %v5152 = vsel %vm2002, %v5088, %v3892
    %v5153 = vsel %vm2002, %v5089, %v3894
    %v5154 = vsel %vm2002, %v5090, %v3896
    %v5155 = vsel %vm2002, %v5091, %v3898
    %v5156 = vsel %vm2002, %v5092, %v3900
    %v5157 = vsel %vm2002, %v5093, %v3902
    %v5158 = vsel %vm2002, %v5094, %v3904
    %v5159 = vsel %vm2002, %v5095, %v3906
    %v5160 = vsel %vm2002, %v5096, %v3908
    %v5161 = vsel %vm2002, %v5097, %v3910
    %v5162 = vsel %vm2002, %v5098, %v3912
    %v5163 = vsel %vm2002, %v5099, %v3914
    %v5164 = vsel %vm2002, %v5100, %v3916
    %v5165 = vsel %vm2002, %v5101, %v3918
    %v5166 = vsel %vm2002, %v5102, %v3920
    %v5167 = vsel %vm2002, %v5103, %v3922
    %v5168 = vsel %vm2002, %v5104, %v3924
    %v5169 = vsel %vm2002, %v5105, %v3926
    %v5170 = vsel %vm2002, %v5106, %v3928
    %v5171 = vsel %vm2002, %v5107, %v3930
    %v5172 = vsel %vm2002, %v5108, %v3932
    %v5173 = vsel %vm2002, %v5109, %v3934
    %v5174 = vsel %vm2002, %v5110, %v3936
    %v5175 = vsel %vm2002, %v5111, %v3938
    %v5176 = vsel %vm2002, %v5112, %v3940
    %v5177 = vsel %vm2002, %v5113, %v3942
    %v5178 = vsel %vm2002, %v5114, %v3944
    %v5179 = vsel %vm2002, %v5115, %v3946
    %v5180 = vsel %vm2002, %v5116, %v3948
    %v5181 = vsel %vm2002, %v5117, %v3950
    %v5182 = vsel %vm2002, %v5118, %v3952
    %v5183 = vsel %vm2002, %v5119, %v3954
    %v5184 = vsel %vm2002, %v5120, %v3956
    %v5185 = vsel %vm2002, %v5121, %v3958
    %v5186 = vsel %vm2002, %v5122, %v3960
    %v5187 = vsel %vm2002, %v5123, %v3962
    %v5188 = vsel %vm2002, %v5124, %v3964
    %v5189 = vsel %vm2002, %v5125, %v3966
    %v5190 = vsel %vm2002, %v5126, %v3968
    %v5191 = vsel %vm2002, %v5127, %v3970
    %v5192 = vsel %vm2002, %v5128, %v3972
    %v5193 = vsel %vm2002, %v5129, %v3974
    %v5194 = vsel %vm2002, %v5130, %v3976
    %v5195 = vsel %vm2002, %v5131, %v3978
    %v5196 = vsel %vm2002, %v5132, %v3980
    %v5197 = vsel %vm2002, %v5133, %v3982
    %v5198 = vsel %vm2002, %v5134, %v3984
    %v5199 = vsel %vm2002, %v5135, %v3986
    %v5200 = vsel %vm2002, %v5136, %v3988
    %v5201 = vsel %vm2002, %v5137, %v3990
    %v5202 = vsel %vm2002, %v5138, %v3992
    %v5203 = vsel %vm2002, %v5139, %v3994
    %v5204 = vsel %vm2002, %v5140, %v3996
    %v5205 = vsel %vm2002, %v5141, %v3998
    %v5206 = vsel %vm2002, %v5142, %v4000
    %v5207 = vsel %vm2002, %v5143, %v4002
    %v5208 = vsel %vm2002, %v5144, %v4004
    %v5209 = vsel %vm2067, %v5145, %v4074
    %v5210 = vsel %vm2067, %v5146, %v4076
    %v5211 = vsel %vm2067, %v5147, %v4078
    %v5212 = vsel %vm2067, %v5148, %v4080
    %v5213 = vsel %vm2067, %v5149, %v4082
    %v5214 = vsel %vm2067, %v5150, %v4084
    %v5215 = vsel %vm2067, %v5151, %v4086
    %v5216 = vsel %vm2067, %v5152, %v4088
    %v5217 = vsel %vm2067, %v5153, %v4090
    %v5218 = vsel %vm2067, %v5154, %v4092
    %v5219 = vsel %vm2067, %v5155, %v4094
    %v5220 = vsel %vm2067, %v5156, %v4096
    %v5221 = vsel %vm2067, %v5157, %v4098
    %v5222 = vsel %vm2067, %v5158, %v4100
    %v5223 = vsel %vm2067, %v5159, %v4102
    %v5224 = vsel %vm2067, %v5160, %v4104
    %v5225 = vsel %vm2067, %v5161, %v4106
    %v5226 = vsel %vm2067, %v5162, %v4108
    %v5227 = vsel %vm2067, %v5163, %v4110
    %v5228 = vsel %vm2067, %v5164, %v4112
    %v5229 = vsel %vm2067, %v5165, %v4114
    %v5230 = vsel %vm2067, %v5166, %v4116
    %v5231 = vsel %vm2067, %v5167, %v4118
    %v5232 = vsel %vm2067, %v5168, %v4120
    %v5233 = vsel %vm2067, %v5169, %v4122
    %v5234 = vsel %vm2067, %v5170, %v4124
    %v5235 = vsel %vm2067, %v5171, %v4126
    %v5236 = vsel %vm2067, %v5172, %v4128
    %v5237 = vsel %vm2067, %v5173, %v4130
    %v5238 = vsel %vm2067, %v5174, %v4132
    %v5239 = vsel %vm2067, %v5175, %v4134
    %v5240 = vsel %vm2067, %v5176, %v4136
    %v5241 = vsel %vm2067, %v5177, %v4138
    %v5242 = vsel %vm2067, %v5178, %v4140
    %v5243 = vsel %vm2067, %v5179, %v4142
    %v5244 = vsel %vm2067, %v5180, %v4144
    %v5245 = vsel %vm2067, %v5181, %v4146
    %v5246 = vsel %vm2067, %v5182, %v4148
    %v5247 = vsel %vm2067, %v5183, %v4150
    %v5248 = vsel %vm2067, %v5184, %v4152
    %v5249 = vsel %vm2067, %v5185, %v4154
    %v5250 = vsel %vm2067, %v5186, %v4156
    %v5251 = vsel %vm2067, %v5187, %v4158
    %v5252 = vsel %vm2067, %v5188, %v4160
    %v5253 = vsel %vm2067, %v5189, %v4162
    %v5254 = vsel %vm2067, %v5190, %v4164
    %v5255 = vsel %vm2067, %v5191, %v4166
    %v5256 = vsel %vm2067, %v5192, %v4168
    %v5257 = vsel %vm2067, %v5193, %v4170
    %v5258 = vsel %vm2067, %v5194, %v4172
    %v5259 = vsel %vm2067, %v5195, %v4174
    %v5260 = vsel %vm2067, %v5196, %v4176
    %v5261 = vsel %vm2067, %v5197, %v4178
    %v5262 = vsel %vm2067, %v5198, %v4180
    %v5263 = vsel %vm2067, %v5199, %v4182
    %v5264 = vsel %vm2067, %v5200, %v4184
    %v5265 = vsel %vm2067, %v5201, %v4186
    %v5266 = vsel %vm2067, %v5202, %v4188
    %v5267 = vsel %vm2067, %v5203, %v4190
    %v5268 = vsel %vm2067, %v5204, %v4192
    %v5269 = vsel %vm2067, %v5205, %v4194
    %v5270 = vsel %vm2067, %v5206, %v4196
    %v5271 = vsel %vm2067, %v5207, %v4198
    %v5272 = vsel %vm2067, %v5208, %v4200
    %v5273 = vsel %vm2132, %v5209, %v4278
    %v5274 = vsel %vm2132, %v5210, %v4280
    %v5275 = vsel %vm2132, %v5211, %v4282
    %v5276 = vsel %vm2132, %v5212, %v4284
    %v5277 = vsel %vm2132, %v5213, %v4286
    %v5278 = vsel %vm2132, %v5214, %v4288
    %v5279 = vsel %vm2132, %v5215, %v4290
    %v5280 = vsel %vm2132, %v5216, %v4292
    %v5281 = vsel %vm2132, %v5217, %v4294
    %v5282 = vsel %vm2132, %v5218, %v4296
    %v5283 = vsel %vm2132, %v5219, %v4298
    %v5284 = vsel %vm2132, %v5220, %v4300
    %v5285 = vsel %vm2132, %v5221, %v4302
    %v5286 = vsel %vm2132, %v5222, %v4304
    %v5287 = vsel %vm2132, %v5223, %v4306
    %v5288 = vsel %vm2132, %v5224, %v4308
    %v5289 = vsel %vm2132, %v5225, %v4310
    %v5290 = vsel %vm2132, %v5226, %v4312
    %v5291 = vsel %vm2132, %v5227, %v4314
    %v5292 = vsel %vm2132, %v5228, %v4316
    %v5293 = vsel %vm2132, %v5229, %v4318
    %v5294 = vsel %vm2132, %v5230, %v4320
    %v5295 = vsel %vm2132, %v5231, %v4322
    %v5296 = vsel %vm2132, %v5232, %v4324
    %v5297 = vsel %vm2132, %v5233, %v4326
    %v5298 = vsel %vm2132, %v5234, %v4328
    %v5299 = vsel %vm2132, %v5235, %v4330
    %v5300 = vsel %vm2132, %v5236, %v4332
    %v5301 = vsel %vm2132, %v5237, %v4334
    %v5302 = vsel %vm2132, %v5238, %v4336
    %v5303 = vsel %vm2132, %v5239, %v4338
    %v5304 = vsel %vm2132, %v5240, %v4340
    %v5305 = vsel %vm2132, %v5241, %v4342
    %v5306 = vsel %vm2132, %v5242, %v4344
    %v5307 = vsel %vm2132, %v5243, %v4346
    %v5308 = vsel %vm2132, %v5244, %v4348
    %v5309 = vsel %vm2132, %v5245, %v4350
    %v5310 = vsel %vm2132, %v5246, %v4352
    %v5311 = vsel %vm2132, %v5247, %v4354
    %v5312 = vsel %vm2132, %v5248, %v4356
    %v5313 = vsel %vm2132, %v5249, %v4358
    %v5314 = vsel %vm2132, %v5250, %v4360
    %v5315 = vsel %vm2132, %v5251, %v4362
    %v5316 = vsel %vm2132, %v5252, %v4364
    %v5317 = vsel %vm2132, %v5253, %v4366
    %v5318 = vsel %vm2132, %v5254, %v4368
    %v5319 = vsel %vm2132, %v5255, %v4370
    %v5320 = vsel %vm2132, %v5256, %v4372
    %v5321 = vsel %vm2132, %v5257, %v4374
    %v5322 = vsel %vm2132, %v5258, %v4376
    %v5323 = vsel %vm2132, %v5259, %v4378
    %v5324 = vsel %vm2132, %v5260, %v4380
    %v5325 = vsel %vm2132, %v5261, %v4382
    %v5326 = vsel %vm2132, %v5262, %v4384
    %v5327 = vsel %vm2132, %v5263, %v4386
    %v5328 = vsel %vm2132, %v5264, %v4388
    %v5329 = vsel %vm2132, %v5265, %v4390
    %v5330 = vsel %vm2132, %v5266, %v4392
    %v5331 = vsel %vm2132, %v5267, %v4394
    %v5332 = vsel %vm2132, %v5268, %v4396
    %v5333 = vsel %vm2132, %v5269, %v4398
    %v5334 = vsel %vm2132, %v5270, %v4400
    %v5335 = vsel %vm2132, %v5271, %v4402
    %v5336 = vsel %vm2132, %v5272, %v4404
    %v5337 = vsel %vm2197, %v5273, %v4480
    %v5338 = vsel %vm2197, %v5274, %v4482
    %v5339 = vsel %vm2197, %v5275, %v4484
    %v5340 = vsel %vm2197, %v5276, %v4486
    %v5341 = vsel %vm2197, %v5277, %v4488
    %v5342 = vsel %vm2197, %v5278, %v4490
    %v5343 = vsel %vm2197, %v5279, %v4492
    %v5344 = vsel %vm2197, %v5280, %v4494
    %v5345 = vsel %vm2197, %v5281, %v4496
    %v5346 = vsel %vm2197, %v5282, %v4498
    %v5347 = vsel %vm2197, %v5283, %v4500
    %v5348 = vsel %vm2197, %v5284, %v4502
    %v5349 = vsel %vm2197, %v5285, %v4504
    %v5350 = vsel %vm2197, %v5286, %v4506
    %v5351 = vsel %vm2197, %v5287, %v4508
    %v5352 = vsel %vm2197, %v5288, %v4510
    %v5353 = vsel %vm2197, %v5289, %v4512
    %v5354 = vsel %vm2197, %v5290, %v4514
    %v5355 = vsel %vm2197, %v5291, %v4516
    %v5356 = vsel %vm2197, %v5292, %v4518
    %v5357 = vsel %vm2197, %v5293, %v4520
    %v5358 = vsel %vm2197, %v5294, %v4522
    %v5359 = vsel %vm2197, %v5295, %v4524
    %v5360 = vsel %vm2197, %v5296, %v4526
    %v5361 = vsel %vm2197, %v5297, %v4528
    %v5362 = vsel %vm2197, %v5298, %v4530
    %v5363 = vsel %vm2197, %v5299, %v4532
    %v5364 = vsel %vm2197, %v5300, %v4534
    %v5365 = vsel %vm2197, %v5301, %v4536
    %v5366 = vsel %vm2197, %v5302, %v4538
    %v5367 = vsel %vm2197, %v5303, %v4540
    %v5368 = vsel %vm2197, %v5304, %v4542
    %v5369 = vsel %vm2197, %v5305, %v4544
    %v5370 = vsel %vm2197, %v5306, %v4546
    %v5371 = vsel %vm2197, %v5307, %v4548
    %v5372 = vsel %vm2197, %v5308, %v4550
    %v5373 = vsel %vm2197, %v5309, %v4552
    %v5374 = vsel %vm2197, %v5310, %v4554
    %v5375 = vsel %vm2197, %v5311, %v4556
    %v5376 = vsel %vm2197, %v5312, %v4558
    %v5377 = vsel %vm2197, %v5313, %v4560
    %v5378 = vsel %vm2197, %v5314, %v4562
    %v5379 = vsel %vm2197, %v5315, %v4564
    %v5380 = vsel %vm2197, %v5316, %v4566
    %v5381 = vsel %vm2197, %v5317, %v4568
    %v5382 = vsel %vm2197, %v5318, %v4570
    %v5383 = vsel %vm2197, %v5319, %v4572
    %v5384 = vsel %vm2197, %v5320, %v4574
    %v5385 = vsel %vm2197, %v5321, %v4576
    %v5386 = vsel %vm2197, %v5322, %v4578
    %v5387 = vsel %vm2197, %v5323, %v4580
    %v5388 = vsel %vm2197, %v5324, %v4582
    %v5389 = vsel %vm2197, %v5325, %v4584
    %v5390 = vsel %vm2197, %v5326, %v4586
    %v5391 = vsel %vm2197, %v5327, %v4588
    %v5392 = vsel %vm2197, %v5328, %v4590
    %v5393 = vsel %vm2197, %v5329, %v4592
    %v5394 = vsel %vm2197, %v5330, %v4594
    %v5395 = vsel %vm2197, %v5331, %v4596
    %v5396 = vsel %vm2197, %v5332, %v4598
    %v5397 = vsel %vm2197, %v5333, %v4600
    %v5398 = vsel %vm2197, %v5334, %v4602
    %v5399 = vsel %vm2197, %v5335, %v4604
    %v5400 = vsel %vm2197, %v5336, %v4606
    %v5401 = vsel %vm2262, %v5337, %v4676
    %v5402 = vsel %vm2262, %v5338, %v4678
    %v5403 = vsel %vm2262, %v5339, %v4680
    %v5404 = vsel %vm2262, %v5340, %v4682
    %v5405 = vsel %vm2262, %v5341, %v4684
    %v5406 = vsel %vm2262, %v5342, %v4686
    %v5407 = vsel %vm2262, %v5343, %v4688
    %v5408 = vsel %vm2262, %v5344, %v4690
    %v5409 = vsel %vm2262, %v5345, %v4692
    %v5410 = vsel %vm2262, %v5346, %v4694
    %v5411 = vsel %vm2262, %v5347, %v4696
    %v5412 = vsel %vm2262, %v5348, %v4698
    %v5413 = vsel %vm2262, %v5349, %v4700
    %v5414 = vsel %vm2262, %v5350, %v4702
    %v5415 = vsel %vm2262, %v5351, %v4704
    %v5416 = vsel %vm2262, %v5352, %v4706
    %v5417 = vsel %vm2262, %v5353, %v4708
    %v5418 = vsel %vm2262, %v5354, %v4710
    %v5419 = vsel %vm2262, %v5355, %v4712
    %v5420 = vsel %vm2262, %v5356, %v4714
    %v5421 = vsel %vm2262, %v5357, %v4716
    %v5422 = vsel %vm2262, %v5358, %v4718
    %v5423 = vsel %vm2262, %v5359, %v4720
    %v5424 = vsel %vm2262, %v5360, %v4722
    %v5425 = vsel %vm2262, %v5361, %v4724
    %v5426 = vsel %vm2262, %v5362, %v4726
    %v5427 = vsel %vm2262, %v5363, %v4728
    %v5428 = vsel %vm2262, %v5364, %v4730
    %v5429 = vsel %vm2262, %v5365, %v4732
    %v5430 = vsel %vm2262, %v5366, %v4734
    %v5431 = vsel %vm2262, %v5367, %v4736
    %v5432 = vsel %vm2262, %v5368, %v4738
    %v5433 = vsel %vm2262, %v5369, %v4740
    %v5434 = vsel %vm2262, %v5370, %v4742
    %v5435 = vsel %vm2262, %v5371, %v4744
    %v5436 = vsel %vm2262, %v5372, %v4746
    %v5437 = vsel %vm2262, %v5373, %v4748
    %v5438 = vsel %vm2262, %v5374, %v4750
    %v5439 = vsel %vm2262, %v5375, %v4752
    %v5440 = vsel %vm2262, %v5376, %v4754
    %v5441 = vsel %vm2262, %v5377, %v4756
    %v5442 = vsel %vm2262, %v5378, %v4758
    %v5443 = vsel %vm2262, %v5379, %v4760
    %v5444 = vsel %vm2262, %v5380, %v4762
    %v5445 = vsel %vm2262, %v5381, %v4764
    %v5446 = vsel %vm2262, %v5382, %v4766
    %v5447 = vsel %vm2262, %v5383, %v4768
    %v5448 = vsel %vm2262, %v5384, %v4770
    %v5449 = vsel %vm2262, %v5385, %v4772
    %v5450 = vsel %vm2262, %v5386, %v4774
    %v5451 = vsel %vm2262, %v5387, %v4776
    %v5452 = vsel %vm2262, %v5388, %v4778
    %v5453 = vsel %vm2262, %v5389, %v4780
    %v5454 = vsel %vm2262, %v5390, %v4782
    %v5455 = vsel %vm2262, %v5391, %v4784
    %v5456 = vsel %vm2262, %v5392, %v4786
    %v5457 = vsel %vm2262, %v5393, %v4788
    %v5458 = vsel %vm2262, %v5394, %v4790
    %v5459 = vsel %vm2262, %v5395, %v4792
    %v5460 = vsel %vm2262, %v5396, %v4794
    %v5461 = vsel %vm2262, %v5397, %v4796
    %v5462 = vsel %vm2262, %v5398, %v4798
    %v5463 = vsel %vm2262, %v5399, %v4800
    %v5464 = vsel %vm2262, %v5400, %v4802
    %v5465 = vsel %vm2327, %v5401, %v4880
    %v5466 = vsel %vm2327, %v5402, %v4882
    %v5467 = vsel %vm2327, %v5403, %v4884
    %v5468 = vsel %vm2327, %v5404, %v4886
    %v5469 = vsel %vm2327, %v5405, %v4888
    %v5470 = vsel %vm2327, %v5406, %v4890
    %v5471 = vsel %vm2327, %v5407, %v4892
    %v5472 = vsel %vm2327, %v5408, %v4894
    %v5473 = vsel %vm2327, %v5409, %v4896
    %v5474 = vsel %vm2327, %v5410, %v4898
    %v5475 = vsel %vm2327, %v5411, %v4900
    %v5476 = vsel %vm2327, %v5412, %v4902
    %v5477 = vsel %vm2327, %v5413, %v4904
    %v5478 = vsel %vm2327, %v5414, %v4906
    %v5479 = vsel %vm2327, %v5415, %v4908
    %v5480 = vsel %vm2327, %v5416, %v4910
    %v5481 = vsel %vm2327, %v5417, %v4912
    %v5482 = vsel %vm2327, %v5418, %v4914
    %v5483 = vsel %vm2327, %v5419, %v4916
    %v5484 = vsel %vm2327, %v5420, %v4918
    %v5485 = vsel %vm2327, %v5421, %v4920
    %v5486 = vsel %vm2327, %v5422, %v4922
    %v5487 = vsel %vm2327, %v5423, %v4924
    %v5488 = vsel %vm2327, %v5424, %v4926
    %v5489 = vsel %vm2327, %v5425, %v4928
    %v5490 = vsel %vm2327, %v5426, %v4930
    %v5491 = vsel %vm2327, %v5427, %v4932
    %v5492 = vsel %vm2327, %v5428, %v4934
    %v5493 = vsel %vm2327, %v5429, %v4936
    %v5494 = vsel %vm2327, %v5430, %v4938
    %v5495 = vsel %vm2327, %v5431, %v4940
    %v5496 = vsel %vm2327, %v5432, %v4942
    %v5497 = vsel %vm2327, %v5433, %v4944
    %v5498 = vsel %vm2327, %v5434, %v4946
    %v5499 = vsel %vm2327, %v5435, %v4948
    %v5500 = vsel %vm2327, %v5436, %v4950
    %v5501 = vsel %vm2327, %v5437, %v4952
    %v5502 = vsel %vm2327, %v5438, %v4954
    %v5503 = vsel %vm2327, %v5439, %v4956
    %v5504 = vsel %vm2327, %v5440, %v4958
    %v5505 = vsel %vm2327, %v5441, %v4960
    %v5506 = vsel %vm2327, %v5442, %v4962
    %v5507 = vsel %vm2327, %v5443, %v4964
    %v5508 = vsel %vm2327, %v5444, %v4966
    %v5509 = vsel %vm2327, %v5445, %v4968
    %v5510 = vsel %vm2327, %v5446, %v4970
    %v5511 = vsel %vm2327, %v5447, %v4972
    %v5512 = vsel %vm2327, %v5448, %v4974
    %v5513 = vsel %vm2327, %v5449, %v4976
    %v5514 = vsel %vm2327, %v5450, %v4978
    %v5515 = vsel %vm2327, %v5451, %v4980
    %v5516 = vsel %vm2327, %v5452, %v4982
    %v5517 = vsel %vm2327, %v5453, %v4984
    %v5518 = vsel %vm2327, %v5454, %v4986
    %v5519 = vsel %vm2327, %v5455, %v4988
    %v5520 = vsel %vm2327, %v5456, %v4990
    %v5521 = vsel %vm2327, %v5457, %v4992
    %v5522 = vsel %vm2327, %v5458, %v4994
    %v5523 = vsel %vm2327, %v5459, %v4996
    %v5524 = vsel %vm2327, %v5460, %v4998
    %v5525 = vsel %vm2327, %v5461, %v5000
    %v5526 = vsel %vm2327, %v5462, %v5002
    %v5527 = vsel %vm2327, %v5463, %v5004
    %v5528 = vsel %vm2327, %v5464, %v5006
    %v5529 = vld [vmem:[%s2] sm:$0xff]
    %v5530 = vld [vmem:[%s2 + $0x8] sm:$0xff]
    %v5531 = vld [vmem:[%s2 + $0x10] sm:$0xff]
    %v5532 = vld [vmem:[%s2 + $0x18] sm:$0xff]
    %v5533 = vld [vmem:[%s2 + $0x20] sm:$0xff]
    %v5534 = vld [vmem:[%s2 + $0x28] sm:$0xff]
    %v5535 = vld [vmem:[%s2 + $0x30] sm:$0xff]
    %v5536 = vld [vmem:[%s2 + $0x38] sm:$0xff]
    %v5537 = vld [vmem:[%s2 + $0x40] sm:$0xff]
    %v5538 = vld [vmem:[%s2 + $0x48] sm:$0xff]
    %v5539 = vld [vmem:[%s2 + $0x50] sm:$0xff]
    %v5540 = vld [vmem:[%s2 + $0x58] sm:$0xff]
    %v5541 = vld [vmem:[%s2 + $0x60] sm:$0xff]
    %v5542 = vld [vmem:[%s2 + $0x68] sm:$0xff]
    %v5543 = vld [vmem:[%s2 + $0x70] sm:$0xff]
    %v5544 = vld [vmem:[%s2 + $0x78] sm:$0xff]
    %v5545 = vld [vmem:[%s2 + $0x80] sm:$0xff]
    %v5546 = vld [vmem:[%s2 + $0x88] sm:$0xff]
    %v5547 = vsel %vm1937, %v3729, 0
    %v5549 = vsel %vm1937, %v3731, 0
    %v5551 = vsel %vm1937, %v3734, 0
    %v5553 = vsel %vm1937, %v3736, 0
    %v5555 = vsel %vm1937, %v3739, 0
    %v5557 = vsel %vm1937, %v3741, 0
    %v5559 = vsel %vm1937, %v3744, 0
    %v5561 = vsel %vm1937, %v3746, 0
    %v5563 = vsel %vm1937, %v3749, 0
    %v5565 = vsel %vm1937, %v3751, 0
    %v5567 = vsel %vm1937, %v3754, 0
    %v5569 = vsel %vm1937, %v3756, 0
    %v5571 = vsel %vm1937, %v3759, 0
    %v5573 = vsel %vm1937, %v3761, 0
    %v5575 = vsel %vm1937, %v3764, 0
    %v5577 = vsel %vm1937, %v3766, 0
    %v5579 = vsel %vm1937, %v3769, 0
    %v5581 = vsel %vm1937, %v3771, 0
    %v5583 = vsel %vm1937, %v3774, 0
    %v5585 = vsel %vm1937, %v3776, 0
    %v5587 = vsel %vm1937, %v3779, 0
    %v5589 = vsel %vm1937, %v3781, 0
    %v5591 = vsel %vm1937, %v3784, 0
    %v5593 = vsel %vm1937, %v3786, 0
    %v5595 = vsel %vm1937, %v3789, 0
    %v5597 = vsel %vm1937, %v3791, 0
    %v5599 = vsel %vm1937, %v3794, 0
    %v5601 = vsel %vm1937, %v3796, 0
    %v5603 = vsel %vm1937, %v4471, 0
    %v5605 = vsel %vm1937, %v4473, 0
    %v5607 = vsel %vm1937, %v5073, 0
    %v5609 = vsel %vm1937, %v5075, 0
    %v5611 = vsel %vm1937, %v3809, 0
    %v5613 = vsel %vm1937, %v3811, 0
    %v5615 = vsel %vm1937, %v3814, 0
    %v5617 = vsel %vm1937, %v3816, 0
    %v5619 = vsel %vm1937, %v3819, 0
    %v5621 = vsel %vm1937, %v3821, 0
    %v5623 = vsel %vm1937, %v3824, 0
    %v5625 = vsel %vm1937, %v3826, 0
    %v5627 = vsel %vm1937, %v3829, 0
    %v5629 = vsel %vm1937, %v3831, 0
    %v5631 = vsel %vm1937, %v3834, 0
    %v5633 = vsel %vm1937, %v3836, 0
    %v5635 = vsel %vm1937, %v3839, 0
    %v5637 = vsel %vm1937, %v3841, 0
    %v5639 = vsel %vm1937, %v3844, 0
    %v5641 = vsel %vm1937, %v3846, 0
    %v5643 = vsel %vm1937, %v3849, 0
    %v5645 = vsel %vm1937, %v3851, 0
    %v5647 = vsel %vm1937, %v3854, 0
    %v5649 = vsel %vm1937, %v3856, 0
    %v5651 = vsel %vm1937, %v3859, 0
    %v5653 = vsel %vm1937, %v3861, 0
    %v5655 = vsel %vm1937, %v3864, 0
    %v5657 = vsel %vm1937, %v3866, 0
    %v5659 = vsel %vm1937, %v3869, 0
    %v5661 = vsel %vm1937, %v3871, 0
    %v5663 = vsel %vm1937, %v3874, 0
    %v5665 = vsel %vm1937, %v3876, 0
    %v5667 = vsel %vm1937, %v4476, 0
    %v5669 = vsel %vm1937, %v4478, 0
    %v5671 = vsel %vm1937, %v5078, 0
    %v5673 = vsel %vm1937, %v5080, 0
    %5675 = vmatprep.subr.mxu0 0.0
    %5676 = vmatpush1.msra.mxu0 %v5544
    %5677 = vmatprep.subr.mxu0 0.0
    %5678 = vmatpush1.msra.mxu0 %v5543
    %5679 = vmatprep.subr.mxu0 0.0
    %5680 = vmatpush1.msra.mxu0 %v5542
    %5681 = vmatprep.subr.mxu0 0.0
    %5682 = vmatpush1.msra.mxu0 %v5541
    %5683 = vmatprep.subr.mxu0 0.0
    %5684 = vmatpush1.msra.mxu0 %v5540
    %5685 = vmatprep.subr.mxu0 0.0
    %5686 = vmatpush1.msra.mxu0 %v5539
    %5687 = vmatprep.subr.mxu0 0.0
    %5688 = vmatpush1.msra.mxu0 %v5538
    %5689 = vmatprep.subr.mxu0 0.0
    %5690 = vmatpush1.msra.mxu0 %v5537
    %5691 = vmatprep.subr.mxu0 0.0
    %5692 = vmatpush1.msra.mxu0 %v5536
    %5693 = vmatprep.subr.mxu0 0.0
    %5694 = vmatpush1.msra.mxu0 %v5535
    %5695 = vmatprep.subr.mxu0 0.0
    %5696 = vmatpush1.msra.mxu0 %v5534
    %5697 = vmatprep.subr.mxu0 0.0
    %5698 = vmatpush1.msra.mxu0 %v5533
    %5699 = vmatprep.subr.mxu0 0.0
    %5700 = vmatpush1.msra.mxu0 %v5532
    %5701 = vmatprep.subr.mxu0 0.0
    %5702 = vmatpush1.msra.mxu0 %v5531
    %5703 = vmatprep.subr.mxu0 0.0
    %5704 = vmatpush1.msra.mxu0 %v5530
    %5705 = vmatprep.subr.mxu0 0.0
    %5706 = vmatpush1.msra.mxu0 %v5529
    %5707 = vmatprep.subr.mxu0 0.0
    %5708 = vmatpush2.msra.mxu0 0.0
    %5709 = vmatprep.subr.mxu0 0.0
    %5710 = vmatpush2.msra.mxu0 0.0
    %5711 = vmatprep.subr.mxu0 0.0
    %5712 = vmatpush2.msra.mxu0 0.0
    %5713 = vmatprep.subr.mxu0 0.0
    %5714 = vmatpush2.msra.mxu0 0.0
    %5715 = vmatprep.subr.mxu0 0.0
    %5716 = vmatpush2.msra.mxu0 0.0
    %5717 = vmatprep.subr.mxu0 0.0
    %5718 = vmatpush2.msra.mxu0 0.0
    %5719 = vmatprep.subr.mxu0 0.0
    %5720 = vmatpush2.msra.mxu0 0.0
    %5721 = vmatprep.subr.mxu0 0.0
    %5722 = vmatpush2.msra.mxu0 0.0
    %5723 = vmatprep.subr.mxu0 0.0
    %5724 = vmatpush2.msra.mxu0 0.0
    %5725 = vmatprep.subr.mxu0 0.0
    %5726 = vmatpush2.msra.mxu0 0.0
    %5727 = vmatprep.subr.mxu0 0.0
    %5728 = vmatpush2.msra.mxu0 0.0
    %5729 = vmatprep.subr.mxu0 0.0
    %5730 = vmatpush2.msra.mxu0 0.0
    %5731 = vmatprep.subr.mxu0 0.0
    %5732 = vmatpush2.msra.mxu0 0.0
    %5733 = vmatprep.subr.mxu0 0.0
    %5734 = vmatpush2.msra.mxu0 0.0
    %5735 = vmatprep.subr.mxu0 0.0
    %5736 = vmatpush2.msra.mxu0 %v5546
    %5737 = vmatprep.subr.mxu0 0.0
    %5738 = vmatpush2.msra.mxu0 %v5545
    %5739 = vmatprep.mubr.f32.mxu0 %v5547
    %5740 = vmatmul.mubr.f32.gmra.mxu0 %v5465
    %v5741 = vpop.f32.mrf.mxu0
    %v5742 = vadd.f32 0.0, %v5741
    %v5743 = vpop.f32.mrf.mxu0
    %5744 = vmatprep.mubr.f32.mxu0 %v5549
    %5745 = vmatmul.mubr.f32.gmra.mxu0 %v5466
    %v5746 = vpop.f32.mrf.mxu0
    %v5747 = vadd.f32 0.0, %v5746
    %v5748 = vpop.f32.mrf.mxu0
    %5749 = vmatprep.mubr.f32.mxu0 %v5551
    %5750 = vmatmul.mubr.f32.gmra.mxu0 %v5467
    %v5751 = vpop.f32.mrf.mxu0
    %v5752 = vadd.f32 0.0, %v5751
    %v5753 = vpop.f32.mrf.mxu0
    %5754 = vmatprep.mubr.f32.mxu0 %v5553
    %5755 = vmatmul.mubr.f32.gmra.mxu0 %v5468
    %v5756 = vpop.f32.mrf.mxu0
    %v5757 = vadd.f32 0.0, %v5756
    %v5758 = vpop.f32.mrf.mxu0
    %5759 = vmatprep.mubr.f32.mxu0 %v5555
    %5760 = vmatmul.mubr.f32.gmra.mxu0 %v5469
    %v5761 = vpop.f32.mrf.mxu0
    %v5762 = vadd.f32 0.0, %v5761
    %v5763 = vpop.f32.mrf.mxu0
    %5764 = vmatprep.mubr.f32.mxu0 %v5557
    %5765 = vmatmul.mubr.f32.gmra.mxu0 %v5470
    %v5766 = vpop.f32.mrf.mxu0
    %v5767 = vadd.f32 0.0, %v5766
    %v5768 = vpop.f32.mrf.mxu0
    %5769 = vmatprep.mubr.f32.mxu0 %v5559
    %5770 = vmatmul.mubr.f32.gmra.mxu0 %v5471
    %v5771 = vpop.f32.mrf.mxu0
    %v5772 = vadd.f32 0.0, %v5771
    %v5773 = vpop.f32.mrf.mxu0
    %5774 = vmatprep.mubr.f32.mxu0 %v5561
    %5775 = vmatmul.mubr.f32.gmra.mxu0 %v5472
    %v5776 = vpop.f32.mrf.mxu0
    %v5777 = vadd.f32 0.0, %v5776
    %v5778 = vpop.f32.mrf.mxu0
    %5779 = vmatprep.mubr.f32.mxu0 %v5563
    %5780 = vmatmul.mubr.f32.gmra.mxu0 %v5473
    %v5781 = vpop.f32.mrf.mxu0
    %v5782 = vadd.f32 0.0, %v5781
    %v5783 = vpop.f32.mrf.mxu0
    %5784 = vmatprep.mubr.f32.mxu0 %v5565
    %5785 = vmatmul.mubr.f32.gmra.mxu0 %v5474
    %v5786 = vpop.f32.mrf.mxu0
    %v5787 = vadd.f32 0.0, %v5786
    %v5788 = vpop.f32.mrf.mxu0
    %5789 = vmatprep.mubr.f32.mxu0 %v5567
    %5790 = vmatmul.mubr.f32.gmra.mxu0 %v5475
    %v5791 = vpop.f32.mrf.mxu0
    %v5792 = vadd.f32 0.0, %v5791
    %v5793 = vpop.f32.mrf.mxu0
    %5794 = vmatprep.mubr.f32.mxu0 %v5569
    %5795 = vmatmul.mubr.f32.gmra.mxu0 %v5476
    %v5796 = vpop.f32.mrf.mxu0
    %v5797 = vadd.f32 0.0, %v5796
    %v5798 = vpop.f32.mrf.mxu0
    %5799 = vmatprep.mubr.f32.mxu0 %v5571
    %5800 = vmatmul.mubr.f32.gmra.mxu0 %v5477
    %v5801 = vpop.f32.mrf.mxu0
    %v5802 = vadd.f32 0.0, %v5801
    %v5803 = vpop.f32.mrf.mxu0
    %5804 = vmatprep.mubr.f32.mxu0 %v5573
    %5805 = vmatmul.mubr.f32.gmra.mxu0 %v5478
    %v5806 = vpop.f32.mrf.mxu0
    %v5807 = vadd.f32 0.0, %v5806
    %v5808 = vpop.f32.mrf.mxu0
    %5809 = vmatprep.mubr.f32.mxu0 %v5575
    %5810 = vmatmul.mubr.f32.gmra.mxu0 %v5479
    %v5811 = vpop.f32.mrf.mxu0
    %v5812 = vadd.f32 0.0, %v5811
    %v5813 = vpop.f32.mrf.mxu0
    %5814 = vmatprep.mubr.f32.mxu0 %v5577
    %5815 = vmatmul.mubr.f32.gmra.mxu0 %v5480
    %v5816 = vpop.f32.mrf.mxu0
    %v5817 = vadd.f32 0.0, %v5816
    %v5818 = vpop.f32.mrf.mxu0
    %5819 = vmatprep.mubr.f32.mxu0 %v5579
    %5820 = vmatmul.mubr.f32.gmra.mxu0 %v5481
    %v5821 = vpop.f32.mrf.mxu0
    %v5822 = vadd.f32 0.0, %v5821
    %v5823 = vpop.f32.mrf.mxu0
    %5824 = vmatprep.mubr.f32.mxu0 %v5581
    %5825 = vmatmul.mubr.f32.gmra.mxu0 %v5482
    %v5826 = vpop.f32.mrf.mxu0
    %v5827 = vadd.f32 0.0, %v5826
    %v5828 = vpop.f32.mrf.mxu0
    %5829 = vmatprep.mubr.f32.mxu0 %v5583
    %5830 = vmatmul.mubr.f32.gmra.mxu0 %v5483
    %v5831 = vpop.f32.mrf.mxu0
    %v5832 = vadd.f32 0.0, %v5831
    %v5833 = vpop.f32.mrf.mxu0
    %5834 = vmatprep.mubr.f32.mxu0 %v5585
    %5835 = vmatmul.mubr.f32.gmra.mxu0 %v5484
    %v5836 = vpop.f32.mrf.mxu0
    %v5837 = vadd.f32 0.0, %v5836
    %v5838 = vpop.f32.mrf.mxu0
    %5839 = vmatprep.mubr.f32.mxu0 %v5587
    %5840 = vmatmul.mubr.f32.gmra.mxu0 %v5485
    %v5841 = vpop.f32.mrf.mxu0
    %v5842 = vadd.f32 0.0, %v5841
    %v5843 = vpop.f32.mrf.mxu0
    %5844 = vmatprep.mubr.f32.mxu0 %v5589
    %5845 = vmatmul.mubr.f32.gmra.mxu0 %v5486
    %v5846 = vpop.f32.mrf.mxu0
    %v5847 = vadd.f32 0.0, %v5846
    %v5848 = vpop.f32.mrf.mxu0
    %5849 = vmatprep.mubr.f32.mxu0 %v5591
    %5850 = vmatmul.mubr.f32.gmra.mxu0 %v5487
    %v5851 = vpop.f32.mrf.mxu0
    %v5852 = vadd.f32 0.0, %v5851
    %v5853 = vpop.f32.mrf.mxu0
    %5854 = vmatprep.mubr.f32.mxu0 %v5593
    %5855 = vmatmul.mubr.f32.gmra.mxu0 %v5488
    %v5856 = vpop.f32.mrf.mxu0
    %v5857 = vadd.f32 0.0, %v5856
    %v5858 = vpop.f32.mrf.mxu0
    %5859 = vmatprep.mubr.f32.mxu0 %v5595
    %5860 = vmatmul.mubr.f32.gmra.mxu0 %v5489
    %v5861 = vpop.f32.mrf.mxu0
    %v5862 = vadd.f32 0.0, %v5861
    %v5863 = vpop.f32.mrf.mxu0
    %5864 = vmatprep.mubr.f32.mxu0 %v5597
    %5865 = vmatmul.mubr.f32.gmra.mxu0 %v5490
    %v5866 = vpop.f32.mrf.mxu0
    %v5867 = vadd.f32 0.0, %v5866
    %v5868 = vpop.f32.mrf.mxu0
    %5869 = vmatprep.mubr.f32.mxu0 %v5599
    %5870 = vmatmul.mubr.f32.gmra.mxu0 %v5491
    %v5871 = vpop.f32.mrf.mxu0
    %v5872 = vadd.f32 0.0, %v5871
    %v5873 = vpop.f32.mrf.mxu0
    %5874 = vmatprep.mubr.f32.mxu0 %v5601
    %5875 = vmatmul.mubr.f32.gmra.mxu0 %v5492
    %v5876 = vpop.f32.mrf.mxu0
    %v5877 = vadd.f32 0.0, %v5876
    %v5878 = vpop.f32.mrf.mxu0
    %5879 = vmatprep.mubr.f32.mxu0 %v5603
    %5880 = vmatmul.mubr.f32.gmra.mxu0 %v5493
    %v5881 = vpop.f32.mrf.mxu0
    %v5882 = vadd.f32 0.0, %v5881
    %v5883 = vpop.f32.mrf.mxu0
    %5884 = vmatprep.mubr.f32.mxu0 %v5605
    %5885 = vmatmul.mubr.f32.gmra.mxu0 %v5494
    %v5886 = vpop.f32.mrf.mxu0
    %v5887 = vadd.f32 0.0, %v5886
    %v5888 = vpop.f32.mrf.mxu0
    %5889 = vmatprep.mubr.f32.mxu0 %v5607
    %5890 = vmatmul.mubr.f32.gmra.mxu0 %v5495
    %v5891 = vpop.f32.mrf.mxu0
    %v5892 = vadd.f32 0.0, %v5891
    %v5893 = vpop.f32.mrf.mxu0
    %5894 = vmatprep.mubr.f32.mxu0 %v5609
    %5895 = vmatmul.mubr.f32.gmra.mxu0 %v5496
    %v5896 = vpop.f32.mrf.mxu0
    %v5897 = vadd.f32 0.0, %v5896
    %v5898 = vpop.f32.mrf.mxu0
    %5899 = vmatprep.mubr.f32.mxu0 %v5611
    %5900 = vmatmul.mubr.f32.gmra.mxu0 %v5497
    %v5901 = vpop.f32.mrf.mxu0
    %v5902 = vadd.f32 0.0, %v5901
    %v5903 = vpop.f32.mrf.mxu0
    %5904 = vmatprep.mubr.f32.mxu0 %v5613
    %5905 = vmatmul.mubr.f32.gmra.mxu0 %v5498
    %v5906 = vpop.f32.mrf.mxu0
    %v5907 = vadd.f32 0.0, %v5906
    %v5908 = vpop.f32.mrf.mxu0
    %5909 = vmatprep.mubr.f32.mxu0 %v5615
    %5910 = vmatmul.mubr.f32.gmra.mxu0 %v5499
    %v5911 = vpop.f32.mrf.mxu0
    %v5912 = vadd.f32 0.0, %v5911
    %v5913 = vpop.f32.mrf.mxu0
    %5914 = vmatprep.mubr.f32.mxu0 %v5617
    %5915 = vmatmul.mubr.f32.gmra.mxu0 %v5500
    %v5916 = vpop.f32.mrf.mxu0
    %v5917 = vadd.f32 0.0, %v5916
    %v5918 = vpop.f32.mrf.mxu0
    %5919 = vmatprep.mubr.f32.mxu0 %v5619
    %5920 = vmatmul.mubr.f32.gmra.mxu0 %v5501
    %v5921 = vpop.f32.mrf.mxu0
    %v5922 = vadd.f32 0.0, %v5921
    %v5923 = vpop.f32.mrf.mxu0
    %5924 = vmatprep.mubr.f32.mxu0 %v5621
    %5925 = vmatmul.mubr.f32.gmra.mxu0 %v5502
    %v5926 = vpop.f32.mrf.mxu0
    %v5927 = vadd.f32 0.0, %v5926
    %v5928 = vpop.f32.mrf.mxu0
    %5929 = vmatprep.mubr.f32.mxu0 %v5623
    %5930 = vmatmul.mubr.f32.gmra.mxu0 %v5503
    %v5931 = vpop.f32.mrf.mxu0
    %v5932 = vadd.f32 0.0, %v5931
    %v5933 = vpop.f32.mrf.mxu0
    %5934 = vmatprep.mubr.f32.mxu0 %v5625
    %5935 = vmatmul.mubr.f32.gmra.mxu0 %v5504
    %v5936 = vpop.f32.mrf.mxu0
    %v5937 = vadd.f32 0.0, %v5936
    %v5938 = vpop.f32.mrf.mxu0
    %5939 = vmatprep.mubr.f32.mxu0 %v5627
    %5940 = vmatmul.mubr.f32.gmra.mxu0 %v5505
    %v5941 = vpop.f32.mrf.mxu0
    %v5942 = vadd.f32 0.0, %v5941
    %v5943 = vpop.f32.mrf.mxu0
    %5944 = vmatprep.mubr.f32.mxu0 %v5629
    %5945 = vmatmul.mubr.f32.gmra.mxu0 %v5506
    %v5946 = vpop.f32.mrf.mxu0
    %v5947 = vadd.f32 0.0, %v5946
    %v5948 = vpop.f32.mrf.mxu0
    %5949 = vmatprep.mubr.f32.mxu0 %v5631
    %5950 = vmatmul.mubr.f32.gmra.mxu0 %v5507
    %v5951 = vpop.f32.mrf.mxu0
    %v5952 = vadd.f32 0.0, %v5951
    %v5953 = vpop.f32.mrf.mxu0
    %5954 = vmatprep.mubr.f32.mxu0 %v5633
    %5955 = vmatmul.mubr.f32.gmra.mxu0 %v5508
    %v5956 = vpop.f32.mrf.mxu0
    %v5957 = vadd.f32 0.0, %v5956
    %v5958 = vpop.f32.mrf.mxu0
    %5959 = vmatprep.mubr.f32.mxu0 %v5635
    %5960 = vmatmul.mubr.f32.gmra.mxu0 %v5509
    %v5961 = vpop.f32.mrf.mxu0
    %v5962 = vadd.f32 0.0, %v5961
    %v5963 = vpop.f32.mrf.mxu0
    %5964 = vmatprep.mubr.f32.mxu0 %v5637
    %5965 = vmatmul.mubr.f32.gmra.mxu0 %v5510
    %v5966 = vpop.f32.mrf.mxu0
    %v5967 = vadd.f32 0.0, %v5966
    %v5968 = vpop.f32.mrf.mxu0
    %5969 = vmatprep.mubr.f32.mxu0 %v5639
    %5970 = vmatmul.mubr.f32.gmra.mxu0 %v5511
    %v5971 = vpop.f32.mrf.mxu0
    %v5972 = vadd.f32 0.0, %v5971
    %v5973 = vpop.f32.mrf.mxu0
    %5974 = vmatprep.mubr.f32.mxu0 %v5641
    %5975 = vmatmul.mubr.f32.gmra.mxu0 %v5512
    %v5976 = vpop.f32.mrf.mxu0
    %v5977 = vadd.f32 0.0, %v5976
    %v5978 = vpop.f32.mrf.mxu0
    %5979 = vmatprep.mubr.f32.mxu0 %v5643
    %5980 = vmatmul.mubr.f32.gmra.mxu0 %v5513
    %v5981 = vpop.f32.mrf.mxu0
    %v5982 = vadd.f32 0.0, %v5981
    %v5983 = vpop.f32.mrf.mxu0
    %5984 = vmatprep.mubr.f32.mxu0 %v5645
    %5985 = vmatmul.mubr.f32.gmra.mxu0 %v5514
    %v5986 = vpop.f32.mrf.mxu0
    %v5987 = vadd.f32 0.0, %v5986
    %v5988 = vpop.f32.mrf.mxu0
    %5989 = vmatprep.mubr.f32.mxu0 %v5647
    %5990 = vmatmul.mubr.f32.gmra.mxu0 %v5515
    %v5991 = vpop.f32.mrf.mxu0
    %v5992 = vadd.f32 0.0, %v5991
    %v5993 = vpop.f32.mrf.mxu0
    %5994 = vmatprep.mubr.f32.mxu0 %v5649
    %5995 = vmatmul.mubr.f32.gmra.mxu0 %v5516
    %v5996 = vpop.f32.mrf.mxu0
    %v5997 = vadd.f32 0.0, %v5996
    %v5998 = vpop.f32.mrf.mxu0
    %5999 = vmatprep.mubr.f32.mxu0 %v5651
    %6000 = vmatmul.mubr.f32.gmra.mxu0 %v5517
    %v6001 = vpop.f32.mrf.mxu0
    %v6002 = vadd.f32 0.0, %v6001
    %v6003 = vpop.f32.mrf.mxu0
    %6004 = vmatprep.mubr.f32.mxu0 %v5653
    %6005 = vmatmul.mubr.f32.gmra.mxu0 %v5518
    %v6006 = vpop.f32.mrf.mxu0
    %v6007 = vadd.f32 0.0, %v6006
    %v6008 = vpop.f32.mrf.mxu0
    %6009 = vmatprep.mubr.f32.mxu0 %v5655
    %6010 = vmatmul.mubr.f32.gmra.mxu0 %v5519
    %v6011 = vpop.f32.mrf.mxu0
    %v6012 = vadd.f32 0.0, %v6011
    %v6013 = vpop.f32.mrf.mxu0
    %6014 = vmatprep.mubr.f32.mxu0 %v5657
    %6015 = vmatmul.mubr.f32.gmra.mxu0 %v5520
    %v6016 = vpop.f32.mrf.mxu0
    %v6017 = vadd.f32 0.0, %v6016
    %v6018 = vpop.f32.mrf.mxu0
    %6019 = vmatprep.mubr.f32.mxu0 %v5659
    %6020 = vmatmul.mubr.f32.gmra.mxu0 %v5521
    %v6021 = vpop.f32.mrf.mxu0
    %v6022 = vadd.f32 0.0, %v6021
    %v6023 = vpop.f32.mrf.mxu0
    %6024 = vmatprep.mubr.f32.mxu0 %v5661
    %6025 = vmatmul.mubr.f32.gmra.mxu0 %v5522
    %v6026 = vpop.f32.mrf.mxu0
    %v6027 = vadd.f32 0.0, %v6026
    %v6028 = vpop.f32.mrf.mxu0
    %6029 = vmatprep.mubr.f32.mxu0 %v5663
    %6030 = vmatmul.mubr.f32.gmra.mxu0 %v5523
    %v6031 = vpop.f32.mrf.mxu0
    %v6032 = vadd.f32 0.0, %v6031
    %v6033 = vpop.f32.mrf.mxu0
    %6034 = vmatprep.mubr.f32.mxu0 %v5665
    %6035 = vmatmul.mubr.f32.gmra.mxu0 %v5524
    %v6036 = vpop.f32.mrf.mxu0
    %v6037 = vadd.f32 0.0, %v6036
    %v6038 = vpop.f32.mrf.mxu0
    %6039 = vmatprep.mubr.f32.mxu0 %v5667
    %6040 = vmatmul.mubr.f32.gmra.mxu0 %v5525
    %v6041 = vpop.f32.mrf.mxu0
    %v6042 = vadd.f32 0.0, %v6041
    %v6043 = vpop.f32.mrf.mxu0
    %6044 = vmatprep.mubr.f32.mxu0 %v5669
    %6045 = vmatmul.mubr.f32.gmra.mxu0 %v5526
    %v6046 = vpop.f32.mrf.mxu0
    %v6047 = vadd.f32 0.0, %v6046
    %v6048 = vpop.f32.mrf.mxu0
    %6049 = vmatprep.mubr.f32.mxu0 %v5671
    %6050 = vmatmul.mubr.f32.gmra.mxu0 %v5527
    %v6051 = vpop.f32.mrf.mxu0
    %v6052 = vadd.f32 0.0, %v6051
    %v6053 = vpop.f32.mrf.mxu0
    %6054 = vmatprep.mubr.f32.mxu0 %v5673
    %6055 = vmatmul.mubr.f32.gmra.mxu0 %v5528
    %v6056 = vpop.f32.mrf.mxu0
    %v6057 = vadd.f32 0.0, %v6056
    %v6058 = vpop.f32.mrf.mxu0
    %6059 = vdwg.mxu0
    %v6124 = vadd.f32 %v5742, %v227
    %v6125 = vadd.f32 %v5747, %v229
    %v6126 = vadd.f32 %v5752, %v232
    %v6127 = vadd.f32 %v5757, %v234
    %v6128 = vadd.f32 %v5762, %v237
    %v6129 = vadd.f32 %v5767, %v239
    %v6130 = vadd.f32 %v5772, %v242
    %v6131 = vadd.f32 %v5777, %v244
    %v6132 = vadd.f32 %v5782, %v247
    %v6133 = vadd.f32 %v5787, %v249
    %v6134 = vadd.f32 %v5792, %v252
    %v6135 = vadd.f32 %v5797, %v254
    %v6136 = vadd.f32 %v5802, %v257
    %v6137 = vadd.f32 %v5807, %v259
    %v6138 = vadd.f32 %v5812, %v262
    %v6139 = vadd.f32 %v5817, %v264
    %v6140 = vadd.f32 %v5822, %v267
    %v6141 = vadd.f32 %v5827, %v269
    %v6142 = vadd.f32 %v5832, %v272
    %v6143 = vadd.f32 %v5837, %v274
    %v6144 = vadd.f32 %v5842, %v277
    %v6145 = vadd.f32 %v5847, %v279
    %v6146 = vadd.f32 %v5852, %v282
    %v6147 = vadd.f32 %v5857, %v284
    %v6148 = vadd.f32 %v5862, %v287
    %v6149 = vadd.f32 %v5867, %v289
    %v6150 = vadd.f32 %v5872, %v292
    %v6151 = vadd.f32 %v5877, %v294
    %v6152 = vadd.f32 %v5882, %v297
    %v6153 = vadd.f32 %v5887, %v299
    %v6154 = vadd.f32 %v5892, %v1125
    %v6155 = vadd.f32 %v5897, %v1127
    %v6156 = vadd.f32 %v5902, %v307
    %v6157 = vadd.f32 %v5907, %v309
    %v6158 = vadd.f32 %v5912, %v312
    %v6159 = vadd.f32 %v5917, %v314
    %v6160 = vadd.f32 %v5922, %v317
    %v6161 = vadd.f32 %v5927, %v319
    %v6162 = vadd.f32 %v5932, %v322
    %v6163 = vadd.f32 %v5937, %v324
    %v6164 = vadd.f32 %v5942, %v327
    %v6165 = vadd.f32 %v5947, %v329
    %v6166 = vadd.f32 %v5952, %v332
    %v6167 = vadd.f32 %v5957, %v334
    %v6168 = vadd.f32 %v5962, %v337
    %v6169 = vadd.f32 %v5967, %v339
    %v6170 = vadd.f32 %v5972, %v342
    %v6171 = vadd.f32 %v5977, %v344
    %v6172 = vadd.f32 %v5982, %v347
    %v6173 = vadd.f32 %v5987, %v349
    %v6174 = vadd.f32 %v5992, %v352
    %v6175 = vadd.f32 %v5997, %v354
    %v6176 = vadd.f32 %v6002, %v357
    %v6177 = vadd.f32 %v6007, %v359
    %v6178 = vadd.f32 %v6012, %v362
    %v6179 = vadd.f32 %v6017, %v364
    %v6180 = vadd.f32 %v6022, %v367
    %v6181 = vadd.f32 %v6027, %v369
    %v6182 = vadd.f32 %v6032, %v372
    %v6183 = vadd.f32 %v6037, %v374
    %v6184 = vadd.f32 %v6042, %v377
    %v6185 = vadd.f32 %v6047, %v379
    %v6186 = vadd.f32 %v6052, %v1130
    %v6187 = vadd.f32 %v6057, %v1132
    %v6188 = vtanh.pop %v6124
    %v6189 = vtanh.pop %v6125
    %v6190 = vtanh.pop %v6126
    %v6191 = vtanh.pop %v6127
    %v6192 = vtanh.pop %v6128
    %v6193 = vtanh.pop %v6129
    %v6194 = vtanh.pop %v6130
    %v6195 = vtanh.pop %v6131
    %v6196 = vtanh.pop %v6132
    %v6197 = vtanh.pop %v6133
    %v6198 = vtanh.pop %v6134
    %v6199 = vtanh.pop %v6135
    %v6200 = vtanh.pop %v6136
    %v6201 = vtanh.pop %v6137
    %v6202 = vtanh.pop %v6138
    %v6203 = vtanh.pop %v6139
    %v6204 = vtanh.pop %v6140
    %v6205 = vtanh.pop %v6141
    %v6206 = vtanh.pop %v6142
    %v6207 = vtanh.pop %v6143
    %v6208 = vtanh.pop %v6144
    %v6209 = vtanh.pop %v6145
    %v6210 = vtanh.pop %v6146
    %v6211 = vtanh.pop %v6147
    %v6212 = vtanh.pop %v6148
    %v6213 = vtanh.pop %v6149
    %v6214 = vtanh.pop %v6150
    %v6215 = vtanh.pop %v6151
    %v6216 = vtanh.pop %v6152
    %v6217 = vtanh.pop %v6153
    %v6218 = vtanh.pop %v6154
    %v6219 = vtanh.pop %v6155
    %v6220 = vtanh.pop %v6156
    %v6221 = vtanh.pop %v6157
    %v6222 = vtanh.pop %v6158
    %v6223 = vtanh.pop %v6159
    %v6224 = vtanh.pop %v6160
    %v6225 = vtanh.pop %v6161
    %v6226 = vtanh.pop %v6162
    %v6227 = vtanh.pop %v6163
    %v6228 = vtanh.pop %v6164
    %v6229 = vtanh.pop %v6165
    %v6230 = vtanh.pop %v6166
    %v6231 = vtanh.pop %v6167
    %v6232 = vtanh.pop %v6168
    %v6233 = vtanh.pop %v6169
    %v6234 = vtanh.pop %v6170
    %v6235 = vtanh.pop %v6171
    %v6236 = vtanh.pop %v6172
    %v6237 = vtanh.pop %v6173
    %v6238 = vtanh.pop %v6174
    %v6239 = vtanh.pop %v6175
    %v6240 = vtanh.pop %v6176
    %v6241 = vtanh.pop %v6177
    %v6242 = vtanh.pop %v6178
    %v6243 = vtanh.pop %v6179
    %v6244 = vtanh.pop %v6180
    %v6245 = vtanh.pop %v6181
    %v6246 = vtanh.pop %v6182
    %v6247 = vtanh.pop %v6183
    %v6248 = vtanh.pop %v6184
    %v6249 = vtanh.pop %v6185
    %v6250 = vtanh.pop %v6186
    %v6251 = vtanh.pop %v6187
    %6252 = vst.msk [vmem:[#allocation3] sm:$0xff] %vm1937, %v6188
    %6253 = vst.msk [vmem:[#allocation3 + $0x8] sm:$0xff] %vm1937, %v6189
    %6254 = vst.msk [vmem:[#allocation3 + $0x10] sm:$0xff] %vm1937, %v6190
    %6255 = vst.msk [vmem:[#allocation3 + $0x18] sm:$0xff] %vm1937, %v6191
    %6256 = vst.msk [vmem:[#allocation3 + $0x20] sm:$0xff] %vm1937, %v6192
    %6257 = vst.msk [vmem:[#allocation3 + $0x28] sm:$0xff] %vm1937, %v6193
    %6258 = vst.msk [vmem:[#allocation3 + $0x30] sm:$0xff] %vm1937, %v6194
    %6259 = vst.msk [vmem:[#allocation3 + $0x38] sm:$0xff] %vm1937, %v6195
    %6260 = vst.msk [vmem:[#allocation3 + $0x40] sm:$0xff] %vm1937, %v6196
    %6261 = vst.msk [vmem:[#allocation3 + $0x48] sm:$0xff] %vm1937, %v6197
    %6262 = vst.msk [vmem:[#allocation3 + $0x50] sm:$0xff] %vm1937, %v6198
    %6263 = vst.msk [vmem:[#allocation3 + $0x58] sm:$0xff] %vm1937, %v6199
    %6264 = vst.msk [vmem:[#allocation3 + $0x60] sm:$0xff] %vm1937, %v6200
    %6265 = vst.msk [vmem:[#allocation3 + $0x68] sm:$0xff] %vm1937, %v6201
    %6266 = vst.msk [vmem:[#allocation3 + $0x70] sm:$0xff] %vm1937, %v6202
    %6267 = vst.msk [vmem:[#allocation3 + $0x78] sm:$0xff] %vm1937, %v6203
    %6268 = vst.msk [vmem:[#allocation3 + $0x80] sm:$0xff] %vm1937, %v6204
    %6269 = vst.msk [vmem:[#allocation3 + $0x88] sm:$0xff] %vm1937, %v6205
    %6270 = vst.msk [vmem:[#allocation3 + $0x90] sm:$0xff] %vm1937, %v6206
    %6271 = vst.msk [vmem:[#allocation3 + $0x98] sm:$0xff] %vm1937, %v6207
    %6272 = vst.msk [vmem:[#allocation3 + $0xa0] sm:$0xff] %vm1937, %v6208
    %6273 = vst.msk [vmem:[#allocation3 + $0xa8] sm:$0xff] %vm1937, %v6209
    %6274 = vst.msk [vmem:[#allocation3 + $0xb0] sm:$0xff] %vm1937, %v6210
    %6275 = vst.msk [vmem:[#allocation3 + $0xb8] sm:$0xff] %vm1937, %v6211
    %6276 = vst.msk [vmem:[#allocation3 + $0xc0] sm:$0xff] %vm1937, %v6212
    %6277 = vst.msk [vmem:[#allocation3 + $0xc8] sm:$0xff] %vm1937, %v6213
    %6278 = vst.msk [vmem:[#allocation3 + $0xd0] sm:$0xff] %vm1937, %v6214
    %6279 = vst.msk [vmem:[#allocation3 + $0xd8] sm:$0xff] %vm1937, %v6215
    %6280 = vst.msk [vmem:[#allocation3 + $0xe0] sm:$0xff] %vm1937, %v6216
    %6281 = vst.msk [vmem:[#allocation3 + $0xe8] sm:$0xff] %vm1937, %v6217
    %6282 = vst.msk [vmem:[#allocation3 + $0xf0] sm:$0xff] %vm1937, %v6218
    %6283 = vst.msk [vmem:[#allocation3 + $0xf8] sm:$0xff] %vm1937, %v6219
    %6284 = vst.msk [vmem:[#allocation3 + $0x100] sm:$0xff] %vm1937, %v6220
    %6285 = vst.msk [vmem:[#allocation3 + $0x108] sm:$0xff] %vm1937, %v6221
    %6286 = vst.msk [vmem:[#allocation3 + $0x110] sm:$0xff] %vm1937, %v6222
    %6287 = vst.msk [vmem:[#allocation3 + $0x118] sm:$0xff] %vm1937, %v6223
    %6288 = vst.msk [vmem:[#allocation3 + $0x120] sm:$0xff] %vm1937, %v6224
    %6289 = vst.msk [vmem:[#allocation3 + $0x128] sm:$0xff] %vm1937, %v6225
    %6290 = vst.msk [vmem:[#allocation3 + $0x130] sm:$0xff] %vm1937, %v6226
    %6291 = vst.msk [vmem:[#allocation3 + $0x138] sm:$0xff] %vm1937, %v6227
    %6292 = vst.msk [vmem:[#allocation3 + $0x140] sm:$0xff] %vm1937, %v6228
    %6293 = vst.msk [vmem:[#allocation3 + $0x148] sm:$0xff] %vm1937, %v6229
    %6294 = vst.msk [vmem:[#allocation3 + $0x150] sm:$0xff] %vm1937, %v6230
    %6295 = vst.msk [vmem:[#allocation3 + $0x158] sm:$0xff] %vm1937, %v6231
    %6296 = vst.msk [vmem:[#allocation3 + $0x160] sm:$0xff] %vm1937, %v6232
    %6297 = vst.msk [vmem:[#allocation3 + $0x168] sm:$0xff] %vm1937, %v6233
    %6298 = vst.msk [vmem:[#allocation3 + $0x170] sm:$0xff] %vm1937, %v6234
    %6299 = vst.msk [vmem:[#allocation3 + $0x178] sm:$0xff] %vm1937, %v6235
    %6300 = vst.msk [vmem:[#allocation3 + $0x180] sm:$0xff] %vm1937, %v6236
    %6301 = vst.msk [vmem:[#allocation3 + $0x188] sm:$0xff] %vm1937, %v6237
    %6302 = vst.msk [vmem:[#allocation3 + $0x190] sm:$0xff] %vm1937, %v6238
    %6303 = vst.msk [vmem:[#allocation3 + $0x198] sm:$0xff] %vm1937, %v6239
    %6304 = vst.msk [vmem:[#allocation3 + $0x1a0] sm:$0xff] %vm1937, %v6240
    %6305 = vst.msk [vmem:[#allocation3 + $0x1a8] sm:$0xff] %vm1937, %v6241
    %6306 = vst.msk [vmem:[#allocation3 + $0x1b0] sm:$0xff] %vm1937, %v6242
    %6307 = vst.msk [vmem:[#allocation3 + $0x1b8] sm:$0xff] %vm1937, %v6243
    %6308 = vst.msk [vmem:[#allocation3 + $0x1c0] sm:$0xff] %vm1937, %v6244
    %6309 = vst.msk [vmem:[#allocation3 + $0x1c8] sm:$0xff] %vm1937, %v6245
    %6310 = vst.msk [vmem:[#allocation3 + $0x1d0] sm:$0xff] %vm1937, %v6246
    %6311 = vst.msk [vmem:[#allocation3 + $0x1d8] sm:$0xff] %vm1937, %v6247
    %6312 = vst.msk [vmem:[#allocation3 + $0x1e0] sm:$0xff] %vm1937, %v6248
    %6313 = vst.msk [vmem:[#allocation3 + $0x1e8] sm:$0xff] %vm1937, %v6249
    %6314 = vst.msk [vmem:[#allocation3 + $0x1f0] sm:$0xff] %vm1937, %v6250
    %6315 = vst.msk [vmem:[#allocation3 + $0x1f8] sm:$0xff] %vm1937, %v6251
    // Predicated region
    $region14: #{tpu_custom_call.1} parent=1 // pred_check
      _
    $region15: #{tpu_custom_call.1} parent=1 // pred_check_branch
      %6317 = sbr.rel (0) target = $region17
    $region16: #{tpu_custom_call.1} parent=1 // pred_region
      %s6319 = ssub.s32 8192, 8192
      %6320 = vsyncadd [#allocation4], %s6319
      %s6321 = sshll.u32 [#allocation3], 4
      %s6322 = int_to_ptr.vmem [resolvable:$true] %s6321
      %6327 = dma.vmem_to_hbm [thread:$0]  %s6322, 8192, %s3, [#allocation4], 128, 128, 8
    $region17: #{tpu_custom_call.1} parent=1 // pred_fallthru
      _
    // Predicated region
    $region18: #{tpu_custom_call.1} parent=1 // pred_check
      _
    $region19: #{tpu_custom_call.1} parent=1 // pred_check_branch
      %6329 = sbr.rel (0) target = $region21
    $region20: #{tpu_custom_call.1} parent=1 // pred_region
      %6330 = dma.done [#allocation4], 8192
    $region21: #{tpu_custom_call.1} parent=1 // pred_fallthru
      _
    %6331 = vsyncpa [#allocation4], 1

</llo_original>
